<compile_context>
chip_gen: v7x
topology: tpu7x:2x2x1
jax: 0.10.0
libtpu: 0.0.40
codegen_flags: <defaults>
</compile_context>

<pallas_src>
import numpy as np
import jax
import jax.numpy as jnp
from jax.experimental import pallas as pl
from jax.experimental.pallas import tpu as pltpu

LN_EPS = 1e-12


def _round_up(x, m):
    return (x + m - 1) // m * m


def _layer_norm(h, w, b):
    # single pass: mean and mean-of-squares together (one fewer VPU sweep)
    mu = jnp.mean(h, axis=-1, keepdims=True)
    ms = jnp.mean(h * h, axis=-1, keepdims=True)
    var = ms - mu * mu
    return (h - mu) * jax.lax.rsqrt(var + LN_EPS) * w + b


def make_dft_matrices(n, nfp):
    """Concatenated real matrices implementing rfft / irfft (norm='ortho') along seq.

    Returns F_cat [2*nfp, n] (rows 0:nf = Re part, nfp:nfp+nf = Im part, rest zero)
    and G_cat [n, 2*nfp] (cols 0:nf applied to Re, nfp:nfp+nf applied to Im, rest zero).
    Zero padding of nf -> nfp is mathematically inert.
    """
    nf = n // 2 + 1
    k = np.arange(nf)[:, None].astype(np.float64)
    t = np.arange(n)[None, :].astype(np.float64)
    ang = 2.0 * np.pi * k * t / n
    scale = 1.0 / np.sqrt(n)
    f_cos = np.cos(ang) * scale                 # [nf, n]   Re of forward rfft
    f_sin = -np.sin(ang) * scale                # [nf, n]   Im of forward rfft
    c = np.full((nf,), 2.0)
    c[0] = 1.0
    if n % 2 == 0:
        c[-1] = 1.0
    ang_inv = 2.0 * np.pi * np.arange(n)[:, None] * np.arange(nf)[None, :] / n
    g_cos = np.cos(ang_inv) * c[None, :] * scale    # [n, nf]  applied to Yr
    g_sin = -np.sin(ang_inv) * c[None, :] * scale   # [n, nf]  applied to Yi

    fpad = np.zeros((nfp - nf, n))
    gpad = np.zeros((n, nfp - nf))
    f_cat = np.concatenate([f_cos, fpad, f_sin, fpad], axis=0)    # [2*nfp, n]
    g_cat = np.concatenate([g_cos, gpad, g_sin, gpad], axis=1)    # [n, 2*nfp]
    return f_cat, g_cat


def _make_kernel(TB, N, D, NFP, L):
    TBN = TB * N

    def kernel(x_ref, fb_ref, gb_ref,
               wr_ref, wi_ref, ln1w_ref, ln1b_ref,
               w1_ref, b1_ref, w2_ref, b2_ref,
               ln2w_ref, ln2b_ref,
               o_ref, act_ref):
        l = pl.program_id(1)

        # Load the activation slab once (layer 0); it then stays resident in VMEM.
        @pl.when(l == 0)
        def _():
            act_ref[...] = x_ref[...].astype(jnp.float32)

        act = act_ref[...]                                   # (TB*N, D) f32
        act3 = act.reshape(TB, N, D).astype(jnp.bfloat16)    # free reshape (N % 8 == 0)

        # --- frequency-domain filter: rfft (ortho) -> complex weight -> irfft ---
        # one concatenated forward DFT matmul: rows [0:NFP)=Re, [NFP:2NFP)=Im
        xf = jnp.einsum('bfn,bnd->bfd', fb_ref[...], act3,
                        preferred_element_type=jnp.float32)  # (TB, 2*NFP, D) f32
        xr = xf[:, :NFP, :]
        xi = xf[:, NFP:, :]
        wr = wr_ref[0]                                       # (NFP, D) f32
        wi = wi_ref[0]
        yr = xr * wr - xi * wi
        yi = xr * wi + xi * wr
        y = jnp.concatenate([yr, yi], axis=1).astype(jnp.bfloat16)   # (TB, 2*NFP, D)
        # one concatenated inverse DFT matmul (gcos@yr + gsin@yi folded into contraction)
        filt = jnp.einsum('bnf,bfd->bnd', gb_ref[...], y,
                          preferred_element_type=jnp.float32)        # (TB, N, D) f32
        h = _layer_norm(filt.reshape(TBN, D) + act, ln1w_ref[0], ln1b_ref[0])

        # --- position-wise feed-forward (M = TB*N rows -> good MXU fill) ---
        # TODO(synk): tanh-approximate GELU vs PyTorch's exact erf GELU (~1e-3 rel diff).
        inner = jax.nn.gelu(
            jnp.dot(h.astype(jnp.bfloat16), w1_ref[0],
                    preferred_element_type=jnp.float32) + b1_ref[0],
            approximate=True)
        ff = jnp.dot(inner.astype(jnp.bfloat16), w2_ref[0],
                     preferred_element_type=jnp.float32) + b2_ref[0]
        out = _layer_norm(ff + h, ln2w_ref[0], ln2b_ref[0])

        act_ref[...] = out                                   # carry to next layer

        @pl.when(l == L - 1)
        def _():
            o_ref[...] = out.astype(o_ref.dtype)

    return kernel


def fourier_att_forward(x, params):
    """Encoder(output_all_encoded_layers=True)[-1] == output of the last layer."""
    B, N, D = x.shape
    fb = params['fb']
    TB = fb.shape[0]
    NFP = fb.shape[1] // 2
    L, _, H = params['w1'].shape
    assert B % TB == 0, "batch must be a multiple of the per-step block TB"
    assert N % 8 == 0, "seq_len must be a multiple of 8 (sublane tiling)"
    TBN = TB * N

    x2 = x.reshape(B * N, D)
    kernel = _make_kernel(TB, N, D, NFP, L)

    def wspec(shape):   # per-layer stacked weight: block index selects layer l
        return pl.BlockSpec((1,) + shape, lambda b, l: (l, 0, 0))

    def cspec(shape):   # layer/batch-invariant constant (DFT matrices)
        return pl.BlockSpec(shape, lambda b, l: (0, 0, 0))

    out2 = pl.pallas_call(
        kernel,
        out_shape=jax.ShapeDtypeStruct((B * N, D), x.dtype),
        grid_spec=pltpu.PrefetchScalarGridSpec(
            num_scalar_prefetch=0,
            grid=(B // TB, L),                       # batch blocks outer, layers inner
            in_specs=[
                pl.BlockSpec((TBN, D), lambda b, l: (b, 0)),   # x (read at layer 0)
                cspec((TB, 2 * NFP, N)),                        # forward DFT (tiled)
                cspec((TB, N, 2 * NFP)),                        # inverse DFT (tiled)
                wspec((NFP, D)), wspec((NFP, D)),               # complex filter re, im
                wspec((1, D)), wspec((1, D)),                   # LayerNorm 1 w, b
                wspec((D, H)), wspec((1, H)),                   # FFN W1 (bf16), b1
                wspec((H, D)), wspec((1, D)),                   # FFN W2 (bf16), b2
                wspec((1, D)), wspec((1, D)),                   # LayerNorm 2 w, b
            ],
            out_specs=pl.BlockSpec((TBN, D), lambda b, l: (b, 0)),
            scratch_shapes=[pltpu.VMEM((TBN, D), jnp.float32)]),   # resident activation
        compiler_params=pltpu.CompilerParams(
            dimension_semantics=("parallel", "arbitrary"),
            vmem_limit_bytes=48 * 1024 * 1024),
    )(x2, params['fb'], params['gb'],
      params['wr'], params['wi'], params['ln1_w'], params['ln1_b'],
      params['w1'], params['b1'], params['w2'], params['b2'],
      params['ln2_w'], params['ln2_b'])
    return out2.reshape(B, N, D)


def init_params(key, n_layers, N, D, H, TB, initializer_range=0.02):
    """Mirrors FourierAtt.init_weights: Linear ~ N(0, initializer_range), LayerNorm
    w=1 b=0, biases 0, complex filter ~ N(0,1)*0.02 (FMLP-Rec convention).
    Weights are stacked along a leading layer axis for the fused kernel."""
    NF = N // 2 + 1
    NFP = _round_up(NF, 8)
    f_cat, g_cat = make_dft_matrices(N, NFP)
    fb = jnp.asarray(np.tile(f_cat[None], (TB, 1, 1)), jnp.bfloat16)   # (TB, 2*NFP, N)
    gb = jnp.asarray(np.tile(g_cat[None], (TB, 1, 1)), jnp.bfloat16)   # (TB, N, 2*NFP)

    wr, wi, w1, w2 = [], [], [], []
    keys = jax.random.split(key, 4 * n_layers)
    for i in range(n_layers):
        k1, k2, k3, k4 = keys[4 * i:4 * i + 4]
        wr.append(jnp.zeros((NFP, D), jnp.float32).at[:NF].set(
            jax.random.normal(k1, (NF, D), jnp.float32) * 0.02))
        wi.append(jnp.zeros((NFP, D), jnp.float32).at[:NF].set(
            jax.random.normal(k2, (NF, D), jnp.float32) * 0.02))
        w1.append(jax.random.normal(k3, (D, H), jnp.float32) * initializer_range)
        w2.append(jax.random.normal(k4, (H, D), jnp.float32) * initializer_range)

    L = n_layers
    return {
        'fb': fb, 'gb': gb,
        'wr': jnp.stack(wr), 'wi': jnp.stack(wi),
        'ln1_w': jnp.ones((L, 1, D), jnp.float32),
        'ln1_b': jnp.zeros((L, 1, D), jnp.float32),
        'w1': jnp.stack(w1).astype(jnp.bfloat16),
        'b1': jnp.zeros((L, 1, H), jnp.float32),
        'w2': jnp.stack(w2).astype(jnp.bfloat16),
        'b2': jnp.zeros((L, 1, D), jnp.float32),
        'ln2_w': jnp.ones((L, 1, D), jnp.float32),
        'ln2_b': jnp.zeros((L, 1, D), jnp.float32),
    }


if __name__ == "__main__":
    B, N, D = 32, 8, 32          # batch, seq_len (max_seq_length), hidden_size
    H = 4 * D                    # FFN intermediate size
    n_layers = 2                 # args.num_hidden_layers
    TB = 16                      # sequences per grid step -> FFN matmul M = TB*N = 128

    key = jax.random.PRNGKey(0)
    key, kx = jax.random.split(key)
    # The module's `input_ids` reach the encoder as dense hidden states here.
    x = jax.random.normal(kx, (B, N, D), jnp.float32)

    params = init_params(key, n_layers, N, D, H, TB)
    out = fourier_att_forward(x, params)
    jax.block_until_ready(out)
    assert out.shape == (B, N, D) and out.dtype == jnp.float32
    assert bool(jnp.all(jnp.isfinite(out)))
    print("KERNEL_OK")
</pallas_src>

<mosaic_0001>
module attributes {stable_mosaic.version = 11 : i64} {
  func.func @kernel(%arg0: i32, %arg1: i32, %arg2: memref<128x32xf32, #tpu.memory_space<vmem>>, %arg3: memref<16x16x8xbf16, #tpu.memory_space<vmem>>, %arg4: memref<16x8x16xbf16, #tpu.memory_space<vmem>>, %arg5: memref<1x8x32xf32, #tpu.memory_space<vmem>>, %arg6: memref<1x8x32xf32, #tpu.memory_space<vmem>>, %arg7: memref<1x1x32xf32, #tpu.memory_space<vmem>>, %arg8: memref<1x1x32xf32, #tpu.memory_space<vmem>>, %arg9: memref<1x32x128xbf16, #tpu.memory_space<vmem>>, %arg10: memref<1x1x128xf32, #tpu.memory_space<vmem>>, %arg11: memref<1x128x32xbf16, #tpu.memory_space<vmem>>, %arg12: memref<1x1x32xf32, #tpu.memory_space<vmem>>, %arg13: memref<1x1x32xf32, #tpu.memory_space<vmem>>, %arg14: memref<1x1x32xf32, #tpu.memory_space<vmem>>, %arg15: memref<128x32xf32, #tpu.memory_space<vmem>>, %arg16: memref<128x32xf32, #tpu.memory_space<vmem>>) attributes {dimension_semantics = [#tpu.dimension_semantics<parallel>, #tpu.dimension_semantics<arbitrary>], iteration_bounds = array<i64: 2, 2>, scalar_prefetch = 0 : i64, scratch_operands = 1 : i64, tpu.core_type = #tpu.core_type<tc>, window_params = [{transform_indices = @transform_0, window_bounds = array<i64: 128, 32>}, {pipeline_mode = #tpu.pipeline_mode<synchronous>, transform_indices = @transform_1, window_bounds = array<i64: 16, 16, 8>}, {pipeline_mode = #tpu.pipeline_mode<synchronous>, transform_indices = @transform_2, window_bounds = array<i64: 16, 8, 16>}, {transform_indices = @transform_3, window_bounds = array<i64: 1, 8, 32>}, {transform_indices = @transform_4, window_bounds = array<i64: 1, 8, 32>}, {transform_indices = @transform_5, window_bounds = array<i64: 1, 1, 32>}, {transform_indices = @transform_6, window_bounds = array<i64: 1, 1, 32>}, {transform_indices = @transform_7, window_bounds = array<i64: 1, 32, 128>}, {transform_indices = @transform_8, window_bounds = array<i64: 1, 1, 128>}, {transform_indices = @transform_9, window_bounds = array<i64: 1, 128, 32>}, {transform_indices = @transform_10, window_bounds = array<i64: 1, 1, 32>}, {transform_indices = @transform_11, window_bounds = array<i64: 1, 1, 32>}, {transform_indices = @transform_12, window_bounds = array<i64: 1, 1, 32>}, {transform_indices = @transform_13, window_bounds = array<i64: 128, 32>}]} {
    %c0_i32 = arith.constant 0 : i32
    %0 = arith.cmpi eq, %arg1, %c0_i32 : i32
    %1 = arith.extui %0 : i1 to i32
    %c0_i32_0 = arith.constant 0 : i32
    %2 = arith.cmpi ne, %1, %c0_i32_0 : i32
    scf.if %2 {
      %c0_58 = arith.constant 0 : index
      %c0_59 = arith.constant 0 : index
      %120 = vector.load %arg2[%c0_58, %c0_59] : memref<128x32xf32, #tpu.memory_space<vmem>>, vector<128x32xf32>
      %c0_60 = arith.constant 0 : index
      %c0_61 = arith.constant 0 : index
      %121 = vector.load %arg16[%c0_60, %c0_61] : memref<128x32xf32, #tpu.memory_space<vmem>>, vector<128x32xf32>
      tpu.vector_store %arg16[%c0_60, %c0_61], %120 {strides = array<i32>} : memref<128x32xf32, #tpu.memory_space<vmem>>, vector<128x32xf32>,
    } else {
    }
    %c0 = arith.constant 0 : index
    %c0_1 = arith.constant 0 : index
    %3 = vector.load %arg16[%c0, %c0_1] : memref<128x32xf32, #tpu.memory_space<vmem>>, vector<128x32xf32>
    %4 = vector.shape_cast %3 : vector<128x32xf32> to vector<16x8x32xf32>
    %5 = arith.truncf %4 : vector<16x8x32xf32> to vector<16x8x32xbf16>
    %c0_2 = arith.constant 0 : index
    %c0_3 = arith.constant 0 : index
    %c0_4 = arith.constant 0 : index
    %6 = vector.load %arg3[%c0_2, %c0_3, %c0_4] : memref<16x16x8xbf16, #tpu.memory_space<vmem>>, vector<16x16x8xbf16>
    "tpu.trace_start"() <{level = 10 : i32, message = "bfn,bnd->bfd"}> : () -> ()
    %cst = arith.constant dense<0.000000e+00> : vector<16x16x32xf32>
    %7 = tpu.matmul %6, %5, %cst {dimension_numbers = #tpu.dot_dimension_numbers<[2], [1], [1], [2], [0, 0, 0, 1, 1, 2], [0], [0]>} : vector<16x16x8xbf16>, vector<16x8x32xbf16>, vector<16x16x32xf32> -> vector<16x16x32xf32>
    "tpu.trace_stop"() : () -> ()
    %8 = vector.extract_strided_slice %7 {offsets = [0, 0, 0], sizes = [16, 8, 32], strides = [1, 1, 1]} : vector<16x16x32xf32> to vector<16x8x32xf32>
    %9 = vector.extract_strided_slice %7 {offsets = [0, 8, 0], sizes = [16, 8, 32], strides = [1, 1, 1]} : vector<16x16x32xf32> to vector<16x8x32xf32>
    %c0_5 = arith.constant 0 : index
    %c0_6 = arith.constant 0 : index
    %c0_7 = arith.constant 0 : index
    %10 = vector.load %arg5[%c0_5, %c0_6, %c0_7] : memref<1x8x32xf32, #tpu.memory_space<vmem>>, vector<1x8x32xf32>
    %11 = vector.shape_cast %10 : vector<1x8x32xf32> to vector<8x32xf32>
    %c0_8 = arith.constant 0 : index
    %c0_9 = arith.constant 0 : index
    %c0_10 = arith.constant 0 : index
    %12 = vector.load %arg6[%c0_8, %c0_9, %c0_10] : memref<1x8x32xf32, #tpu.memory_space<vmem>>, vector<1x8x32xf32>
    %13 = vector.shape_cast %12 : vector<1x8x32xf32> to vector<8x32xf32>
    %14 = vector.shape_cast %11 : vector<8x32xf32> to vector<1x8x32xf32>
    %15 = vector.broadcast %14 : vector<1x8x32xf32> to vector<16x8x32xf32>
    %16 = arith.mulf %8, %15 : vector<16x8x32xf32>
    %17 = vector.shape_cast %13 : vector<8x32xf32> to vector<1x8x32xf32>
    %18 = vector.broadcast %17 : vector<1x8x32xf32> to vector<16x8x32xf32>
    %19 = arith.mulf %9, %18 : vector<16x8x32xf32>
    %20 = arith.subf %16, %19 : vector<16x8x32xf32>
    %21 = vector.shape_cast %13 : vector<8x32xf32> to vector<1x8x32xf32>
    %22 = vector.broadcast %21 : vector<1x8x32xf32> to vector<16x8x32xf32>
    %23 = arith.mulf %8, %22 : vector<16x8x32xf32>
    %24 = vector.shape_cast %11 : vector<8x32xf32> to vector<1x8x32xf32>
    %25 = vector.broadcast %24 : vector<1x8x32xf32> to vector<16x8x32xf32>
    %26 = arith.mulf %9, %25 : vector<16x8x32xf32>
    %27 = arith.addf %23, %26 : vector<16x8x32xf32>
    %28 = tpu.concatenate %20, %27 in 1 : vector<16x8x32xf32>, vector<16x8x32xf32> -> vector<16x16x32xf32>
    %29 = arith.truncf %28 : vector<16x16x32xf32> to vector<16x16x32xbf16>
    %c0_11 = arith.constant 0 : index
    %c0_12 = arith.constant 0 : index
    %c0_13 = arith.constant 0 : index
    %30 = vector.load %arg4[%c0_11, %c0_12, %c0_13] : memref<16x8x16xbf16, #tpu.memory_space<vmem>>, vector<16x8x16xbf16>
    "tpu.trace_start"() <{level = 10 : i32, message = "bnf,bfd->bnd"}> : () -> ()
    %cst_14 = arith.constant dense<0.000000e+00> : vector<16x8x32xf32>
    %31 = tpu.matmul %30, %29, %cst_14 {dimension_numbers = #tpu.dot_dimension_numbers<[2], [1], [1], [2], [0, 0, 0, 1, 1, 2], [0], [0]>} : vector<16x8x16xbf16>, vector<16x16x32xbf16>, vector<16x8x32xf32> -> vector<16x8x32xf32>
    "tpu.trace_stop"() : () -> ()
    %32 = vector.shape_cast %31 : vector<16x8x32xf32> to vector<128x32xf32>
    %33 = arith.addf %32, %3 : vector<128x32xf32>
    %c0_15 = arith.constant 0 : index
    %c0_16 = arith.constant 0 : index
    %c0_17 = arith.constant 0 : index
    %34 = vector.load %arg7[%c0_15, %c0_16, %c0_17] : memref<1x1x32xf32, #tpu.memory_space<vmem>>, vector<1x1x32xf32>
    %35 = vector.shape_cast %34 : vector<1x1x32xf32> to vector<1x32xf32>
    %c0_18 = arith.constant 0 : index
    %c0_19 = arith.constant 0 : index
    %c0_20 = arith.constant 0 : index
    %36 = vector.load %arg8[%c0_18, %c0_19, %c0_20] : memref<1x1x32xf32, #tpu.memory_space<vmem>>, vector<1x1x32xf32>
    %37 = vector.shape_cast %36 : vector<1x1x32xf32> to vector<1x32xf32>
    %cst_21 = arith.constant dense<0.000000e+00> : vector<128xf32>
    %38 = vector.multi_reduction <add>, %33, %cst_21 [1] : vector<128x32xf32> to vector<128xf32>
    %39 = vector.shape_cast %38 : vector<128xf32> to vector<128x1xf32>
    %cst_22 = arith.constant 3.200000e+01 : f32
    %40 = vector.broadcast %cst_22 : f32 to vector<128x1xf32>
    %41 = arith.divf %39, %40 : vector<128x1xf32>
    %42 = arith.mulf %33, %33 : vector<128x32xf32>
    %cst_23 = arith.constant dense<0.000000e+00> : vector<128xf32>
    %43 = vector.multi_reduction <add>, %42, %cst_23 [1] : vector<128x32xf32> to vector<128xf32>
    %44 = vector.shape_cast %43 : vector<128xf32> to vector<128x1xf32>
    %cst_24 = arith.constant 3.200000e+01 : f32
    %45 = vector.broadcast %cst_24 : f32 to vector<128x1xf32>
    %46 = arith.divf %44, %45 : vector<128x1xf32>
    %47 = arith.mulf %41, %41 : vector<128x1xf32>
    %48 = arith.subf %46, %47 : vector<128x1xf32>
    %49 = vector.broadcast %41 : vector<128x1xf32> to vector<128x32xf32>
    %50 = arith.subf %33, %49 : vector<128x32xf32>
    %cst_25 = arith.constant 9.99999996E-13 : f32
    %51 = vector.broadcast %cst_25 : f32 to vector<128x1xf32>
    %52 = arith.addf %48, %51 : vector<128x1xf32>
    %53 = math.rsqrt %52 : vector<128x1xf32>
    %54 = vector.broadcast %53 : vector<128x1xf32> to vector<128x32xf32>
    %55 = arith.mulf %50, %54 : vector<128x32xf32>
    %56 = vector.broadcast %35 : vector<1x32xf32> to vector<128x32xf32>
    %57 = arith.mulf %55, %56 : vector<128x32xf32>
    %58 = vector.broadcast %37 : vector<1x32xf32> to vector<128x32xf32>
    %59 = arith.addf %57, %58 : vector<128x32xf32>
    %60 = arith.truncf %59 : vector<128x32xf32> to vector<128x32xbf16>
    %c0_26 = arith.constant 0 : index
    %c0_27 = arith.constant 0 : index
    %c0_28 = arith.constant 0 : index
    %61 = vector.load %arg9[%c0_26, %c0_27, %c0_28] : memref<1x32x128xbf16, #tpu.memory_space<vmem>>, vector<1x32x128xbf16>
    %62 = vector.shape_cast %61 : vector<1x32x128xbf16> to vector<32x128xbf16>
    %cst_29 = arith.constant dense<0.000000e+00> : vector<128x128xf32>
    %63 = tpu.matmul %60, %62, %cst_29 {dimension_numbers = #tpu.dot_dimension_numbers<[1], [0], [0], [1], [0, 0, 1, 1], [], []>} : vector<128x32xbf16>, vector<32x128xbf16>, vector<128x128xf32> -> vector<128x128xf32>
    %c0_30 = arith.constant 0 : index
    %c0_31 = arith.constant 0 : index
    %c0_32 = arith.constant 0 : index
    %64 = vector.load %arg10[%c0_30, %c0_31, %c0_32] : memref<1x1x128xf32, #tpu.memory_space<vmem>>, vector<1x1x128xf32>
    %65 = vector.shape_cast %64 : vector<1x1x128xf32> to vector<1x128xf32>
    %66 = vector.broadcast %65 : vector<1x128xf32> to vector<128x128xf32>
    %67 = arith.addf %63, %66 : vector<128x128xf32>
    %68 = arith.mulf %67, %67 : vector<128x128xf32>
    %69 = arith.mulf %67, %68 : vector<128x128xf32>
    %cst_33 = arith.constant 4.471500e-02 : f32
    %70 = vector.broadcast %cst_33 : f32 to vector<128x128xf32>
    %71 = arith.mulf %70, %69 : vector<128x128xf32>
    %72 = arith.addf %67, %71 : vector<128x128xf32>
    %cst_34 = arith.constant 0.797884583 : f32
    %73 = vector.broadcast %cst_34 : f32 to vector<128x128xf32>
    %74 = arith.mulf %73, %72 : vector<128x128xf32>
    %75 = math.tanh %74 : vector<128x128xf32>
    %cst_35 = arith.constant 1.000000e+00 : f32
    %76 = vector.broadcast %cst_35 : f32 to vector<128x128xf32>
    %77 = arith.addf %76, %75 : vector<128x128xf32>
    %cst_36 = arith.constant 5.000000e-01 : f32
    %78 = vector.broadcast %cst_36 : f32 to vector<128x128xf32>
    %79 = arith.mulf %78, %77 : vector<128x128xf32>
    %80 = arith.mulf %67, %79 : vector<128x128xf32>
    %81 = arith.truncf %80 : vector<128x128xf32> to vector<128x128xbf16>
    %c0_37 = arith.constant 0 : index
    %c0_38 = arith.constant 0 : index
    %c0_39 = arith.constant 0 : index
    %82 = vector.load %arg11[%c0_37, %c0_38, %c0_39] : memref<1x128x32xbf16, #tpu.memory_space<vmem>>, vector<1x128x32xbf16>
    %83 = vector.shape_cast %82 : vector<1x128x32xbf16> to vector<128x32xbf16>
    %cst_40 = arith.constant dense<0.000000e+00> : vector<128x32xf32>
    %84 = tpu.matmul %81, %83, %cst_40 {dimension_numbers = #tpu.dot_dimension_numbers<[1], [0], [0], [1], [0, 0, 1, 1], [], []>} : vector<128x128xbf16>, vector<128x32xbf16>, vector<128x32xf32> -> vector<128x32xf32>
    %c0_41 = arith.constant 0 : index
    %c0_42 = arith.constant 0 : index
    %c0_43 = arith.constant 0 : index
    %85 = vector.load %arg12[%c0_41, %c0_42, %c0_43] : memref<1x1x32xf32, #tpu.memory_space<vmem>>, vector<1x1x32xf32>
    %86 = vector.shape_cast %85 : vector<1x1x32xf32> to vector<1x32xf32>
    %87 = vector.broadcast %86 : vector<1x32xf32> to vector<128x32xf32>
    %88 = arith.addf %84, %87 : vector<128x32xf32>
    %89 = arith.addf %88, %59 : vector<128x32xf32>
    %c0_44 = arith.constant 0 : index
    %c0_45 = arith.constant 0 : index
    %c0_46 = arith.constant 0 : index
    %90 = vector.load %arg13[%c0_44, %c0_45, %c0_46] : memref<1x1x32xf32, #tpu.memory_space<vmem>>, vector<1x1x32xf32>
    %91 = vector.shape_cast %90 : vector<1x1x32xf32> to vector<1x32xf32>
    %c0_47 = arith.constant 0 : index
    %c0_48 = arith.constant 0 : index
    %c0_49 = arith.constant 0 : index
    %92 = vector.load %arg14[%c0_47, %c0_48, %c0_49] : memref<1x1x32xf32, #tpu.memory_space<vmem>>, vector<1x1x32xf32>
    %93 = vector.shape_cast %92 : vector<1x1x32xf32> to vector<1x32xf32>
    %cst_50 = arith.constant dense<0.000000e+00> : vector<128xf32>
    %94 = vector.multi_reduction <add>, %89, %cst_50 [1] : vector<128x32xf32> to vector<128xf32>
    %95 = vector.shape_cast %94 : vector<128xf32> to vector<128x1xf32>
    %cst_51 = arith.constant 3.200000e+01 : f32
    %96 = vector.broadcast %cst_51 : f32 to vector<128x1xf32>
    %97 = arith.divf %95, %96 : vector<128x1xf32>
    %98 = arith.mulf %89, %89 : vector<128x32xf32>
    %cst_52 = arith.constant dense<0.000000e+00> : vector<128xf32>
    %99 = vector.multi_reduction <add>, %98, %cst_52 [1] : vector<128x32xf32> to vector<128xf32>
    %100 = vector.shape_cast %99 : vector<128xf32> to vector<128x1xf32>
    %cst_53 = arith.constant 3.200000e+01 : f32
    %101 = vector.broadcast %cst_53 : f32 to vector<128x1xf32>
    %102 = arith.divf %100, %101 : vector<128x1xf32>
    %103 = arith.mulf %97, %97 : vector<128x1xf32>
    %104 = arith.subf %102, %103 : vector<128x1xf32>
    %105 = vector.broadcast %97 : vector<128x1xf32> to vector<128x32xf32>
    %106 = arith.subf %89, %105 : vector<128x32xf32>
    %cst_54 = arith.constant 9.99999996E-13 : f32
    %107 = vector.broadcast %cst_54 : f32 to vector<128x1xf32>
    %108 = arith.addf %104, %107 : vector<128x1xf32>
    %109 = math.rsqrt %108 : vector<128x1xf32>
    %110 = vector.broadcast %109 : vector<128x1xf32> to vector<128x32xf32>
    %111 = arith.mulf %106, %110 : vector<128x32xf32>
    %112 = vector.broadcast %91 : vector<1x32xf32> to vector<128x32xf32>
    %113 = arith.mulf %111, %112 : vector<128x32xf32>
    %114 = vector.broadcast %93 : vector<1x32xf32> to vector<128x32xf32>
    %115 = arith.addf %113, %114 : vector<128x32xf32>
    %c0_55 = arith.constant 0 : index
    %c0_56 = arith.constant 0 : index
    %116 = vector.load %arg16[%c0_55, %c0_56] : memref<128x32xf32, #tpu.memory_space<vmem>>, vector<128x32xf32>
    tpu.vector_store %arg16[%c0_55, %c0_56], %115 {strides = array<i32>} : memref<128x32xf32, #tpu.memory_space<vmem>>, vector<128x32xf32>,
    %c1_i32 = arith.constant 1 : i32
    %117 = arith.cmpi eq, %arg1, %c1_i32 : i32
    %118 = arith.extui %117 : i1 to i32
    %c0_i32_57 = arith.constant 0 : i32
    %119 = arith.cmpi ne, %118, %c0_i32_57 : i32
    scf.if %119 {
      %c0_58 = arith.constant 0 : index
      %c0_59 = arith.constant 0 : index
      %120 = vector.load %arg15[%c0_58, %c0_59] : memref<128x32xf32, #tpu.memory_space<vmem>>, vector<128x32xf32>
      tpu.vector_store %arg15[%c0_58, %c0_59], %115 {strides = array<i32>} : memref<128x32xf32, #tpu.memory_space<vmem>>, vector<128x32xf32>,
    } else {
    }
    return
  }
  func.func @transform_0(%arg0: i32, %arg1: i32) -> (i32, i32) {
    %c0_i32 = arith.constant 0 : i32
    %c0_i32_0 = arith.constant 0 : i32
    return %arg0, %c0_i32 : i32, i32
  }
  func.func @transform_1(%arg0: i32, %arg1: i32) -> (i32, i32, i32) {
    %c0_i32 = arith.constant 0 : i32
    %c0_i32_0 = arith.constant 0 : i32
    %c0_i32_1 = arith.constant 0 : i32
    %c0_i32_2 = arith.constant 0 : i32
    return %c0_i32, %c0_i32_0, %c0_i32_1 : i32, i32, i32
  }
  func.func @transform_2(%arg0: i32, %arg1: i32) -> (i32, i32, i32) {
    %c0_i32 = arith.constant 0 : i32
    %c0_i32_0 = arith.constant 0 : i32
    %c0_i32_1 = arith.constant 0 : i32
    %c0_i32_2 = arith.constant 0 : i32
    return %c0_i32, %c0_i32_0, %c0_i32_1 : i32, i32, i32
  }
  func.func @transform_3(%arg0: i32, %arg1: i32) -> (i32, i32, i32) {
    %c0_i32 = arith.constant 0 : i32
    %c0_i32_0 = arith.constant 0 : i32
    %c0_i32_1 = arith.constant 0 : i32
    return %arg1, %c0_i32, %c0_i32_0 : i32, i32, i32
  }
  func.func @transform_4(%arg0: i32, %arg1: i32) -> (i32, i32, i32) {
    %c0_i32 = arith.constant 0 : i32
    %c0_i32_0 = arith.constant 0 : i32
    %c0_i32_1 = arith.constant 0 : i32
    return %arg1, %c0_i32, %c0_i32_0 : i32, i32, i32
  }
  func.func @transform_5(%arg0: i32, %arg1: i32) -> (i32, i32, i32) {
    %c0_i32 = arith.constant 0 : i32
    %c0_i32_0 = arith.constant 0 : i32
    %c0_i32_1 = arith.constant 0 : i32
    return %arg1, %c0_i32, %c0_i32_0 : i32, i32, i32
  }
  func.func @transform_6(%arg0: i32, %arg1: i32) -> (i32, i32, i32) {
    %c0_i32 = arith.constant 0 : i32
    %c0_i32_0 = arith.constant 0 : i32
    %c0_i32_1 = arith.constant 0 : i32
    return %arg1, %c0_i32, %c0_i32_0 : i32, i32, i32
  }
  func.func @transform_7(%arg0: i32, %arg1: i32) -> (i32, i32, i32) {
    %c0_i32 = arith.constant 0 : i32
    %c0_i32_0 = arith.constant 0 : i32
    %c0_i32_1 = arith.constant 0 : i32
    return %arg1, %c0_i32, %c0_i32_0 : i32, i32, i32
  }
  func.func @transform_8(%arg0: i32, %arg1: i32) -> (i32, i32, i32) {
    %c0_i32 = arith.constant 0 : i32
    %c0_i32_0 = arith.constant 0 : i32
    %c0_i32_1 = arith.constant 0 : i32
    return %arg1, %c0_i32, %c0_i32_0 : i32, i32, i32
  }
  func.func @transform_9(%arg0: i32, %arg1: i32) -> (i32, i32, i32) {
    %c0_i32 = arith.constant 0 : i32
    %c0_i32_0 = arith.constant 0 : i32
    %c0_i32_1 = arith.constant 0 : i32
    return %arg1, %c0_i32, %c0_i32_0 : i32, i32, i32
  }
  func.func @transform_10(%arg0: i32, %arg1: i32) -> (i32, i32, i32) {
    %c0_i32 = arith.constant 0 : i32
    %c0_i32_0 = arith.constant 0 : i32
    %c0_i32_1 = arith.constant 0 : i32
    return %arg1, %c0_i32, %c0_i32_0 : i32, i32, i32
  }
  func.func @transform_11(%arg0: i32, %arg1: i32) -> (i32, i32, i32) {
    %c0_i32 = arith.constant 0 : i32
    %c0_i32_0 = arith.constant 0 : i32
    %c0_i32_1 = arith.constant 0 : i32
    return %arg1, %c0_i32, %c0_i32_0 : i32, i32, i32
  }
  func.func @transform_12(%arg0: i32, %arg1: i32) -> (i32, i32, i32) {
    %c0_i32 = arith.constant 0 : i32
    %c0_i32_0 = arith.constant 0 : i32
    %c0_i32_1 = arith.constant 0 : i32
    return %arg1, %c0_i32, %c0_i32_0 : i32, i32, i32
  }
  func.func @transform_13(%arg0: i32, %arg1: i32) -> (i32, i32) {
    %c0_i32 = arith.constant 0 : i32
    %c0_i32_0 = arith.constant 0 : i32
    return %arg0, %c0_i32 : i32, i32
  }
}

</mosaic_0001>

<llo_original>
// kernel: tpu_custom_call.1
$region0: #{tpu_custom_call.1}
  #allocation0 [shape = 'u32[]', space=smem, size = 0x4, offset = 0x4, fixed_abs, tag = 'smem constant byte address 0x4 - core index']
  #allocation1 [shape = 'u32[144,128]{1,0:T(1,128)}', space=vmem, size = 0x12000, scoped, tag = 'internal scratch']
  #allocation2 [shape = 'f32[128,32]{1,0:T(8,128)}', space=vmem, size = 0x10000, scoped, tag = 'scratch operand']
  %s0 = inlined_call_operand.vmem [shape: f32[256,32], index: 0, kind: input, shape index: {}]
  %s1 = inlined_call_operand.vmem [shape: bf16[16,16,8], index: 1, kind: input, shape index: {}]
  %s2 = inlined_call_operand.vmem [shape: bf16[16,8,16], index: 2, kind: input, shape index: {}]
  %s3 = inlined_call_operand.vmem [shape: f32[2,8,32], index: 3, kind: input, shape index: {}]
  %s4 = inlined_call_operand.vmem [shape: f32[2,8,32], index: 4, kind: input, shape index: {}]
  %s5 = inlined_call_operand.vmem [shape: f32[2,1,32], index: 5, kind: input, shape index: {}]
  %s6 = inlined_call_operand.vmem [shape: f32[2,1,32], index: 6, kind: input, shape index: {}]
  %s7 = inlined_call_operand.vmem [shape: bf16[2,32,128], index: 7, kind: input, shape index: {}]
  %s8 = inlined_call_operand.vmem [shape: f32[2,1,128], index: 8, kind: input, shape index: {}]
  %s9 = inlined_call_operand.vmem [shape: bf16[2,128,32], index: 9, kind: input, shape index: {}]
  %s10 = inlined_call_operand.vmem [shape: f32[2,1,32], index: 10, kind: input, shape index: {}]
  %s11 = inlined_call_operand.vmem [shape: f32[2,1,32], index: 11, kind: input, shape index: {}]
  %s12 = inlined_call_operand.vmem [shape: f32[2,1,32], index: 12, kind: input, shape index: {}]
  %s13 = inlined_call_operand.vmem [shape: f32[256,32], index: 13, kind: output, shape index: {}]
  %s14 = sld [smem:[#allocation0]]
  $region93: #{tpu_custom_call.1} parent=0
    _
  %s16 = ssub.s32 1, %s14
  %s17 = scalar_select 0, %s16, %s14
  loop: start=0, step=1, limit=6
  $region2: #{tpu_custom_call.1} parent=0 // loop_pre_header
    _
  $region3: #{tpu_custom_call.1} parent=0 // loop_header
    %s19 = sphi 0, %s23
    %p20 = scmp.ge.s32.totalorder %s19, 6
    %s26 = sphi 0, %s38
    %s27 = sphi 0, %s34
    %s28 = sphi 0, %s26
    %s29 = sphi 0, %s27
    %s30 = sphi 0, %s28
    %s31 = sphi 0, %s29
    %s41 = sphi 0, %s43
    %s44 = sphi 0, %s41
    %s45 = sphi 0, %s44
    %s61 = sphi 0, %s45
    %s65 = sphi 0, %s65
    %s67 = sphi 0, %s65
    %s68 = sphi 0, %s67
    %s82 = sphi 0, %s68
    %s86 = sphi 0, %s86
    %s88 = sphi 0, %s86
    %s89 = sphi 0, %s88
    %s103 = sphi 0, %s89
    %s109 = sphi 0, %s111
    %s112 = sphi 0, %s109
    %s113 = sphi 0, %s112
    %s129 = sphi 0, %s113
    %s135 = sphi 0, %s137
    %s138 = sphi 0, %s135
    %s139 = sphi 0, %s138
    %s155 = sphi 0, %s139
    %s161 = sphi 0, %s163
    %s164 = sphi 0, %s161
    %s165 = sphi 0, %s164
    %s181 = sphi 0, %s165
    %s187 = sphi 0, %s189
    %s190 = sphi 0, %s187
    %s191 = sphi 0, %s190
    %s207 = sphi 0, %s191
    %s213 = sphi 0, %s215
    %s216 = sphi 0, %s213
    %s217 = sphi 0, %s216
    %s233 = sphi 0, %s217
    %s239 = sphi 0, %s241
    %s242 = sphi 0, %s239
    %s243 = sphi 0, %s242
    %s259 = sphi 0, %s243
    %s265 = sphi 0, %s267
    %s268 = sphi 0, %s265
    %s269 = sphi 0, %s268
    %s285 = sphi 0, %s269
    %s291 = sphi 0, %s293
    %s294 = sphi 0, %s291
    %s295 = sphi 0, %s294
    %s311 = sphi 0, %s295
    %s317 = sphi 0, %s319
    %s320 = sphi 0, %s317
    %s321 = sphi 0, %s320
    %s337 = sphi 0, %s321
    %s343 = sphi 0, %s345
    %s346 = sphi 0, %s343
    %s347 = sphi 0, %s346
    %s363 = sphi 0, %s347
    %s369 = sphi 0, %s371
    %s372 = sphi 0, %s369
    %s373 = sphi 0, %s372
    %s389 = sphi 0, %s373
  $region4: #{tpu_custom_call.1} parent=0 // loop_header_branch
    %22 = sbr.rel (%p20) target = $region8
  $region5: #{tpu_custom_call.1} parent=0 // loop_body
    %s24 = ssub.s32 %s19, 1
    %s25 = ssub.s32 %s19, 2
    %s32 = sadd.s32 1, %s27
    %p33 = scmp.ge.s32.totalorder %s32, 2
    %s34 = scalar_select %p33, 0, %s32
    %s35 = sadd.s32 1, %s26
    %s36 = scalar_select %p33, %s35, %s26
    %p37 = scmp.ge.s32.totalorder %s36, 2
    %s38 = scalar_select %p37, 0, %s36
    %s39 = ssub.s32 %s26, %s38
    %p40 = scmp.eq.s32.totalorder %s39, 0
    %s42 = sadd.s32 %s41, 1
    %s43 = scalar_select %p40, %s41, %s42
    %p46 = pneg %p40
    %p47 = scmp.eq.s32.totalorder %s19, 3
    %p48 = por %p46, %p47
    %p49 = scmp.ne.s32.totalorder %s41, %s44
    %p50 = scmp.eq.s32.totalorder %s19, 0
    %p51 = por %p49, %p50
    %p52 = scmp.ne.s32.totalorder %s41, %s44
    %p53 = scmp.eq.s32.totalorder %s24, 3
    %p54 = por %p52, %p53
    %p55 = scmp.ne.s32.totalorder %s44, %s45
    %p56 = scmp.eq.s32.totalorder %s24, 0
    %p57 = por %p55, %p56
    %p58 = scmp.ne.s32.totalorder %s44, %s45
    %p59 = scmp.eq.s32.totalorder %s25, 3
    %p60 = por %p58, %p59
    %p62 = scmp.ne.s32.totalorder %s45, %s61
    %p63 = scmp.eq.s32.totalorder %s25, 0
    %p64 = por %p62, %p63
    %s66 = sadd.s32 %s65, 1
    %p69 = scmp.eq.s32.totalorder %s19, 3
    %p70 = scmp.ne.s32.totalorder %s65, %s67
    %p71 = scmp.eq.s32.totalorder %s19, 0
    %p72 = por %p70, %p71
    %p73 = scmp.ne.s32.totalorder %s65, %s67
    %p74 = scmp.eq.s32.totalorder %s24, 3
    %p75 = por %p73, %p74
    %p76 = scmp.ne.s32.totalorder %s67, %s68
    %p77 = scmp.eq.s32.totalorder %s24, 0
    %p78 = por %p76, %p77
    %p79 = scmp.ne.s32.totalorder %s67, %s68
    %p80 = scmp.eq.s32.totalorder %s25, 3
    %p81 = por %p79, %p80
    %p83 = scmp.ne.s32.totalorder %s68, %s82
    %p84 = scmp.eq.s32.totalorder %s25, 0
    %p85 = por %p83, %p84
    %s87 = sadd.s32 %s86, 1
    %p90 = scmp.eq.s32.totalorder %s19, 3
    %p91 = scmp.ne.s32.totalorder %s86, %s88
    %p92 = scmp.eq.s32.totalorder %s19, 0
    %p93 = por %p91, %p92
    %p94 = scmp.ne.s32.totalorder %s86, %s88
    %p95 = scmp.eq.s32.totalorder %s24, 3
    %p96 = por %p94, %p95
    %p97 = scmp.ne.s32.totalorder %s88, %s89
    %p98 = scmp.eq.s32.totalorder %s24, 0
    %p99 = por %p97, %p98
    %p100 = scmp.ne.s32.totalorder %s88, %s89
    %p101 = scmp.eq.s32.totalorder %s25, 3
    %p102 = por %p100, %p101
    %p104 = scmp.ne.s32.totalorder %s89, %s103
    %p105 = scmp.eq.s32.totalorder %s25, 0
    %p106 = por %p104, %p105
    %s107 = ssub.s32 %s27, %s34
    %p108 = scmp.eq.s32.totalorder %s107, 0
    %s110 = sadd.s32 %s109, 1
    %s111 = scalar_select %p108, %s109, %s110
    %p114 = pneg %p108
    %p115 = scmp.eq.s32.totalorder %s19, 3
    %p116 = por %p114, %p115
    %p117 = scmp.ne.s32.totalorder %s109, %s112
    %p118 = scmp.eq.s32.totalorder %s19, 0
    %p119 = por %p117, %p118
    %p120 = scmp.ne.s32.totalorder %s109, %s112
    %p121 = scmp.eq.s32.totalorder %s24, 3
    %p122 = por %p120, %p121
    %p123 = scmp.ne.s32.totalorder %s112, %s113
    %p124 = scmp.eq.s32.totalorder %s24, 0
    %p125 = por %p123, %p124
    %p126 = scmp.ne.s32.totalorder %s112, %s113
    %p127 = scmp.eq.s32.totalorder %s25, 3
    %p128 = por %p126, %p127
    %p130 = scmp.ne.s32.totalorder %s113, %s129
    %p131 = scmp.eq.s32.totalorder %s25, 0
    %p132 = por %p130, %p131
    %s133 = ssub.s32 %s27, %s34
    %p134 = scmp.eq.s32.totalorder %s133, 0
    %s136 = sadd.s32 %s135, 1
    %s137 = scalar_select %p134, %s135, %s136
    %p140 = pneg %p134
    %p141 = scmp.eq.s32.totalorder %s19, 3
    %p142 = por %p140, %p141
    %p143 = scmp.ne.s32.totalorder %s135, %s138
    %p144 = scmp.eq.s32.totalorder %s19, 0
    %p145 = por %p143, %p144
    %p146 = scmp.ne.s32.totalorder %s135, %s138
    %p147 = scmp.eq.s32.totalorder %s24, 3
    %p148 = por %p146, %p147
    %p149 = scmp.ne.s32.totalorder %s138, %s139
    %p150 = scmp.eq.s32.totalorder %s24, 0
    %p151 = por %p149, %p150
    %p152 = scmp.ne.s32.totalorder %s138, %s139
    %p153 = scmp.eq.s32.totalorder %s25, 3
    %p154 = por %p152, %p153
    %p156 = scmp.ne.s32.totalorder %s139, %s155
    %p157 = scmp.eq.s32.totalorder %s25, 0
    %p158 = por %p156, %p157
    %s159 = ssub.s32 %s27, %s34
    %p160 = scmp.eq.s32.totalorder %s159, 0
    %s162 = sadd.s32 %s161, 1
    %s163 = scalar_select %p160, %s161, %s162
    %p166 = pneg %p160
    %p167 = scmp.eq.s32.totalorder %s19, 3
    %p168 = por %p166, %p167
    %p169 = scmp.ne.s32.totalorder %s161, %s164
    %p170 = scmp.eq.s32.totalorder %s19, 0
    %p171 = por %p169, %p170
    %p172 = scmp.ne.s32.totalorder %s161, %s164
    %p173 = scmp.eq.s32.totalorder %s24, 3
    %p174 = por %p172, %p173
    %p175 = scmp.ne.s32.totalorder %s164, %s165
    %p176 = scmp.eq.s32.totalorder %s24, 0
    %p177 = por %p175, %p176
    %p178 = scmp.ne.s32.totalorder %s164, %s165
    %p179 = scmp.eq.s32.totalorder %s25, 3
    %p180 = por %p178, %p179
    %p182 = scmp.ne.s32.totalorder %s165, %s181
    %p183 = scmp.eq.s32.totalorder %s25, 0
    %p184 = por %p182, %p183
    %s185 = ssub.s32 %s27, %s34
    %p186 = scmp.eq.s32.totalorder %s185, 0
    %s188 = sadd.s32 %s187, 1
    %s189 = scalar_select %p186, %s187, %s188
    %p192 = pneg %p186
    %p193 = scmp.eq.s32.totalorder %s19, 3
    %p194 = por %p192, %p193
    %p195 = scmp.ne.s32.totalorder %s187, %s190
    %p196 = scmp.eq.s32.totalorder %s19, 0
    %p197 = por %p195, %p196
    %p198 = scmp.ne.s32.totalorder %s187, %s190
    %p199 = scmp.eq.s32.totalorder %s24, 3
    %p200 = por %p198, %p199
    %p201 = scmp.ne.s32.totalorder %s190, %s191
    %p202 = scmp.eq.s32.totalorder %s24, 0
    %p203 = por %p201, %p202
    %p204 = scmp.ne.s32.totalorder %s190, %s191
    %p205 = scmp.eq.s32.totalorder %s25, 3
    %p206 = por %p204, %p205
    %p208 = scmp.ne.s32.totalorder %s191, %s207
    %p209 = scmp.eq.s32.totalorder %s25, 0
    %p210 = por %p208, %p209
    %s211 = ssub.s32 %s27, %s34
    %p212 = scmp.eq.s32.totalorder %s211, 0
    %s214 = sadd.s32 %s213, 1
    %s215 = scalar_select %p212, %s213, %s214
    %p218 = pneg %p212
    %p219 = scmp.eq.s32.totalorder %s19, 3
    %p220 = por %p218, %p219
    %p221 = scmp.ne.s32.totalorder %s213, %s216
    %p222 = scmp.eq.s32.totalorder %s19, 0
    %p223 = por %p221, %p222
    %p224 = scmp.ne.s32.totalorder %s213, %s216
    %p225 = scmp.eq.s32.totalorder %s24, 3
    %p226 = por %p224, %p225
    %p227 = scmp.ne.s32.totalorder %s216, %s217
    %p228 = scmp.eq.s32.totalorder %s24, 0
    %p229 = por %p227, %p228
    %p230 = scmp.ne.s32.totalorder %s216, %s217
    %p231 = scmp.eq.s32.totalorder %s25, 3
    %p232 = por %p230, %p231
    %p234 = scmp.ne.s32.totalorder %s217, %s233
    %p235 = scmp.eq.s32.totalorder %s25, 0
    %p236 = por %p234, %p235
    %s237 = ssub.s32 %s27, %s34
    %p238 = scmp.eq.s32.totalorder %s237, 0
    %s240 = sadd.s32 %s239, 1
    %s241 = scalar_select %p238, %s239, %s240
    %p244 = pneg %p238
    %p245 = scmp.eq.s32.totalorder %s19, 3
    %p246 = por %p244, %p245
    %p247 = scmp.ne.s32.totalorder %s239, %s242
    %p248 = scmp.eq.s32.totalorder %s19, 0
    %p249 = por %p247, %p248
    %p250 = scmp.ne.s32.totalorder %s239, %s242
    %p251 = scmp.eq.s32.totalorder %s24, 3
    %p252 = por %p250, %p251
    %p253 = scmp.ne.s32.totalorder %s242, %s243
    %p254 = scmp.eq.s32.totalorder %s24, 0
    %p255 = por %p253, %p254
    %p256 = scmp.ne.s32.totalorder %s242, %s243
    %p257 = scmp.eq.s32.totalorder %s25, 3
    %p258 = por %p256, %p257
    %p260 = scmp.ne.s32.totalorder %s243, %s259
    %p261 = scmp.eq.s32.totalorder %s25, 0
    %p262 = por %p260, %p261
    %s263 = ssub.s32 %s27, %s34
    %p264 = scmp.eq.s32.totalorder %s263, 0
    %s266 = sadd.s32 %s265, 1
    %s267 = scalar_select %p264, %s265, %s266
    %p270 = pneg %p264
    %p271 = scmp.eq.s32.totalorder %s19, 3
    %p272 = por %p270, %p271
    %p273 = scmp.ne.s32.totalorder %s265, %s268
    %p274 = scmp.eq.s32.totalorder %s19, 0
    %p275 = por %p273, %p274
    %p276 = scmp.ne.s32.totalorder %s265, %s268
    %p277 = scmp.eq.s32.totalorder %s24, 3
    %p278 = por %p276, %p277
    %p279 = scmp.ne.s32.totalorder %s268, %s269
    %p280 = scmp.eq.s32.totalorder %s24, 0
    %p281 = por %p279, %p280
    %p282 = scmp.ne.s32.totalorder %s268, %s269
    %p283 = scmp.eq.s32.totalorder %s25, 3
    %p284 = por %p282, %p283
    %p286 = scmp.ne.s32.totalorder %s269, %s285
    %p287 = scmp.eq.s32.totalorder %s25, 0
    %p288 = por %p286, %p287
    %s289 = ssub.s32 %s27, %s34
    %p290 = scmp.eq.s32.totalorder %s289, 0
    %s292 = sadd.s32 %s291, 1
    %s293 = scalar_select %p290, %s291, %s292
    %p296 = pneg %p290
    %p297 = scmp.eq.s32.totalorder %s19, 3
    %p298 = por %p296, %p297
    %p299 = scmp.ne.s32.totalorder %s291, %s294
    %p300 = scmp.eq.s32.totalorder %s19, 0
    %p301 = por %p299, %p300
    %p302 = scmp.ne.s32.totalorder %s291, %s294
    %p303 = scmp.eq.s32.totalorder %s24, 3
    %p304 = por %p302, %p303
    %p305 = scmp.ne.s32.totalorder %s294, %s295
    %p306 = scmp.eq.s32.totalorder %s24, 0
    %p307 = por %p305, %p306
    %p308 = scmp.ne.s32.totalorder %s294, %s295
    %p309 = scmp.eq.s32.totalorder %s25, 3
    %p310 = por %p308, %p309
    %p312 = scmp.ne.s32.totalorder %s295, %s311
    %p313 = scmp.eq.s32.totalorder %s25, 0
    %p314 = por %p312, %p313
    %s315 = ssub.s32 %s27, %s34
    %p316 = scmp.eq.s32.totalorder %s315, 0
    %s318 = sadd.s32 %s317, 1
    %s319 = scalar_select %p316, %s317, %s318
    %p322 = pneg %p316
    %p323 = scmp.eq.s32.totalorder %s19, 3
    %p324 = por %p322, %p323
    %p325 = scmp.ne.s32.totalorder %s317, %s320
    %p326 = scmp.eq.s32.totalorder %s19, 0
    %p327 = por %p325, %p326
    %p328 = scmp.ne.s32.totalorder %s317, %s320
    %p329 = scmp.eq.s32.totalorder %s24, 3
    %p330 = por %p328, %p329
    %p331 = scmp.ne.s32.totalorder %s320, %s321
    %p332 = scmp.eq.s32.totalorder %s24, 0
    %p333 = por %p331, %p332
    %p334 = scmp.ne.s32.totalorder %s320, %s321
    %p335 = scmp.eq.s32.totalorder %s25, 3
    %p336 = por %p334, %p335
    %p338 = scmp.ne.s32.totalorder %s321, %s337
    %p339 = scmp.eq.s32.totalorder %s25, 0
    %p340 = por %p338, %p339
    %s341 = ssub.s32 %s27, %s34
    %p342 = scmp.eq.s32.totalorder %s341, 0
    %s344 = sadd.s32 %s343, 1
    %s345 = scalar_select %p342, %s343, %s344
    %p348 = pneg %p342
    %p349 = scmp.eq.s32.totalorder %s19, 3
    %p350 = por %p348, %p349
    %p351 = scmp.ne.s32.totalorder %s343, %s346
    %p352 = scmp.eq.s32.totalorder %s19, 0
    %p353 = por %p351, %p352
    %p354 = scmp.ne.s32.totalorder %s343, %s346
    %p355 = scmp.eq.s32.totalorder %s24, 3
    %p356 = por %p354, %p355
    %p357 = scmp.ne.s32.totalorder %s346, %s347
    %p358 = scmp.eq.s32.totalorder %s24, 0
    %p359 = por %p357, %p358
    %p360 = scmp.ne.s32.totalorder %s346, %s347
    %p361 = scmp.eq.s32.totalorder %s25, 3
    %p362 = por %p360, %p361
    %p364 = scmp.ne.s32.totalorder %s347, %s363
    %p365 = scmp.eq.s32.totalorder %s25, 0
    %p366 = por %p364, %p365
    %s367 = ssub.s32 %s26, %s38
    %p368 = scmp.eq.s32.totalorder %s367, 0
    %s370 = sadd.s32 %s369, 1
    %s371 = scalar_select %p368, %s369, %s370
    %p374 = pneg %p368
    %p375 = scmp.eq.s32.totalorder %s19, 3
    %p376 = por %p374, %p375
    %p377 = scmp.ne.s32.totalorder %s369, %s372
    %p378 = scmp.eq.s32.totalorder %s19, 0
    %p379 = por %p377, %p378
    %p380 = scmp.ne.s32.totalorder %s369, %s372
    %p381 = scmp.eq.s32.totalorder %s24, 3
    %p382 = por %p380, %p381
    %p383 = scmp.ne.s32.totalorder %s372, %s373
    %p384 = scmp.eq.s32.totalorder %s24, 0
    %p385 = por %p383, %p384
    %p386 = scmp.ne.s32.totalorder %s372, %s373
    %p387 = scmp.eq.s32.totalorder %s25, 3
    %p388 = por %p386, %p387
    %p390 = scmp.ne.s32.totalorder %s373, %s389
    %p391 = scmp.eq.s32.totalorder %s25, 0
    %p392 = por %p390, %p391
    %p393 = scmp.le.s32.totalorder 1, %s19
    %p394 = scmp.lt.s32.totalorder %s19, 5
    %p395 = pnand %p393, %p394
    %p396 = pneg %p395
    // Predicated region
    $region9: #{tpu_custom_call.1} parent=5 // pred_check
      _
    $region10: #{tpu_custom_call.1} parent=5 // pred_check_branch
      %398 = sbr.rel (%p395) target = $region12
    $region11: #{tpu_custom_call.1} parent=5 // pred_region
      %s399 = ssub.s32 %s19, 1
      // Predicated region
      $region13: #{tpu_custom_call.1} parent=11 // pred_check
        %p400 = pneg %p78
      $region14: #{tpu_custom_call.1} parent=11 // pred_check_branch
        %402 = sbr.rel (%p400) target = $region16
      $region15: #{tpu_custom_call.1} parent=11 // pred_region
        _
      $region16: #{tpu_custom_call.1} parent=11 // pred_fallthru
        _
      // Predicated region
      $region17: #{tpu_custom_call.1} parent=11 // pred_check
        %p403 = pneg %p99
      $region18: #{tpu_custom_call.1} parent=11 // pred_check_branch
        %405 = sbr.rel (%p403) target = $region20
      $region19: #{tpu_custom_call.1} parent=11 // pred_region
        _
      $region20: #{tpu_custom_call.1} parent=11 // pred_fallthru
        _
    $region12: #{tpu_custom_call.1} parent=5 // pred_fallthru
      _
    %p406 = scmp.lt.s32.totalorder %s19, 4
    // Predicated region
    $region21: #{tpu_custom_call.1} parent=5 // pred_check
      %p407 = pneg %p406
    $region22: #{tpu_custom_call.1} parent=5 // pred_check_branch
      %409 = sbr.rel (%p407) target = $region24
    $region23: #{tpu_custom_call.1} parent=5 // pred_region
      // Predicated region
      $region25: #{tpu_custom_call.1} parent=23 // pred_check
        %p410 = pneg %p51
      $region26: #{tpu_custom_call.1} parent=23 // pred_check_branch
        %412 = sbr.rel (%p410) target = $region28
      $region27: #{tpu_custom_call.1} parent=23 // pred_region
        %s413 = smul.u32 16, %s26
        %p414 = scmp.lt.s32.totalorder %s413, 31
        %s415 = scalar_select %p414, %s413, 31
        %s416 = smul.addr %s415, 8
        %s417 = scalar_lea.vmem %s0, %s416
        %s418 = smul.u32 16, %s26
      $region28: #{tpu_custom_call.1} parent=23 // pred_fallthru
        _
      // Predicated region
      $region29: #{tpu_custom_call.1} parent=23 // pred_check
        %p419 = pneg %p119
      $region30: #{tpu_custom_call.1} parent=23 // pred_check_branch
        %421 = sbr.rel (%p419) target = $region32
      $region31: #{tpu_custom_call.1} parent=23 // pred_region
        %p422 = scmp.lt.s32.totalorder %s27, 1
        %s423 = scalar_select %p422, %s27, 1
        %s424 = smul.addr %s423, 8
        %s425 = scalar_lea.vmem %s3, %s424
      $region32: #{tpu_custom_call.1} parent=23 // pred_fallthru
        _
      // Predicated region
      $region33: #{tpu_custom_call.1} parent=23 // pred_check
        %p426 = pneg %p145
      $region34: #{tpu_custom_call.1} parent=23 // pred_check_branch
        %428 = sbr.rel (%p426) target = $region36
      $region35: #{tpu_custom_call.1} parent=23 // pred_region
        %p429 = scmp.lt.s32.totalorder %s27, 1
        %s430 = scalar_select %p429, %s27, 1
        %s431 = smul.addr %s430, 8
        %s432 = scalar_lea.vmem %s4, %s431
      $region36: #{tpu_custom_call.1} parent=23 // pred_fallthru
        _
      // Predicated region
      $region37: #{tpu_custom_call.1} parent=23 // pred_check
        %p433 = pneg %p171
      $region38: #{tpu_custom_call.1} parent=23 // pred_check_branch
        %435 = sbr.rel (%p433) target = $region40
      $region39: #{tpu_custom_call.1} parent=23 // pred_region
        %p436 = scmp.lt.s32.totalorder %s27, 1
        %s437 = scalar_select %p436, %s27, 1
        %s438 = scalar_lea.vmem %s5, %s437
      $region40: #{tpu_custom_call.1} parent=23 // pred_fallthru
        _
      // Predicated region
      $region41: #{tpu_custom_call.1} parent=23 // pred_check
        %p439 = pneg %p197
      $region42: #{tpu_custom_call.1} parent=23 // pred_check_branch
        %441 = sbr.rel (%p439) target = $region44
      $region43: #{tpu_custom_call.1} parent=23 // pred_region
        %p442 = scmp.lt.s32.totalorder %s27, 1
        %s443 = scalar_select %p442, %s27, 1
        %s444 = scalar_lea.vmem %s6, %s443
      $region44: #{tpu_custom_call.1} parent=23 // pred_fallthru
        _
      // Predicated region
      $region45: #{tpu_custom_call.1} parent=23 // pred_check
        %p445 = pneg %p223
      $region46: #{tpu_custom_call.1} parent=23 // pred_check_branch
        %447 = sbr.rel (%p445) target = $region48
      $region47: #{tpu_custom_call.1} parent=23 // pred_region
        %p448 = scmp.lt.s32.totalorder %s27, 1
        %s449 = scalar_select %p448, %s27, 1
        %s450 = smul.addr %s449, 4
        %s451 = smul.addr %s450, 4
        %s452 = scalar_lea.vmem %s7, %s451
      $region48: #{tpu_custom_call.1} parent=23 // pred_fallthru
        _
      // Predicated region
      $region49: #{tpu_custom_call.1} parent=23 // pred_check
        %p453 = pneg %p249
      $region50: #{tpu_custom_call.1} parent=23 // pred_check_branch
        %455 = sbr.rel (%p453) target = $region52
      $region51: #{tpu_custom_call.1} parent=23 // pred_region
        %p456 = scmp.lt.s32.totalorder %s27, 1
        %s457 = scalar_select %p456, %s27, 1
        %s458 = scalar_lea.vmem %s8, %s457
      $region52: #{tpu_custom_call.1} parent=23 // pred_fallthru
        _
      // Predicated region
      $region53: #{tpu_custom_call.1} parent=23 // pred_check
        %p459 = pneg %p275
      $region54: #{tpu_custom_call.1} parent=23 // pred_check_branch
        %461 = sbr.rel (%p459) target = $region56
      $region55: #{tpu_custom_call.1} parent=23 // pred_region
        %p462 = scmp.lt.s32.totalorder %s27, 1
        %s463 = scalar_select %p462, %s27, 1
        %s464 = smul.addr %s463, 16
        %s465 = smul.addr %s464, 4
        %s466 = scalar_lea.vmem %s9, %s465
      $region56: #{tpu_custom_call.1} parent=23 // pred_fallthru
        _
      // Predicated region
      $region57: #{tpu_custom_call.1} parent=23 // pred_check
        %p467 = pneg %p301
      $region58: #{tpu_custom_call.1} parent=23 // pred_check_branch
        %469 = sbr.rel (%p467) target = $region60
      $region59: #{tpu_custom_call.1} parent=23 // pred_region
        %p470 = scmp.lt.s32.totalorder %s27, 1
        %s471 = scalar_select %p470, %s27, 1
        %s472 = scalar_lea.vmem %s10, %s471
      $region60: #{tpu_custom_call.1} parent=23 // pred_fallthru
        _
      // Predicated region
      $region61: #{tpu_custom_call.1} parent=23 // pred_check
        %p473 = pneg %p327
      $region62: #{tpu_custom_call.1} parent=23 // pred_check_branch
        %475 = sbr.rel (%p473) target = $region64
      $region63: #{tpu_custom_call.1} parent=23 // pred_region
        %p476 = scmp.lt.s32.totalorder %s27, 1
        %s477 = scalar_select %p476, %s27, 1
        %s478 = scalar_lea.vmem %s11, %s477
      $region64: #{tpu_custom_call.1} parent=23 // pred_fallthru
        _
      // Predicated region
      $region65: #{tpu_custom_call.1} parent=23 // pred_check
        %p479 = pneg %p353
      $region66: #{tpu_custom_call.1} parent=23 // pred_check_branch
        %481 = sbr.rel (%p479) target = $region68
      $region67: #{tpu_custom_call.1} parent=23 // pred_region
        %p482 = scmp.lt.s32.totalorder %s27, 1
        %s483 = scalar_select %p482, %s27, 1
        %s484 = scalar_lea.vmem %s12, %s483
      $region68: #{tpu_custom_call.1} parent=23 // pred_fallthru
        _
    $region24: #{tpu_custom_call.1} parent=5 // pred_fallthru
      _
    %p485 = scmp.le.s32.totalorder 1, %s19
    %p486 = scmp.lt.s32.totalorder %s19, 5
    %p487 = pnand %p485, %p486
    %p488 = pneg %p487
    // Predicated region
    $region69: #{tpu_custom_call.1} parent=5 // pred_check
      _
    $region70: #{tpu_custom_call.1} parent=5 // pred_check_branch
      %490 = sbr.rel (%p487) target = $region72
    $region71: #{tpu_custom_call.1} parent=5 // pred_region
      %s491 = ssub.s32 %s19, 1
      %s492 = smul.u32 16, %s28
      %p493 = scmp.lt.s32.totalorder %s492, 31
      %s494 = scalar_select %p493, %s492, 31
      %s495 = smul.addr %s494, 8
      %s496 = scalar_lea.vmem %s0, %s495
      %p497 = pneg %p57
      %p498 = pneg %p54
      %p499 = pneg %p78
      %p500 = pneg %p75
      %p501 = pneg %p99
      %p502 = pneg %p96
      %p503 = scmp.lt.s32.totalorder %s29, 1
      %s504 = scalar_select %p503, %s29, 1
      %s505 = smul.addr %s504, 8
      %s506 = scalar_lea.vmem %s3, %s505
      %p507 = pneg %p125
      %p508 = pneg %p122
      %p509 = scmp.lt.s32.totalorder %s29, 1
      %s510 = scalar_select %p509, %s29, 1
      %s511 = smul.addr %s510, 8
      %s512 = scalar_lea.vmem %s4, %s511
      %p513 = pneg %p151
      %p514 = pneg %p148
      %p515 = scmp.lt.s32.totalorder %s29, 1
      %s516 = scalar_select %p515, %s29, 1
      %s517 = scalar_lea.vmem %s5, %s516
      %p518 = pneg %p177
      %p519 = pneg %p174
      %p520 = scmp.lt.s32.totalorder %s29, 1
      %s521 = scalar_select %p520, %s29, 1
      %s522 = scalar_lea.vmem %s6, %s521
      %p523 = pneg %p203
      %p524 = pneg %p200
      %p525 = scmp.lt.s32.totalorder %s29, 1
      %s526 = scalar_select %p525, %s29, 1
      %s527 = smul.addr %s526, 4
      %s528 = smul.addr %s527, 4
      %s529 = scalar_lea.vmem %s7, %s528
      %p530 = pneg %p229
      %p531 = pneg %p226
      %p532 = scmp.lt.s32.totalorder %s29, 1
      %s533 = scalar_select %p532, %s29, 1
      %s534 = scalar_lea.vmem %s8, %s533
      %p535 = pneg %p255
      %p536 = pneg %p252
      %p537 = scmp.lt.s32.totalorder %s29, 1
      %s538 = scalar_select %p537, %s29, 1
      %s539 = smul.addr %s538, 16
      %s540 = smul.addr %s539, 4
      %s541 = scalar_lea.vmem %s9, %s540
      %p542 = pneg %p281
      %p543 = pneg %p278
      %p544 = scmp.lt.s32.totalorder %s29, 1
      %s545 = scalar_select %p544, %s29, 1
      %s546 = scalar_lea.vmem %s10, %s545
      %p547 = pneg %p307
      %p548 = pneg %p304
      %p549 = scmp.lt.s32.totalorder %s29, 1
      %s550 = scalar_select %p549, %s29, 1
      %s551 = scalar_lea.vmem %s11, %s550
      %p552 = pneg %p333
      %p553 = pneg %p330
      %p554 = scmp.lt.s32.totalorder %s29, 1
      %s555 = scalar_select %p554, %s29, 1
      %s556 = scalar_lea.vmem %s12, %s555
      %p557 = pneg %p359
      %p558 = pneg %p356
      %p559 = pneg %p385
      %p560 = pneg %p382
      %s561 = smul.u32 16, %s28
      %p562 = scmp.lt.s32.totalorder %s561, 31
      %s563 = scalar_select %p562, %s561, 31
      %s564 = smul.addr %s563, 8
      %s565 = scalar_lea.vmem %s13, %s564
      %s566 = smul.u32 16, %s28
      %p567 = scmp.lt.s32.totalorder %s566, 31
      %s568 = scalar_select %p567, %s566, 31
      %s569 = smul.addr %s568, 8
      %s570 = scalar_lea.vmem %s0, %s569
      %s571 = smul.u32 16, %s28
      %p572 = scmp.lt.s32.totalorder %s29, 1
      %s573 = scalar_select %p572, %s29, 1
      %s574 = smul.addr %s573, 8
      %s575 = scalar_lea.vmem %s3, %s574
      %p576 = scmp.lt.s32.totalorder %s29, 1
      %s577 = scalar_select %p576, %s29, 1
      %s578 = smul.addr %s577, 8
      %s579 = scalar_lea.vmem %s4, %s578
      %p580 = scmp.lt.s32.totalorder %s29, 1
      %s581 = scalar_select %p580, %s29, 1
      %s582 = scalar_lea.vmem %s5, %s581
      %p583 = scmp.lt.s32.totalorder %s29, 1
      %s584 = scalar_select %p583, %s29, 1
      %s585 = scalar_lea.vmem %s6, %s584
      %p586 = scmp.lt.s32.totalorder %s29, 1
      %s587 = scalar_select %p586, %s29, 1
      %s588 = smul.addr %s587, 4
      %s589 = smul.addr %s588, 4
      %s590 = scalar_lea.vmem %s7, %s589
      %p591 = scmp.lt.s32.totalorder %s29, 1
      %s592 = scalar_select %p591, %s29, 1
      %s593 = scalar_lea.vmem %s8, %s592
      %p594 = scmp.lt.s32.totalorder %s29, 1
      %s595 = scalar_select %p594, %s29, 1
      %s596 = smul.addr %s595, 16
      %s597 = smul.addr %s596, 4
      %s598 = scalar_lea.vmem %s9, %s597
      %p599 = scmp.lt.s32.totalorder %s29, 1
      %s600 = scalar_select %p599, %s29, 1
      %s601 = scalar_lea.vmem %s10, %s600
      %p602 = scmp.lt.s32.totalorder %s29, 1
      %s603 = scalar_select %p602, %s29, 1
      %s604 = scalar_lea.vmem %s11, %s603
      %p605 = scmp.lt.s32.totalorder %s29, 1
      %s606 = scalar_select %p605, %s29, 1
      %s607 = scalar_lea.vmem %s12, %s606
      %s608 = smul.u32 16, %s28
      %p609 = scmp.lt.s32.totalorder %s608, 31
      %s610 = scalar_select %p609, %s608, 31
      %s611 = smul.addr %s610, 8
      %s612 = scalar_lea.vmem %s13, %s611
      %s613 = smul.u32 16, %s28
      %p615 = scmp.eq.s32.totalorder %s29, 0
      // Predicated region
      $region73: #{tpu_custom_call.1} parent=71 // pred_check
        %p616 = pneg %p615
      $region74: #{tpu_custom_call.1} parent=71 // pred_check_branch
        %618 = sbr.rel (%p616) target = $region76
      $region75: #{tpu_custom_call.1} parent=71 // pred_region
        %v619 = vld [vmem:[%s570] sm:$0xff]
        %v620 = vld [vmem:[%s570 + $0x8] sm:$0xff]
        %v621 = vld [vmem:[%s570 + $0x10] sm:$0xff]
        %v622 = vld [vmem:[%s570 + $0x18] sm:$0xff]
        %v623 = vld [vmem:[%s570 + $0x20] sm:$0xff]
        %v624 = vld [vmem:[%s570 + $0x28] sm:$0xff]
        %v625 = vld [vmem:[%s570 + $0x30] sm:$0xff]
        %v626 = vld [vmem:[%s570 + $0x38] sm:$0xff]
        %v627 = vld [vmem:[%s570 + $0x40] sm:$0xff]
        %v628 = vld [vmem:[%s570 + $0x48] sm:$0xff]
        %v629 = vld [vmem:[%s570 + $0x50] sm:$0xff]
        %v630 = vld [vmem:[%s570 + $0x58] sm:$0xff]
        %v631 = vld [vmem:[%s570 + $0x60] sm:$0xff]
        %v632 = vld [vmem:[%s570 + $0x68] sm:$0xff]
        %v633 = vld [vmem:[%s570 + $0x70] sm:$0xff]
        %v634 = vld [vmem:[%s570 + $0x78] sm:$0xff]
        %vm635 = vcmask 261120
        %636 = vst.msk [vmem:[#allocation2] sm:$0xff] %vm635, %v619
        %637 = vst.msk [vmem:[#allocation2 + $0x8] sm:$0xff] %vm635, %v620
        %638 = vst.msk [vmem:[#allocation2 + $0x10] sm:$0xff] %vm635, %v621
        %639 = vst.msk [vmem:[#allocation2 + $0x18] sm:$0xff] %vm635, %v622
        %640 = vst.msk [vmem:[#allocation2 + $0x20] sm:$0xff] %vm635, %v623
        %641 = vst.msk [vmem:[#allocation2 + $0x28] sm:$0xff] %vm635, %v624
        %642 = vst.msk [vmem:[#allocation2 + $0x30] sm:$0xff] %vm635, %v625
        %643 = vst.msk [vmem:[#allocation2 + $0x38] sm:$0xff] %vm635, %v626
        %644 = vst.msk [vmem:[#allocation2 + $0x40] sm:$0xff] %vm635, %v627
        %645 = vst.msk [vmem:[#allocation2 + $0x48] sm:$0xff] %vm635, %v628
        %646 = vst.msk [vmem:[#allocation2 + $0x50] sm:$0xff] %vm635, %v629
        %647 = vst.msk [vmem:[#allocation2 + $0x58] sm:$0xff] %vm635, %v630
        %648 = vst.msk [vmem:[#allocation2 + $0x60] sm:$0xff] %vm635, %v631
        %649 = vst.msk [vmem:[#allocation2 + $0x68] sm:$0xff] %vm635, %v632
        %650 = vst.msk [vmem:[#allocation2 + $0x70] sm:$0xff] %vm635, %v633
        %651 = vst.msk [vmem:[#allocation2 + $0x78] sm:$0xff] %vm635, %v634
      $region76: #{tpu_custom_call.1} parent=71 // pred_fallthru
        _
      %v652 = vld [vmem:[#allocation2] sm:$0xff]
      %v653 = vld [vmem:[#allocation2 + $0x8] sm:$0xff]
      %v654 = vld [vmem:[#allocation2 + $0x10] sm:$0xff]
      %v655 = vld [vmem:[#allocation2 + $0x18] sm:$0xff]
      %v656 = vld [vmem:[#allocation2 + $0x20] sm:$0xff]
      %v657 = vld [vmem:[#allocation2 + $0x28] sm:$0xff]
      %v658 = vld [vmem:[#allocation2 + $0x30] sm:$0xff]
      %v659 = vld [vmem:[#allocation2 + $0x38] sm:$0xff]
      %v660 = vld [vmem:[#allocation2 + $0x40] sm:$0xff]
      %v661 = vld [vmem:[#allocation2 + $0x48] sm:$0xff]
      %v662 = vld [vmem:[#allocation2 + $0x50] sm:$0xff]
      %v663 = vld [vmem:[#allocation2 + $0x58] sm:$0xff]
      %v664 = vld [vmem:[#allocation2 + $0x60] sm:$0xff]
      %v665 = vld [vmem:[#allocation2 + $0x68] sm:$0xff]
      %v666 = vld [vmem:[#allocation2 + $0x70] sm:$0xff]
      %v667 = vld [vmem:[#allocation2 + $0x78] sm:$0xff]
      %v668 = vpack.c.bf16 %v652, %v652
      %v669 = vpack.c.bf16 %v653, %v653
      %v670 = vpack.c.bf16 %v654, %v654
      %v671 = vpack.c.bf16 %v655, %v655
      %v672 = vpack.c.bf16 %v656, %v656
      %v673 = vpack.c.bf16 %v657, %v657
      %v674 = vpack.c.bf16 %v658, %v658
      %v675 = vpack.c.bf16 %v659, %v659
      %v676 = vpack.c.bf16 %v660, %v660
      %v677 = vpack.c.bf16 %v661, %v661
      %v678 = vpack.c.bf16 %v662, %v662
      %v679 = vpack.c.bf16 %v663, %v663
      %v680 = vpack.c.bf16 %v664, %v664
      %v681 = vpack.c.bf16 %v665, %v665
      %v682 = vpack.c.bf16 %v666, %v666
      %v683 = vpack.c.bf16 %v667, %v667
      %v684 = vld [vmem:[%s1] sm:$0xf]
      %v685 = vld [vmem:[%s1 + $0x4] sm:$0xf]
      %v686 = vld [vmem:[%s1 + $0x8] sm:$0xf]
      %v687 = vld [vmem:[%s1 + $0xc] sm:$0xf]
      %v688 = vld [vmem:[%s1 + $0x10] sm:$0xf]
      %v689 = vld [vmem:[%s1 + $0x14] sm:$0xf]
      %v690 = vld [vmem:[%s1 + $0x18] sm:$0xf]
      %v691 = vld [vmem:[%s1 + $0x1c] sm:$0xf]
      %v692 = vld [vmem:[%s1 + $0x20] sm:$0xf]
      %v693 = vld [vmem:[%s1 + $0x24] sm:$0xf]
      %v694 = vld [vmem:[%s1 + $0x28] sm:$0xf]
      %v695 = vld [vmem:[%s1 + $0x2c] sm:$0xf]
      %v696 = vld [vmem:[%s1 + $0x30] sm:$0xf]
      %v697 = vld [vmem:[%s1 + $0x34] sm:$0xf]
      %v698 = vld [vmem:[%s1 + $0x38] sm:$0xf]
      %v699 = vld [vmem:[%s1 + $0x3c] sm:$0xf]
      %v700 = vld [vmem:[%s1 + $0x40] sm:$0xf]
      %v701 = vld [vmem:[%s1 + $0x44] sm:$0xf]
      %v702 = vld [vmem:[%s1 + $0x48] sm:$0xf]
      %v703 = vld [vmem:[%s1 + $0x4c] sm:$0xf]
      %v704 = vld [vmem:[%s1 + $0x50] sm:$0xf]
      %v705 = vld [vmem:[%s1 + $0x54] sm:$0xf]
      %v706 = vld [vmem:[%s1 + $0x58] sm:$0xf]
      %v707 = vld [vmem:[%s1 + $0x5c] sm:$0xf]
      %v708 = vld [vmem:[%s1 + $0x60] sm:$0xf]
      %v709 = vld [vmem:[%s1 + $0x64] sm:$0xf]
      %v710 = vld [vmem:[%s1 + $0x68] sm:$0xf]
      %v711 = vld [vmem:[%s1 + $0x6c] sm:$0xf]
      %v712 = vld [vmem:[%s1 + $0x70] sm:$0xf]
      %v713 = vld [vmem:[%s1 + $0x74] sm:$0xf]
      %v714 = vld [vmem:[%s1 + $0x78] sm:$0xf]
      %v715 = vld [vmem:[%s1 + $0x7c] sm:$0xf]
      %v718 = vunpack.c.l.b16 %v684
      %v719 = vunpack.c.l.b16 %v685
      %v720 = vpack.c.b16 %v719, %v718
      %vm721 = vcmask 64512
      %v723 = vsel %vm721, %v720, 0
      %vm725 = vcmask 1043456
      %v727 = vsel %vm725, %v668, 0
      %729 = vmatprep.subr.bf16.mxu0 0
      %730 = vmatpush1.bf16.msra.mxu0 %v727
      %731 = vmatprep.subr.bf16.mxu0 0
      %732 = vmatpush1.bf16.msra.mxu0 0
      %733 = vmatprep.subr.bf16.mxu0 0
      %734 = vmatpush1.bf16.msra.mxu0 0
      %735 = vmatprep.subr.bf16.mxu0 0
      %736 = vmatpush1.bf16.msra.mxu0 0
      %737 = vmatprep.subr.bf16.mxu0 0
      %738 = vmatpush1.bf16.msra.mxu0 0
      %739 = vmatprep.subr.bf16.mxu0 0
      %740 = vmatpush1.bf16.msra.mxu0 0
      %741 = vmatprep.subr.bf16.mxu0 0
      %742 = vmatpush1.bf16.msra.mxu0 0
      %743 = vmatprep.subr.bf16.mxu0 0
      %744 = vmatpush1.bf16.msra.mxu0 0
      %745 = vmatprep.subr.bf16.mxu0 0
      %746 = vmatpush1.bf16.msra.mxu0 0
      %747 = vmatprep.subr.bf16.mxu0 0
      %748 = vmatpush1.bf16.msra.mxu0 0
      %749 = vmatprep.subr.bf16.mxu0 0
      %750 = vmatpush1.bf16.msra.mxu0 0
      %751 = vmatprep.subr.bf16.mxu0 0
      %752 = vmatpush1.bf16.msra.mxu0 0
      %753 = vmatprep.subr.bf16.mxu0 0
      %754 = vmatpush1.bf16.msra.mxu0 0
      %755 = vmatprep.subr.bf16.mxu0 0
      %756 = vmatpush1.bf16.msra.mxu0 0
      %757 = vmatprep.subr.bf16.mxu0 0
      %758 = vmatpush1.bf16.msra.mxu0 0
      %759 = vmatprep.subr.bf16.mxu0 0
      %760 = vmatpush1.bf16.msra.mxu0 0
      %761 = vmatprep.mubr.bf16.mxu0 0
      %762 = vmatmul.mubr.bf16.gmra.mrb[0].mxu0 %v723
      %v763 = vpop.f32.mrb[0].mxu0
      %v764 = vadd.f32 0.0, %v763
      %v765 = vpop.f32.mrb[0].mxu0
      %v766 = vpop.f32.mrb[0].mxu0
      %v767 = vadd.f32 0.0, %v766
      %v768 = vpop.f32.mrb[0].mxu0
      %769 = vdwg.mxu0
      %v772 = vunpack.c.l.b16 %v686
      %v773 = vunpack.c.l.b16 %v687
      %v774 = vpack.c.b16 %v773, %v772
      %v776 = vsel %vm721, %v774, 0
      %v779 = vsel %vm725, %v669, 0
      %781 = vmatprep.subr.bf16.mxu0 0
      %782 = vmatpush1.bf16.msra.mxu0 %v779
      %783 = vmatprep.subr.bf16.mxu0 0
      %784 = vmatpush1.bf16.msra.mxu0 0
      %785 = vmatprep.subr.bf16.mxu0 0
      %786 = vmatpush1.bf16.msra.mxu0 0
      %787 = vmatprep.subr.bf16.mxu0 0
      %788 = vmatpush1.bf16.msra.mxu0 0
      %789 = vmatprep.subr.bf16.mxu0 0
      %790 = vmatpush1.bf16.msra.mxu0 0
      %791 = vmatprep.subr.bf16.mxu0 0
      %792 = vmatpush1.bf16.msra.mxu0 0
      %793 = vmatprep.subr.bf16.mxu0 0
      %794 = vmatpush1.bf16.msra.mxu0 0
      %795 = vmatprep.subr.bf16.mxu0 0
      %796 = vmatpush1.bf16.msra.mxu0 0
      %797 = vmatprep.subr.bf16.mxu0 0
      %798 = vmatpush1.bf16.msra.mxu0 0
      %799 = vmatprep.subr.bf16.mxu0 0
      %800 = vmatpush1.bf16.msra.mxu0 0
      %801 = vmatprep.subr.bf16.mxu0 0
      %802 = vmatpush1.bf16.msra.mxu0 0
      %803 = vmatprep.subr.bf16.mxu0 0
      %804 = vmatpush1.bf16.msra.mxu0 0
      %805 = vmatprep.subr.bf16.mxu0 0
      %806 = vmatpush1.bf16.msra.mxu0 0
      %807 = vmatprep.subr.bf16.mxu0 0
      %808 = vmatpush1.bf16.msra.mxu0 0
      %809 = vmatprep.subr.bf16.mxu0 0
      %810 = vmatpush1.bf16.msra.mxu0 0
      %811 = vmatprep.subr.bf16.mxu0 0
      %812 = vmatpush1.bf16.msra.mxu0 0
      %813 = vmatprep.mubr.bf16.mxu0 0
      %814 = vmatmul.mubr.bf16.gmra.mrb[0].mxu0 %v776
      %v815 = vpop.f32.mrb[0].mxu0
      %v816 = vadd.f32 0.0, %v815
      %v817 = vpop.f32.mrb[0].mxu0
      %v818 = vpop.f32.mrb[0].mxu0
      %v819 = vadd.f32 0.0, %v818
      %v820 = vpop.f32.mrb[0].mxu0
      %821 = vdwg.mxu0
      %v824 = vunpack.c.l.b16 %v688
      %v825 = vunpack.c.l.b16 %v689
      %v826 = vpack.c.b16 %v825, %v824
      %v828 = vsel %vm721, %v826, 0
      %v831 = vsel %vm725, %v670, 0
      %833 = vmatprep.subr.bf16.mxu0 0
      %834 = vmatpush1.bf16.msra.mxu0 %v831
      %835 = vmatprep.subr.bf16.mxu0 0
      %836 = vmatpush1.bf16.msra.mxu0 0
      %837 = vmatprep.subr.bf16.mxu0 0
      %838 = vmatpush1.bf16.msra.mxu0 0
      %839 = vmatprep.subr.bf16.mxu0 0
      %840 = vmatpush1.bf16.msra.mxu0 0
      %841 = vmatprep.subr.bf16.mxu0 0
      %842 = vmatpush1.bf16.msra.mxu0 0
      %843 = vmatprep.subr.bf16.mxu0 0
      %844 = vmatpush1.bf16.msra.mxu0 0
      %845 = vmatprep.subr.bf16.mxu0 0
      %846 = vmatpush1.bf16.msra.mxu0 0
      %847 = vmatprep.subr.bf16.mxu0 0
      %848 = vmatpush1.bf16.msra.mxu0 0
      %849 = vmatprep.subr.bf16.mxu0 0
      %850 = vmatpush1.bf16.msra.mxu0 0
      %851 = vmatprep.subr.bf16.mxu0 0
      %852 = vmatpush1.bf16.msra.mxu0 0
      %853 = vmatprep.subr.bf16.mxu0 0
      %854 = vmatpush1.bf16.msra.mxu0 0
      %855 = vmatprep.subr.bf16.mxu0 0
      %856 = vmatpush1.bf16.msra.mxu0 0
      %857 = vmatprep.subr.bf16.mxu0 0
      %858 = vmatpush1.bf16.msra.mxu0 0
      %859 = vmatprep.subr.bf16.mxu0 0
      %860 = vmatpush1.bf16.msra.mxu0 0
      %861 = vmatprep.subr.bf16.mxu0 0
      %862 = vmatpush1.bf16.msra.mxu0 0
      %863 = vmatprep.subr.bf16.mxu0 0
      %864 = vmatpush1.bf16.msra.mxu0 0
      %865 = vmatprep.mubr.bf16.mxu0 0
      %866 = vmatmul.mubr.bf16.gmra.mrb[0].mxu0 %v828
      %v867 = vpop.f32.mrb[0].mxu0
      %v868 = vadd.f32 0.0, %v867
      %v869 = vpop.f32.mrb[0].mxu0
      %v870 = vpop.f32.mrb[0].mxu0
      %v871 = vadd.f32 0.0, %v870
      %v872 = vpop.f32.mrb[0].mxu0
      %873 = vdwg.mxu0
      %v876 = vunpack.c.l.b16 %v690
      %v877 = vunpack.c.l.b16 %v691
      %v878 = vpack.c.b16 %v877, %v876
      %v880 = vsel %vm721, %v878, 0
      %v883 = vsel %vm725, %v671, 0
      %885 = vmatprep.subr.bf16.mxu0 0
      %886 = vmatpush1.bf16.msra.mxu0 %v883
      %887 = vmatprep.subr.bf16.mxu0 0
      %888 = vmatpush1.bf16.msra.mxu0 0
      %889 = vmatprep.subr.bf16.mxu0 0
      %890 = vmatpush1.bf16.msra.mxu0 0
      %891 = vmatprep.subr.bf16.mxu0 0
      %892 = vmatpush1.bf16.msra.mxu0 0
      %893 = vmatprep.subr.bf16.mxu0 0
      %894 = vmatpush1.bf16.msra.mxu0 0
      %895 = vmatprep.subr.bf16.mxu0 0
      %896 = vmatpush1.bf16.msra.mxu0 0
      %897 = vmatprep.subr.bf16.mxu0 0
      %898 = vmatpush1.bf16.msra.mxu0 0
      %899 = vmatprep.subr.bf16.mxu0 0
      %900 = vmatpush1.bf16.msra.mxu0 0
      %901 = vmatprep.subr.bf16.mxu0 0
      %902 = vmatpush1.bf16.msra.mxu0 0
      %903 = vmatprep.subr.bf16.mxu0 0
      %904 = vmatpush1.bf16.msra.mxu0 0
      %905 = vmatprep.subr.bf16.mxu0 0
      %906 = vmatpush1.bf16.msra.mxu0 0
      %907 = vmatprep.subr.bf16.mxu0 0
      %908 = vmatpush1.bf16.msra.mxu0 0
      %909 = vmatprep.subr.bf16.mxu0 0
      %910 = vmatpush1.bf16.msra.mxu0 0
      %911 = vmatprep.subr.bf16.mxu0 0
      %912 = vmatpush1.bf16.msra.mxu0 0
      %913 = vmatprep.subr.bf16.mxu0 0
      %914 = vmatpush1.bf16.msra.mxu0 0
      %915 = vmatprep.subr.bf16.mxu0 0
      %916 = vmatpush1.bf16.msra.mxu0 0
      %917 = vmatprep.mubr.bf16.mxu0 0
      %918 = vmatmul.mubr.bf16.gmra.mrb[0].mxu0 %v880
      %v919 = vpop.f32.mrb[0].mxu0
      %v920 = vadd.f32 0.0, %v919
      %v921 = vpop.f32.mrb[0].mxu0
      %v922 = vpop.f32.mrb[0].mxu0
      %v923 = vadd.f32 0.0, %v922
      %v924 = vpop.f32.mrb[0].mxu0
      %925 = vdwg.mxu0
      %v928 = vunpack.c.l.b16 %v692
      %v929 = vunpack.c.l.b16 %v693
      %v930 = vpack.c.b16 %v929, %v928
      %v932 = vsel %vm721, %v930, 0
      %v935 = vsel %vm725, %v672, 0
      %937 = vmatprep.subr.bf16.mxu0 0
      %938 = vmatpush1.bf16.msra.mxu0 %v935
      %939 = vmatprep.subr.bf16.mxu0 0
      %940 = vmatpush1.bf16.msra.mxu0 0
      %941 = vmatprep.subr.bf16.mxu0 0
      %942 = vmatpush1.bf16.msra.mxu0 0
      %943 = vmatprep.subr.bf16.mxu0 0
      %944 = vmatpush1.bf16.msra.mxu0 0
      %945 = vmatprep.subr.bf16.mxu0 0
      %946 = vmatpush1.bf16.msra.mxu0 0
      %947 = vmatprep.subr.bf16.mxu0 0
      %948 = vmatpush1.bf16.msra.mxu0 0
      %949 = vmatprep.subr.bf16.mxu0 0
      %950 = vmatpush1.bf16.msra.mxu0 0
      %951 = vmatprep.subr.bf16.mxu0 0
      %952 = vmatpush1.bf16.msra.mxu0 0
      %953 = vmatprep.subr.bf16.mxu0 0
      %954 = vmatpush1.bf16.msra.mxu0 0
      %955 = vmatprep.subr.bf16.mxu0 0
      %956 = vmatpush1.bf16.msra.mxu0 0
      %957 = vmatprep.subr.bf16.mxu0 0
      %958 = vmatpush1.bf16.msra.mxu0 0
      %959 = vmatprep.subr.bf16.mxu0 0
      %960 = vmatpush1.bf16.msra.mxu0 0
      %961 = vmatprep.subr.bf16.mxu0 0
      %962 = vmatpush1.bf16.msra.mxu0 0
      %963 = vmatprep.subr.bf16.mxu0 0
      %964 = vmatpush1.bf16.msra.mxu0 0
      %965 = vmatprep.subr.bf16.mxu0 0
      %966 = vmatpush1.bf16.msra.mxu0 0
      %967 = vmatprep.subr.bf16.mxu0 0
      %968 = vmatpush1.bf16.msra.mxu0 0
      %969 = vmatprep.mubr.bf16.mxu0 0
      %970 = vmatmul.mubr.bf16.gmra.mrb[0].mxu0 %v932
      %v971 = vpop.f32.mrb[0].mxu0
      %v972 = vadd.f32 0.0, %v971
      %v973 = vpop.f32.mrb[0].mxu0
      %v974 = vpop.f32.mrb[0].mxu0
      %v975 = vadd.f32 0.0, %v974
      %v976 = vpop.f32.mrb[0].mxu0
      %977 = vdwg.mxu0
      %v980 = vunpack.c.l.b16 %v694
      %v981 = vunpack.c.l.b16 %v695
      %v982 = vpack.c.b16 %v981, %v980
      %v984 = vsel %vm721, %v982, 0
      %v987 = vsel %vm725, %v673, 0
      %989 = vmatprep.subr.bf16.mxu0 0
      %990 = vmatpush1.bf16.msra.mxu0 %v987
      %991 = vmatprep.subr.bf16.mxu0 0
      %992 = vmatpush1.bf16.msra.mxu0 0
      %993 = vmatprep.subr.bf16.mxu0 0
      %994 = vmatpush1.bf16.msra.mxu0 0
      %995 = vmatprep.subr.bf16.mxu0 0
      %996 = vmatpush1.bf16.msra.mxu0 0
      %997 = vmatprep.subr.bf16.mxu0 0
      %998 = vmatpush1.bf16.msra.mxu0 0
      %999 = vmatprep.subr.bf16.mxu0 0
      %1000 = vmatpush1.bf16.msra.mxu0 0
      %1001 = vmatprep.subr.bf16.mxu0 0
      %1002 = vmatpush1.bf16.msra.mxu0 0
      %1003 = vmatprep.subr.bf16.mxu0 0
      %1004 = vmatpush1.bf16.msra.mxu0 0
      %1005 = vmatprep.subr.bf16.mxu0 0
      %1006 = vmatpush1.bf16.msra.mxu0 0
      %1007 = vmatprep.subr.bf16.mxu0 0
      %1008 = vmatpush1.bf16.msra.mxu0 0
      %1009 = vmatprep.subr.bf16.mxu0 0
      %1010 = vmatpush1.bf16.msra.mxu0 0
      %1011 = vmatprep.subr.bf16.mxu0 0
      %1012 = vmatpush1.bf16.msra.mxu0 0
      %1013 = vmatprep.subr.bf16.mxu0 0
      %1014 = vmatpush1.bf16.msra.mxu0 0
      %1015 = vmatprep.subr.bf16.mxu0 0
      %1016 = vmatpush1.bf16.msra.mxu0 0
      %1017 = vmatprep.subr.bf16.mxu0 0
      %1018 = vmatpush1.bf16.msra.mxu0 0
      %1019 = vmatprep.subr.bf16.mxu0 0
      %1020 = vmatpush1.bf16.msra.mxu0 0
      %1021 = vmatprep.mubr.bf16.mxu0 0
      %1022 = vmatmul.mubr.bf16.gmra.mrb[0].mxu0 %v984
      %v1023 = vpop.f32.mrb[0].mxu0
      %v1024 = vadd.f32 0.0, %v1023
      %v1025 = vpop.f32.mrb[0].mxu0
      %v1026 = vpop.f32.mrb[0].mxu0
      %v1027 = vadd.f32 0.0, %v1026
      %v1028 = vpop.f32.mrb[0].mxu0
      %1029 = vdwg.mxu0
      %v1032 = vunpack.c.l.b16 %v696
      %v1033 = vunpack.c.l.b16 %v697
      %v1034 = vpack.c.b16 %v1033, %v1032
      %v1036 = vsel %vm721, %v1034, 0
      %v1039 = vsel %vm725, %v674, 0
      %1041 = vmatprep.subr.bf16.mxu0 0
      %1042 = vmatpush1.bf16.msra.mxu0 %v1039
      %1043 = vmatprep.subr.bf16.mxu0 0
      %1044 = vmatpush1.bf16.msra.mxu0 0
      %1045 = vmatprep.subr.bf16.mxu0 0
      %1046 = vmatpush1.bf16.msra.mxu0 0
      %1047 = vmatprep.subr.bf16.mxu0 0
      %1048 = vmatpush1.bf16.msra.mxu0 0
      %1049 = vmatprep.subr.bf16.mxu0 0
      %1050 = vmatpush1.bf16.msra.mxu0 0
      %1051 = vmatprep.subr.bf16.mxu0 0
      %1052 = vmatpush1.bf16.msra.mxu0 0
      %1053 = vmatprep.subr.bf16.mxu0 0
      %1054 = vmatpush1.bf16.msra.mxu0 0
      %1055 = vmatprep.subr.bf16.mxu0 0
      %1056 = vmatpush1.bf16.msra.mxu0 0
      %1057 = vmatprep.subr.bf16.mxu0 0
      %1058 = vmatpush1.bf16.msra.mxu0 0
      %1059 = vmatprep.subr.bf16.mxu0 0
      %1060 = vmatpush1.bf16.msra.mxu0 0
      %1061 = vmatprep.subr.bf16.mxu0 0
      %1062 = vmatpush1.bf16.msra.mxu0 0
      %1063 = vmatprep.subr.bf16.mxu0 0
      %1064 = vmatpush1.bf16.msra.mxu0 0
      %1065 = vmatprep.subr.bf16.mxu0 0
      %1066 = vmatpush1.bf16.msra.mxu0 0
      %1067 = vmatprep.subr.bf16.mxu0 0
      %1068 = vmatpush1.bf16.msra.mxu0 0
      %1069 = vmatprep.subr.bf16.mxu0 0
      %1070 = vmatpush1.bf16.msra.mxu0 0
      %1071 = vmatprep.subr.bf16.mxu0 0
      %1072 = vmatpush1.bf16.msra.mxu0 0
      %1073 = vmatprep.mubr.bf16.mxu0 0
      %1074 = vmatmul.mubr.bf16.gmra.mrb[0].mxu0 %v1036
      %v1075 = vpop.f32.mrb[0].mxu0
      %v1076 = vadd.f32 0.0, %v1075
      %v1077 = vpop.f32.mrb[0].mxu0
      %v1078 = vpop.f32.mrb[0].mxu0
      %v1079 = vadd.f32 0.0, %v1078
      %v1080 = vpop.f32.mrb[0].mxu0
      %1081 = vdwg.mxu0
      %v1084 = vunpack.c.l.b16 %v698
      %v1085 = vunpack.c.l.b16 %v699
      %v1086 = vpack.c.b16 %v1085, %v1084
      %v1088 = vsel %vm721, %v1086, 0
      %v1091 = vsel %vm725, %v675, 0
      %1093 = vmatprep.subr.bf16.mxu0 0
      %1094 = vmatpush1.bf16.msra.mxu0 %v1091
      %1095 = vmatprep.subr.bf16.mxu0 0
      %1096 = vmatpush1.bf16.msra.mxu0 0
      %1097 = vmatprep.subr.bf16.mxu0 0
      %1098 = vmatpush1.bf16.msra.mxu0 0
      %1099 = vmatprep.subr.bf16.mxu0 0
      %1100 = vmatpush1.bf16.msra.mxu0 0
      %1101 = vmatprep.subr.bf16.mxu0 0
      %1102 = vmatpush1.bf16.msra.mxu0 0
      %1103 = vmatprep.subr.bf16.mxu0 0
      %1104 = vmatpush1.bf16.msra.mxu0 0
      %1105 = vmatprep.subr.bf16.mxu0 0
      %1106 = vmatpush1.bf16.msra.mxu0 0
      %1107 = vmatprep.subr.bf16.mxu0 0
      %1108 = vmatpush1.bf16.msra.mxu0 0
      %1109 = vmatprep.subr.bf16.mxu0 0
      %1110 = vmatpush1.bf16.msra.mxu0 0
      %1111 = vmatprep.subr.bf16.mxu0 0
      %1112 = vmatpush1.bf16.msra.mxu0 0
      %1113 = vmatprep.subr.bf16.mxu0 0
      %1114 = vmatpush1.bf16.msra.mxu0 0
      %1115 = vmatprep.subr.bf16.mxu0 0
      %1116 = vmatpush1.bf16.msra.mxu0 0
      %1117 = vmatprep.subr.bf16.mxu0 0
      %1118 = vmatpush1.bf16.msra.mxu0 0
      %1119 = vmatprep.subr.bf16.mxu0 0
      %1120 = vmatpush1.bf16.msra.mxu0 0
      %1121 = vmatprep.subr.bf16.mxu0 0
      %1122 = vmatpush1.bf16.msra.mxu0 0
      %1123 = vmatprep.subr.bf16.mxu0 0
      %1124 = vmatpush1.bf16.msra.mxu0 0
      %1125 = vmatprep.mubr.bf16.mxu0 0
      %1126 = vmatmul.mubr.bf16.gmra.mrb[0].mxu0 %v1088
      %v1127 = vpop.f32.mrb[0].mxu0
      %v1128 = vadd.f32 0.0, %v1127
      %v1129 = vpop.f32.mrb[0].mxu0
      %v1130 = vpop.f32.mrb[0].mxu0
      %v1131 = vadd.f32 0.0, %v1130
      %v1132 = vpop.f32.mrb[0].mxu0
      %1133 = vdwg.mxu0
      %v1136 = vunpack.c.l.b16 %v700
      %v1137 = vunpack.c.l.b16 %v701
      %v1138 = vpack.c.b16 %v1137, %v1136
      %v1140 = vsel %vm721, %v1138, 0
      %v1143 = vsel %vm725, %v676, 0
      %1145 = vmatprep.subr.bf16.mxu0 0
      %1146 = vmatpush1.bf16.msra.mxu0 %v1143
      %1147 = vmatprep.subr.bf16.mxu0 0
      %1148 = vmatpush1.bf16.msra.mxu0 0
      %1149 = vmatprep.subr.bf16.mxu0 0
      %1150 = vmatpush1.bf16.msra.mxu0 0
      %1151 = vmatprep.subr.bf16.mxu0 0
      %1152 = vmatpush1.bf16.msra.mxu0 0
      %1153 = vmatprep.subr.bf16.mxu0 0
      %1154 = vmatpush1.bf16.msra.mxu0 0
      %1155 = vmatprep.subr.bf16.mxu0 0
      %1156 = vmatpush1.bf16.msra.mxu0 0
      %1157 = vmatprep.subr.bf16.mxu0 0
      %1158 = vmatpush1.bf16.msra.mxu0 0
      %1159 = vmatprep.subr.bf16.mxu0 0
      %1160 = vmatpush1.bf16.msra.mxu0 0
      %1161 = vmatprep.subr.bf16.mxu0 0
      %1162 = vmatpush1.bf16.msra.mxu0 0
      %1163 = vmatprep.subr.bf16.mxu0 0
      %1164 = vmatpush1.bf16.msra.mxu0 0
      %1165 = vmatprep.subr.bf16.mxu0 0
      %1166 = vmatpush1.bf16.msra.mxu0 0
      %1167 = vmatprep.subr.bf16.mxu0 0
      %1168 = vmatpush1.bf16.msra.mxu0 0
      %1169 = vmatprep.subr.bf16.mxu0 0
      %1170 = vmatpush1.bf16.msra.mxu0 0
      %1171 = vmatprep.subr.bf16.mxu0 0
      %1172 = vmatpush1.bf16.msra.mxu0 0
      %1173 = vmatprep.subr.bf16.mxu0 0
      %1174 = vmatpush1.bf16.msra.mxu0 0
      %1175 = vmatprep.subr.bf16.mxu0 0
      %1176 = vmatpush1.bf16.msra.mxu0 0
      %1177 = vmatprep.mubr.bf16.mxu0 0
      %1178 = vmatmul.mubr.bf16.gmra.mrb[0].mxu0 %v1140
      %v1179 = vpop.f32.mrb[0].mxu0
      %v1180 = vadd.f32 0.0, %v1179
      %v1181 = vpop.f32.mrb[0].mxu0
      %v1182 = vpop.f32.mrb[0].mxu0
      %v1183 = vadd.f32 0.0, %v1182
      %v1184 = vpop.f32.mrb[0].mxu0
      %1185 = vdwg.mxu0
      %v1188 = vunpack.c.l.b16 %v702
      %v1189 = vunpack.c.l.b16 %v703
      %v1190 = vpack.c.b16 %v1189, %v1188
      %v1192 = vsel %vm721, %v1190, 0
      %v1195 = vsel %vm725, %v677, 0
      %1197 = vmatprep.subr.bf16.mxu0 0
      %1198 = vmatpush1.bf16.msra.mxu0 %v1195
      %1199 = vmatprep.subr.bf16.mxu0 0
      %1200 = vmatpush1.bf16.msra.mxu0 0
      %1201 = vmatprep.subr.bf16.mxu0 0
      %1202 = vmatpush1.bf16.msra.mxu0 0
      %1203 = vmatprep.subr.bf16.mxu0 0
      %1204 = vmatpush1.bf16.msra.mxu0 0
      %1205 = vmatprep.subr.bf16.mxu0 0
      %1206 = vmatpush1.bf16.msra.mxu0 0
      %1207 = vmatprep.subr.bf16.mxu0 0
      %1208 = vmatpush1.bf16.msra.mxu0 0
      %1209 = vmatprep.subr.bf16.mxu0 0
      %1210 = vmatpush1.bf16.msra.mxu0 0
      %1211 = vmatprep.subr.bf16.mxu0 0
      %1212 = vmatpush1.bf16.msra.mxu0 0
      %1213 = vmatprep.subr.bf16.mxu0 0
      %1214 = vmatpush1.bf16.msra.mxu0 0
      %1215 = vmatprep.subr.bf16.mxu0 0
      %1216 = vmatpush1.bf16.msra.mxu0 0
      %1217 = vmatprep.subr.bf16.mxu0 0
      %1218 = vmatpush1.bf16.msra.mxu0 0
      %1219 = vmatprep.subr.bf16.mxu0 0
      %1220 = vmatpush1.bf16.msra.mxu0 0
      %1221 = vmatprep.subr.bf16.mxu0 0
      %1222 = vmatpush1.bf16.msra.mxu0 0
      %1223 = vmatprep.subr.bf16.mxu0 0
      %1224 = vmatpush1.bf16.msra.mxu0 0
      %1225 = vmatprep.subr.bf16.mxu0 0
      %1226 = vmatpush1.bf16.msra.mxu0 0
      %1227 = vmatprep.subr.bf16.mxu0 0
      %1228 = vmatpush1.bf16.msra.mxu0 0
      %1229 = vmatprep.mubr.bf16.mxu0 0
      %1230 = vmatmul.mubr.bf16.gmra.mrb[0].mxu0 %v1192
      %v1231 = vpop.f32.mrb[0].mxu0
      %v1232 = vadd.f32 0.0, %v1231
      %v1233 = vpop.f32.mrb[0].mxu0
      %v1234 = vpop.f32.mrb[0].mxu0
      %v1235 = vadd.f32 0.0, %v1234
      %v1236 = vpop.f32.mrb[0].mxu0
      %1237 = vdwg.mxu0
      %v1240 = vunpack.c.l.b16 %v704
      %v1241 = vunpack.c.l.b16 %v705
      %v1242 = vpack.c.b16 %v1241, %v1240
      %v1244 = vsel %vm721, %v1242, 0
      %v1247 = vsel %vm725, %v678, 0
      %1249 = vmatprep.subr.bf16.mxu0 0
      %1250 = vmatpush1.bf16.msra.mxu0 %v1247
      %1251 = vmatprep.subr.bf16.mxu0 0
      %1252 = vmatpush1.bf16.msra.mxu0 0
      %1253 = vmatprep.subr.bf16.mxu0 0
      %1254 = vmatpush1.bf16.msra.mxu0 0
      %1255 = vmatprep.subr.bf16.mxu0 0
      %1256 = vmatpush1.bf16.msra.mxu0 0
      %1257 = vmatprep.subr.bf16.mxu0 0
      %1258 = vmatpush1.bf16.msra.mxu0 0
      %1259 = vmatprep.subr.bf16.mxu0 0
      %1260 = vmatpush1.bf16.msra.mxu0 0
      %1261 = vmatprep.subr.bf16.mxu0 0
      %1262 = vmatpush1.bf16.msra.mxu0 0
      %1263 = vmatprep.subr.bf16.mxu0 0
      %1264 = vmatpush1.bf16.msra.mxu0 0
      %1265 = vmatprep.subr.bf16.mxu0 0
      %1266 = vmatpush1.bf16.msra.mxu0 0
      %1267 = vmatprep.subr.bf16.mxu0 0
      %1268 = vmatpush1.bf16.msra.mxu0 0
      %1269 = vmatprep.subr.bf16.mxu0 0
      %1270 = vmatpush1.bf16.msra.mxu0 0
      %1271 = vmatprep.subr.bf16.mxu0 0
      %1272 = vmatpush1.bf16.msra.mxu0 0
      %1273 = vmatprep.subr.bf16.mxu0 0
      %1274 = vmatpush1.bf16.msra.mxu0 0
      %1275 = vmatprep.subr.bf16.mxu0 0
      %1276 = vmatpush1.bf16.msra.mxu0 0
      %1277 = vmatprep.subr.bf16.mxu0 0
      %1278 = vmatpush1.bf16.msra.mxu0 0
      %1279 = vmatprep.subr.bf16.mxu0 0
      %1280 = vmatpush1.bf16.msra.mxu0 0
      %1281 = vmatprep.mubr.bf16.mxu0 0
      %1282 = vmatmul.mubr.bf16.gmra.mrb[0].mxu0 %v1244
      %v1283 = vpop.f32.mrb[0].mxu0
      %v1284 = vadd.f32 0.0, %v1283
      %v1285 = vpop.f32.mrb[0].mxu0
      %v1286 = vpop.f32.mrb[0].mxu0
      %v1287 = vadd.f32 0.0, %v1286
      %v1288 = vpop.f32.mrb[0].mxu0
      %1289 = vdwg.mxu0
      %v1292 = vunpack.c.l.b16 %v706
      %v1293 = vunpack.c.l.b16 %v707
      %v1294 = vpack.c.b16 %v1293, %v1292
      %v1296 = vsel %vm721, %v1294, 0
      %v1299 = vsel %vm725, %v679, 0
      %1301 = vmatprep.subr.bf16.mxu0 0
      %1302 = vmatpush1.bf16.msra.mxu0 %v1299
      %1303 = vmatprep.subr.bf16.mxu0 0
      %1304 = vmatpush1.bf16.msra.mxu0 0
      %1305 = vmatprep.subr.bf16.mxu0 0
      %1306 = vmatpush1.bf16.msra.mxu0 0
      %1307 = vmatprep.subr.bf16.mxu0 0
      %1308 = vmatpush1.bf16.msra.mxu0 0
      %1309 = vmatprep.subr.bf16.mxu0 0
      %1310 = vmatpush1.bf16.msra.mxu0 0
      %1311 = vmatprep.subr.bf16.mxu0 0
      %1312 = vmatpush1.bf16.msra.mxu0 0
      %1313 = vmatprep.subr.bf16.mxu0 0
      %1314 = vmatpush1.bf16.msra.mxu0 0
      %1315 = vmatprep.subr.bf16.mxu0 0
      %1316 = vmatpush1.bf16.msra.mxu0 0
      %1317 = vmatprep.subr.bf16.mxu0 0
      %1318 = vmatpush1.bf16.msra.mxu0 0
      %1319 = vmatprep.subr.bf16.mxu0 0
      %1320 = vmatpush1.bf16.msra.mxu0 0
      %1321 = vmatprep.subr.bf16.mxu0 0
      %1322 = vmatpush1.bf16.msra.mxu0 0
      %1323 = vmatprep.subr.bf16.mxu0 0
      %1324 = vmatpush1.bf16.msra.mxu0 0
      %1325 = vmatprep.subr.bf16.mxu0 0
      %1326 = vmatpush1.bf16.msra.mxu0 0
      %1327 = vmatprep.subr.bf16.mxu0 0
      %1328 = vmatpush1.bf16.msra.mxu0 0
      %1329 = vmatprep.subr.bf16.mxu0 0
      %1330 = vmatpush1.bf16.msra.mxu0 0
      %1331 = vmatprep.subr.bf16.mxu0 0
      %1332 = vmatpush1.bf16.msra.mxu0 0
      %1333 = vmatprep.mubr.bf16.mxu0 0
      %1334 = vmatmul.mubr.bf16.gmra.mrb[0].mxu0 %v1296
      %v1335 = vpop.f32.mrb[0].mxu0
      %v1336 = vadd.f32 0.0, %v1335
      %v1337 = vpop.f32.mrb[0].mxu0
      %v1338 = vpop.f32.mrb[0].mxu0
      %v1339 = vadd.f32 0.0, %v1338
      %v1340 = vpop.f32.mrb[0].mxu0
      %1341 = vdwg.mxu0
      %v1344 = vunpack.c.l.b16 %v708
      %v1345 = vunpack.c.l.b16 %v709
      %v1346 = vpack.c.b16 %v1345, %v1344
      %v1348 = vsel %vm721, %v1346, 0
      %v1351 = vsel %vm725, %v680, 0
      %1353 = vmatprep.subr.bf16.mxu0 0
      %1354 = vmatpush1.bf16.msra.mxu0 %v1351
      %1355 = vmatprep.subr.bf16.mxu0 0
      %1356 = vmatpush1.bf16.msra.mxu0 0
      %1357 = vmatprep.subr.bf16.mxu0 0
      %1358 = vmatpush1.bf16.msra.mxu0 0
      %1359 = vmatprep.subr.bf16.mxu0 0
      %1360 = vmatpush1.bf16.msra.mxu0 0
      %1361 = vmatprep.subr.bf16.mxu0 0
      %1362 = vmatpush1.bf16.msra.mxu0 0
      %1363 = vmatprep.subr.bf16.mxu0 0
      %1364 = vmatpush1.bf16.msra.mxu0 0
      %1365 = vmatprep.subr.bf16.mxu0 0
      %1366 = vmatpush1.bf16.msra.mxu0 0
      %1367 = vmatprep.subr.bf16.mxu0 0
      %1368 = vmatpush1.bf16.msra.mxu0 0
      %1369 = vmatprep.subr.bf16.mxu0 0
      %1370 = vmatpush1.bf16.msra.mxu0 0
      %1371 = vmatprep.subr.bf16.mxu0 0
      %1372 = vmatpush1.bf16.msra.mxu0 0
      %1373 = vmatprep.subr.bf16.mxu0 0
      %1374 = vmatpush1.bf16.msra.mxu0 0
      %1375 = vmatprep.subr.bf16.mxu0 0
      %1376 = vmatpush1.bf16.msra.mxu0 0
      %1377 = vmatprep.subr.bf16.mxu0 0
      %1378 = vmatpush1.bf16.msra.mxu0 0
      %1379 = vmatprep.subr.bf16.mxu0 0
      %1380 = vmatpush1.bf16.msra.mxu0 0
      %1381 = vmatprep.subr.bf16.mxu0 0
      %1382 = vmatpush1.bf16.msra.mxu0 0
      %1383 = vmatprep.subr.bf16.mxu0 0
      %1384 = vmatpush1.bf16.msra.mxu0 0
      %1385 = vmatprep.mubr.bf16.mxu0 0
      %1386 = vmatmul.mubr.bf16.gmra.mrb[0].mxu0 %v1348
      %v1387 = vpop.f32.mrb[0].mxu0
      %v1388 = vadd.f32 0.0, %v1387
      %v1389 = vpop.f32.mrb[0].mxu0
      %v1390 = vpop.f32.mrb[0].mxu0
      %v1391 = vadd.f32 0.0, %v1390
      %v1392 = vpop.f32.mrb[0].mxu0
      %1393 = vdwg.mxu0
      %v1396 = vunpack.c.l.b16 %v710
      %v1397 = vunpack.c.l.b16 %v711
      %v1398 = vpack.c.b16 %v1397, %v1396
      %v1400 = vsel %vm721, %v1398, 0
      %v1403 = vsel %vm725, %v681, 0
      %1405 = vmatprep.subr.bf16.mxu0 0
      %1406 = vmatpush1.bf16.msra.mxu0 %v1403
      %1407 = vmatprep.subr.bf16.mxu0 0
      %1408 = vmatpush1.bf16.msra.mxu0 0
      %1409 = vmatprep.subr.bf16.mxu0 0
      %1410 = vmatpush1.bf16.msra.mxu0 0
      %1411 = vmatprep.subr.bf16.mxu0 0
      %1412 = vmatpush1.bf16.msra.mxu0 0
      %1413 = vmatprep.subr.bf16.mxu0 0
      %1414 = vmatpush1.bf16.msra.mxu0 0
      %1415 = vmatprep.subr.bf16.mxu0 0
      %1416 = vmatpush1.bf16.msra.mxu0 0
      %1417 = vmatprep.subr.bf16.mxu0 0
      %1418 = vmatpush1.bf16.msra.mxu0 0
      %1419 = vmatprep.subr.bf16.mxu0 0
      %1420 = vmatpush1.bf16.msra.mxu0 0
      %1421 = vmatprep.subr.bf16.mxu0 0
      %1422 = vmatpush1.bf16.msra.mxu0 0
      %1423 = vmatprep.subr.bf16.mxu0 0
      %1424 = vmatpush1.bf16.msra.mxu0 0
      %1425 = vmatprep.subr.bf16.mxu0 0
      %1426 = vmatpush1.bf16.msra.mxu0 0
      %1427 = vmatprep.subr.bf16.mxu0 0
      %1428 = vmatpush1.bf16.msra.mxu0 0
      %1429 = vmatprep.subr.bf16.mxu0 0
      %1430 = vmatpush1.bf16.msra.mxu0 0
      %1431 = vmatprep.subr.bf16.mxu0 0
      %1432 = vmatpush1.bf16.msra.mxu0 0
      %1433 = vmatprep.subr.bf16.mxu0 0
      %1434 = vmatpush1.bf16.msra.mxu0 0
      %1435 = vmatprep.subr.bf16.mxu0 0
      %1436 = vmatpush1.bf16.msra.mxu0 0
      %1437 = vmatprep.mubr.bf16.mxu0 0
      %1438 = vmatmul.mubr.bf16.gmra.mrb[0].mxu0 %v1400
      %v1439 = vpop.f32.mrb[0].mxu0
      %v1440 = vadd.f32 0.0, %v1439
      %v1441 = vpop.f32.mrb[0].mxu0
      %v1442 = vpop.f32.mrb[0].mxu0
      %v1443 = vadd.f32 0.0, %v1442
      %v1444 = vpop.f32.mrb[0].mxu0
      %1445 = vdwg.mxu0
      %v1448 = vunpack.c.l.b16 %v712
      %v1449 = vunpack.c.l.b16 %v713
      %v1450 = vpack.c.b16 %v1449, %v1448
      %v1452 = vsel %vm721, %v1450, 0
      %v1455 = vsel %vm725, %v682, 0
      %1457 = vmatprep.subr.bf16.mxu0 0
      %1458 = vmatpush1.bf16.msra.mxu0 %v1455
      %1459 = vmatprep.subr.bf16.mxu0 0
      %1460 = vmatpush1.bf16.msra.mxu0 0
      %1461 = vmatprep.subr.bf16.mxu0 0
      %1462 = vmatpush1.bf16.msra.mxu0 0
      %1463 = vmatprep.subr.bf16.mxu0 0
      %1464 = vmatpush1.bf16.msra.mxu0 0
      %1465 = vmatprep.subr.bf16.mxu0 0
      %1466 = vmatpush1.bf16.msra.mxu0 0
      %1467 = vmatprep.subr.bf16.mxu0 0
      %1468 = vmatpush1.bf16.msra.mxu0 0
      %1469 = vmatprep.subr.bf16.mxu0 0
      %1470 = vmatpush1.bf16.msra.mxu0 0
      %1471 = vmatprep.subr.bf16.mxu0 0
      %1472 = vmatpush1.bf16.msra.mxu0 0
      %1473 = vmatprep.subr.bf16.mxu0 0
      %1474 = vmatpush1.bf16.msra.mxu0 0
      %1475 = vmatprep.subr.bf16.mxu0 0
      %1476 = vmatpush1.bf16.msra.mxu0 0
      %1477 = vmatprep.subr.bf16.mxu0 0
      %1478 = vmatpush1.bf16.msra.mxu0 0
      %1479 = vmatprep.subr.bf16.mxu0 0
      %1480 = vmatpush1.bf16.msra.mxu0 0
      %1481 = vmatprep.subr.bf16.mxu0 0
      %1482 = vmatpush1.bf16.msra.mxu0 0
      %1483 = vmatprep.subr.bf16.mxu0 0
      %1484 = vmatpush1.bf16.msra.mxu0 0
      %1485 = vmatprep.subr.bf16.mxu0 0
      %1486 = vmatpush1.bf16.msra.mxu0 0
      %1487 = vmatprep.subr.bf16.mxu0 0
      %1488 = vmatpush1.bf16.msra.mxu0 0
      %1489 = vmatprep.mubr.bf16.mxu0 0
      %1490 = vmatmul.mubr.bf16.gmra.mrb[0].mxu0 %v1452
      %v1491 = vpop.f32.mrb[0].mxu0
      %v1492 = vadd.f32 0.0, %v1491
      %v1493 = vpop.f32.mrb[0].mxu0
      %v1494 = vpop.f32.mrb[0].mxu0
      %v1495 = vadd.f32 0.0, %v1494
      %v1496 = vpop.f32.mrb[0].mxu0
      %1497 = vdwg.mxu0
      %v1500 = vunpack.c.l.b16 %v714
      %v1501 = vunpack.c.l.b16 %v715
      %v1502 = vpack.c.b16 %v1501, %v1500
      %v1504 = vsel %vm721, %v1502, 0
      %v1507 = vsel %vm725, %v683, 0
      %1509 = vmatprep.subr.bf16.mxu0 0
      %1510 = vmatpush1.bf16.msra.mxu0 %v1507
      %1511 = vmatprep.subr.bf16.mxu0 0
      %1512 = vmatpush1.bf16.msra.mxu0 0
      %1513 = vmatprep.subr.bf16.mxu0 0
      %1514 = vmatpush1.bf16.msra.mxu0 0
      %1515 = vmatprep.subr.bf16.mxu0 0
      %1516 = vmatpush1.bf16.msra.mxu0 0
      %1517 = vmatprep.subr.bf16.mxu0 0
      %1518 = vmatpush1.bf16.msra.mxu0 0
      %1519 = vmatprep.subr.bf16.mxu0 0
      %1520 = vmatpush1.bf16.msra.mxu0 0
      %1521 = vmatprep.subr.bf16.mxu0 0
      %1522 = vmatpush1.bf16.msra.mxu0 0
      %1523 = vmatprep.subr.bf16.mxu0 0
      %1524 = vmatpush1.bf16.msra.mxu0 0
      %1525 = vmatprep.subr.bf16.mxu0 0
      %1526 = vmatpush1.bf16.msra.mxu0 0
      %1527 = vmatprep.subr.bf16.mxu0 0
      %1528 = vmatpush1.bf16.msra.mxu0 0
      %1529 = vmatprep.subr.bf16.mxu0 0
      %1530 = vmatpush1.bf16.msra.mxu0 0
      %1531 = vmatprep.subr.bf16.mxu0 0
      %1532 = vmatpush1.bf16.msra.mxu0 0
      %1533 = vmatprep.subr.bf16.mxu0 0
      %1534 = vmatpush1.bf16.msra.mxu0 0
      %1535 = vmatprep.subr.bf16.mxu0 0
      %1536 = vmatpush1.bf16.msra.mxu0 0
      %1537 = vmatprep.subr.bf16.mxu0 0
      %1538 = vmatpush1.bf16.msra.mxu0 0
      %1539 = vmatprep.subr.bf16.mxu0 0
      %1540 = vmatpush1.bf16.msra.mxu0 0
      %1541 = vmatprep.mubr.bf16.mxu0 0
      %1542 = vmatmul.mubr.bf16.gmra.mrb[0].mxu0 %v1504
      %v1543 = vpop.f32.mrb[0].mxu0
      %v1544 = vadd.f32 0.0, %v1543
      %v1545 = vpop.f32.mrb[0].mxu0
      %v1546 = vpop.f32.mrb[0].mxu0
      %v1547 = vadd.f32 0.0, %v1546
      %v1548 = vpop.f32.mrb[0].mxu0
      %1549 = vdwg.mxu0
      %v1550 = vld [vmem:[%s575] sm:$0xff]
      %v1551 = vld [vmem:[%s579] sm:$0xff]
      %v1552 = vmul.f32 %v764, %v1550
      %v1553 = vmul.f32 %v816, %v1550
      %v1554 = vmul.f32 %v868, %v1550
      %v1555 = vmul.f32 %v920, %v1550
      %v1556 = vmul.f32 %v972, %v1550
      %v1557 = vmul.f32 %v1024, %v1550
      %v1558 = vmul.f32 %v1076, %v1550
      %v1559 = vmul.f32 %v1128, %v1550
      %v1560 = vmul.f32 %v1180, %v1550
      %v1561 = vmul.f32 %v1232, %v1550
      %v1562 = vmul.f32 %v1284, %v1550
      %v1563 = vmul.f32 %v1336, %v1550
      %v1564 = vmul.f32 %v1388, %v1550
      %v1565 = vmul.f32 %v1440, %v1550
      %v1566 = vmul.f32 %v1492, %v1550
      %v1567 = vmul.f32 %v1544, %v1550
      %v1568 = vmul.f32 %v767, %v1551
      %v1569 = vmul.f32 %v819, %v1551
      %v1570 = vmul.f32 %v871, %v1551
      %v1571 = vmul.f32 %v923, %v1551
      %v1572 = vmul.f32 %v975, %v1551
      %v1573 = vmul.f32 %v1027, %v1551
      %v1574 = vmul.f32 %v1079, %v1551
      %v1575 = vmul.f32 %v1131, %v1551
      %v1576 = vmul.f32 %v1183, %v1551
      %v1577 = vmul.f32 %v1235, %v1551
      %v1578 = vmul.f32 %v1287, %v1551
      %v1579 = vmul.f32 %v1339, %v1551
      %v1580 = vmul.f32 %v1391, %v1551
      %v1581 = vmul.f32 %v1443, %v1551
      %v1582 = vmul.f32 %v1495, %v1551
      %v1583 = vmul.f32 %v1547, %v1551
      %v1584 = vsub.f32 %v1552, %v1568
      %v1585 = vsub.f32 %v1553, %v1569
      %v1586 = vsub.f32 %v1554, %v1570
      %v1587 = vsub.f32 %v1555, %v1571
      %v1588 = vsub.f32 %v1556, %v1572
      %v1589 = vsub.f32 %v1557, %v1573
      %v1590 = vsub.f32 %v1558, %v1574
      %v1591 = vsub.f32 %v1559, %v1575
      %v1592 = vsub.f32 %v1560, %v1576
      %v1593 = vsub.f32 %v1561, %v1577
      %v1594 = vsub.f32 %v1562, %v1578
      %v1595 = vsub.f32 %v1563, %v1579
      %v1596 = vsub.f32 %v1564, %v1580
      %v1597 = vsub.f32 %v1565, %v1581
      %v1598 = vsub.f32 %v1566, %v1582
      %v1599 = vsub.f32 %v1567, %v1583
      %v1600 = vmul.f32 %v764, %v1551
      %v1601 = vmul.f32 %v816, %v1551
      %v1602 = vmul.f32 %v868, %v1551
      %v1603 = vmul.f32 %v920, %v1551
      %v1604 = vmul.f32 %v972, %v1551
      %v1605 = vmul.f32 %v1024, %v1551
      %v1606 = vmul.f32 %v1076, %v1551
      %v1607 = vmul.f32 %v1128, %v1551
      %v1608 = vmul.f32 %v1180, %v1551
      %v1609 = vmul.f32 %v1232, %v1551
      %v1610 = vmul.f32 %v1284, %v1551
      %v1611 = vmul.f32 %v1336, %v1551
      %v1612 = vmul.f32 %v1388, %v1551
      %v1613 = vmul.f32 %v1440, %v1551
      %v1614 = vmul.f32 %v1492, %v1551
      %v1615 = vmul.f32 %v1544, %v1551
      %v1616 = vmul.f32 %v767, %v1550
      %v1617 = vmul.f32 %v819, %v1550
      %v1618 = vmul.f32 %v871, %v1550
      %v1619 = vmul.f32 %v923, %v1550
      %v1620 = vmul.f32 %v975, %v1550
      %v1621 = vmul.f32 %v1027, %v1550
      %v1622 = vmul.f32 %v1079, %v1550
      %v1623 = vmul.f32 %v1131, %v1550
      %v1624 = vmul.f32 %v1183, %v1550
      %v1625 = vmul.f32 %v1235, %v1550
      %v1626 = vmul.f32 %v1287, %v1550
      %v1627 = vmul.f32 %v1339, %v1550
      %v1628 = vmul.f32 %v1391, %v1550
      %v1629 = vmul.f32 %v1443, %v1550
      %v1630 = vmul.f32 %v1495, %v1550
      %v1631 = vmul.f32 %v1547, %v1550
      %v1632 = vadd.f32 %v1600, %v1616
      %v1633 = vadd.f32 %v1601, %v1617
      %v1634 = vadd.f32 %v1602, %v1618
      %v1635 = vadd.f32 %v1603, %v1619
      %v1636 = vadd.f32 %v1604, %v1620
      %v1637 = vadd.f32 %v1605, %v1621
      %v1638 = vadd.f32 %v1606, %v1622
      %v1639 = vadd.f32 %v1607, %v1623
      %v1640 = vadd.f32 %v1608, %v1624
      %v1641 = vadd.f32 %v1609, %v1625
      %v1642 = vadd.f32 %v1610, %v1626
      %v1643 = vadd.f32 %v1611, %v1627
      %v1644 = vadd.f32 %v1612, %v1628
      %v1645 = vadd.f32 %v1613, %v1629
      %v1646 = vadd.f32 %v1614, %v1630
      %v1647 = vadd.f32 %v1615, %v1631
      %v1648 = vpack.c.bf16 %v1632, %v1584
      %v1649 = vpack.c.bf16 %v1633, %v1585
      %v1650 = vpack.c.bf16 %v1634, %v1586
      %v1651 = vpack.c.bf16 %v1635, %v1587
      %v1652 = vpack.c.bf16 %v1636, %v1588
      %v1653 = vpack.c.bf16 %v1637, %v1589
      %v1654 = vpack.c.bf16 %v1638, %v1590
      %v1655 = vpack.c.bf16 %v1639, %v1591
      %v1656 = vpack.c.bf16 %v1640, %v1592
      %v1657 = vpack.c.bf16 %v1641, %v1593
      %v1658 = vpack.c.bf16 %v1642, %v1594
      %v1659 = vpack.c.bf16 %v1643, %v1595
      %v1660 = vpack.c.bf16 %v1644, %v1596
      %v1661 = vpack.c.bf16 %v1645, %v1597
      %v1662 = vpack.c.bf16 %v1646, %v1598
      %v1663 = vpack.c.bf16 %v1647, %v1599
      %v1664 = vld [vmem:[%s2] sm:$0xf]
      %v1665 = vld [vmem:[%s2 + $0x4] sm:$0xf]
      %v1666 = vld [vmem:[%s2 + $0x8] sm:$0xf]
      %v1667 = vld [vmem:[%s2 + $0xc] sm:$0xf]
      %v1668 = vld [vmem:[%s2 + $0x10] sm:$0xf]
      %v1669 = vld [vmem:[%s2 + $0x14] sm:$0xf]
      %v1670 = vld [vmem:[%s2 + $0x18] sm:$0xf]
      %v1671 = vld [vmem:[%s2 + $0x1c] sm:$0xf]
      %v1672 = vld [vmem:[%s2 + $0x20] sm:$0xf]
      %v1673 = vld [vmem:[%s2 + $0x24] sm:$0xf]
      %v1674 = vld [vmem:[%s2 + $0x28] sm:$0xf]
      %v1675 = vld [vmem:[%s2 + $0x2c] sm:$0xf]
      %v1676 = vld [vmem:[%s2 + $0x30] sm:$0xf]
      %v1677 = vld [vmem:[%s2 + $0x34] sm:$0xf]
      %v1678 = vld [vmem:[%s2 + $0x38] sm:$0xf]
      %v1679 = vld [vmem:[%s2 + $0x3c] sm:$0xf]
      %vm1680 = vcmask 130048
      %v1682 = vsel %vm1680, %v1664, 0
      %1684 = vmatprep.subr.bf16.mxu0 0
      %1685 = vmatpush1.bf16.msra.mxu0 %v1648
      %1686 = vmatprep.subr.bf16.mxu0 0
      %1687 = vmatpush1.bf16.msra.mxu0 0
      %1688 = vmatprep.subr.bf16.mxu0 0
      %1689 = vmatpush1.bf16.msra.mxu0 0
      %1690 = vmatprep.subr.bf16.mxu0 0
      %1691 = vmatpush1.bf16.msra.mxu0 0
      %1692 = vmatprep.subr.bf16.mxu0 0
      %1693 = vmatpush1.bf16.msra.mxu0 0
      %1694 = vmatprep.subr.bf16.mxu0 0
      %1695 = vmatpush1.bf16.msra.mxu0 0
      %1696 = vmatprep.subr.bf16.mxu0 0
      %1697 = vmatpush1.bf16.msra.mxu0 0
      %1698 = vmatprep.subr.bf16.mxu0 0
      %1699 = vmatpush1.bf16.msra.mxu0 0
      %1700 = vmatprep.subr.bf16.mxu0 0
      %1701 = vmatpush1.bf16.msra.mxu0 0
      %1702 = vmatprep.subr.bf16.mxu0 0
      %1703 = vmatpush1.bf16.msra.mxu0 0
      %1704 = vmatprep.subr.bf16.mxu0 0
      %1705 = vmatpush1.bf16.msra.mxu0 0
      %1706 = vmatprep.subr.bf16.mxu0 0
      %1707 = vmatpush1.bf16.msra.mxu0 0
      %1708 = vmatprep.subr.bf16.mxu0 0
      %1709 = vmatpush1.bf16.msra.mxu0 0
      %1710 = vmatprep.subr.bf16.mxu0 0
      %1711 = vmatpush1.bf16.msra.mxu0 0
      %1712 = vmatprep.subr.bf16.mxu0 0
      %1713 = vmatpush1.bf16.msra.mxu0 0
      %1714 = vmatprep.subr.bf16.mxu0 0
      %1715 = vmatpush1.bf16.msra.mxu0 0
      %1716 = vmatprep.mubr.bf16.mxu0 0
      %1717 = vmatmul.mubr.bf16.gmra.mrb[0].mxu0 %v1682
      %v1718 = vpop.f32.mrb[0].mxu0
      %v1719 = vadd.f32 0.0, %v1718
      %v1720 = vpop.f32.mrb[0].mxu0
      %v1721 = vpop.f32.mrb[0].mxu0
      %v1722 = vpop.f32.mrb[0].mxu0
      %1723 = vdwg.mxu0
      %v1725 = vsel %vm1680, %v1665, 0
      %1727 = vmatprep.subr.bf16.mxu0 0
      %1728 = vmatpush1.bf16.msra.mxu0 %v1649
      %1729 = vmatprep.subr.bf16.mxu0 0
      %1730 = vmatpush1.bf16.msra.mxu0 0
      %1731 = vmatprep.subr.bf16.mxu0 0
      %1732 = vmatpush1.bf16.msra.mxu0 0
      %1733 = vmatprep.subr.bf16.mxu0 0
      %1734 = vmatpush1.bf16.msra.mxu0 0
      %1735 = vmatprep.subr.bf16.mxu0 0
      %1736 = vmatpush1.bf16.msra.mxu0 0
      %1737 = vmatprep.subr.bf16.mxu0 0
      %1738 = vmatpush1.bf16.msra.mxu0 0
      %1739 = vmatprep.subr.bf16.mxu0 0
      %1740 = vmatpush1.bf16.msra.mxu0 0
      %1741 = vmatprep.subr.bf16.mxu0 0
      %1742 = vmatpush1.bf16.msra.mxu0 0
      %1743 = vmatprep.subr.bf16.mxu0 0
      %1744 = vmatpush1.bf16.msra.mxu0 0
      %1745 = vmatprep.subr.bf16.mxu0 0
      %1746 = vmatpush1.bf16.msra.mxu0 0
      %1747 = vmatprep.subr.bf16.mxu0 0
      %1748 = vmatpush1.bf16.msra.mxu0 0
      %1749 = vmatprep.subr.bf16.mxu0 0
      %1750 = vmatpush1.bf16.msra.mxu0 0
      %1751 = vmatprep.subr.bf16.mxu0 0
      %1752 = vmatpush1.bf16.msra.mxu0 0
      %1753 = vmatprep.subr.bf16.mxu0 0
      %1754 = vmatpush1.bf16.msra.mxu0 0
      %1755 = vmatprep.subr.bf16.mxu0 0
      %1756 = vmatpush1.bf16.msra.mxu0 0
      %1757 = vmatprep.subr.bf16.mxu0 0
      %1758 = vmatpush1.bf16.msra.mxu0 0
      %1759 = vmatprep.mubr.bf16.mxu0 0
      %1760 = vmatmul.mubr.bf16.gmra.mrb[0].mxu0 %v1725
      %v1761 = vpop.f32.mrb[0].mxu0
      %v1762 = vadd.f32 0.0, %v1761
      %v1763 = vpop.f32.mrb[0].mxu0
      %v1764 = vpop.f32.mrb[0].mxu0
      %v1765 = vpop.f32.mrb[0].mxu0
      %1766 = vdwg.mxu0
      %v1768 = vsel %vm1680, %v1666, 0
      %1770 = vmatprep.subr.bf16.mxu0 0
      %1771 = vmatpush1.bf16.msra.mxu0 %v1650
      %1772 = vmatprep.subr.bf16.mxu0 0
      %1773 = vmatpush1.bf16.msra.mxu0 0
      %1774 = vmatprep.subr.bf16.mxu0 0
      %1775 = vmatpush1.bf16.msra.mxu0 0
      %1776 = vmatprep.subr.bf16.mxu0 0
      %1777 = vmatpush1.bf16.msra.mxu0 0
      %1778 = vmatprep.subr.bf16.mxu0 0
      %1779 = vmatpush1.bf16.msra.mxu0 0
      %1780 = vmatprep.subr.bf16.mxu0 0
      %1781 = vmatpush1.bf16.msra.mxu0 0
      %1782 = vmatprep.subr.bf16.mxu0 0
      %1783 = vmatpush1.bf16.msra.mxu0 0
      %1784 = vmatprep.subr.bf16.mxu0 0
      %1785 = vmatpush1.bf16.msra.mxu0 0
      %1786 = vmatprep.subr.bf16.mxu0 0
      %1787 = vmatpush1.bf16.msra.mxu0 0
      %1788 = vmatprep.subr.bf16.mxu0 0
      %1789 = vmatpush1.bf16.msra.mxu0 0
      %1790 = vmatprep.subr.bf16.mxu0 0
      %1791 = vmatpush1.bf16.msra.mxu0 0
      %1792 = vmatprep.subr.bf16.mxu0 0
      %1793 = vmatpush1.bf16.msra.mxu0 0
      %1794 = vmatprep.subr.bf16.mxu0 0
      %1795 = vmatpush1.bf16.msra.mxu0 0
      %1796 = vmatprep.subr.bf16.mxu0 0
      %1797 = vmatpush1.bf16.msra.mxu0 0
      %1798 = vmatprep.subr.bf16.mxu0 0
      %1799 = vmatpush1.bf16.msra.mxu0 0
      %1800 = vmatprep.subr.bf16.mxu0 0
      %1801 = vmatpush1.bf16.msra.mxu0 0
      %1802 = vmatprep.mubr.bf16.mxu0 0
      %1803 = vmatmul.mubr.bf16.gmra.mrb[0].mxu0 %v1768
      %v1804 = vpop.f32.mrb[0].mxu0
      %v1805 = vadd.f32 0.0, %v1804
      %v1806 = vpop.f32.mrb[0].mxu0
      %v1807 = vpop.f32.mrb[0].mxu0
      %v1808 = vpop.f32.mrb[0].mxu0
      %1809 = vdwg.mxu0
      %v1811 = vsel %vm1680, %v1667, 0
      %1813 = vmatprep.subr.bf16.mxu0 0
      %1814 = vmatpush1.bf16.msra.mxu0 %v1651
      %1815 = vmatprep.subr.bf16.mxu0 0
      %1816 = vmatpush1.bf16.msra.mxu0 0
      %1817 = vmatprep.subr.bf16.mxu0 0
      %1818 = vmatpush1.bf16.msra.mxu0 0
      %1819 = vmatprep.subr.bf16.mxu0 0
      %1820 = vmatpush1.bf16.msra.mxu0 0
      %1821 = vmatprep.subr.bf16.mxu0 0
      %1822 = vmatpush1.bf16.msra.mxu0 0
      %1823 = vmatprep.subr.bf16.mxu0 0
      %1824 = vmatpush1.bf16.msra.mxu0 0
      %1825 = vmatprep.subr.bf16.mxu0 0
      %1826 = vmatpush1.bf16.msra.mxu0 0
      %1827 = vmatprep.subr.bf16.mxu0 0
      %1828 = vmatpush1.bf16.msra.mxu0 0
      %1829 = vmatprep.subr.bf16.mxu0 0
      %1830 = vmatpush1.bf16.msra.mxu0 0
      %1831 = vmatprep.subr.bf16.mxu0 0
      %1832 = vmatpush1.bf16.msra.mxu0 0
      %1833 = vmatprep.subr.bf16.mxu0 0
      %1834 = vmatpush1.bf16.msra.mxu0 0
      %1835 = vmatprep.subr.bf16.mxu0 0
      %1836 = vmatpush1.bf16.msra.mxu0 0
      %1837 = vmatprep.subr.bf16.mxu0 0
      %1838 = vmatpush1.bf16.msra.mxu0 0
      %1839 = vmatprep.subr.bf16.mxu0 0
      %1840 = vmatpush1.bf16.msra.mxu0 0
      %1841 = vmatprep.subr.bf16.mxu0 0
      %1842 = vmatpush1.bf16.msra.mxu0 0
      %1843 = vmatprep.subr.bf16.mxu0 0
      %1844 = vmatpush1.bf16.msra.mxu0 0
      %1845 = vmatprep.mubr.bf16.mxu0 0
      %1846 = vmatmul.mubr.bf16.gmra.mrb[0].mxu0 %v1811
      %v1847 = vpop.f32.mrb[0].mxu0
      %v1848 = vadd.f32 0.0, %v1847
      %v1849 = vpop.f32.mrb[0].mxu0
      %v1850 = vpop.f32.mrb[0].mxu0
      %v1851 = vpop.f32.mrb[0].mxu0
      %1852 = vdwg.mxu0
      %v1854 = vsel %vm1680, %v1668, 0
      %1856 = vmatprep.subr.bf16.mxu0 0
      %1857 = vmatpush1.bf16.msra.mxu0 %v1652
      %1858 = vmatprep.subr.bf16.mxu0 0
      %1859 = vmatpush1.bf16.msra.mxu0 0
      %1860 = vmatprep.subr.bf16.mxu0 0
      %1861 = vmatpush1.bf16.msra.mxu0 0
      %1862 = vmatprep.subr.bf16.mxu0 0
      %1863 = vmatpush1.bf16.msra.mxu0 0
      %1864 = vmatprep.subr.bf16.mxu0 0
      %1865 = vmatpush1.bf16.msra.mxu0 0
      %1866 = vmatprep.subr.bf16.mxu0 0
      %1867 = vmatpush1.bf16.msra.mxu0 0
      %1868 = vmatprep.subr.bf16.mxu0 0
      %1869 = vmatpush1.bf16.msra.mxu0 0
      %1870 = vmatprep.subr.bf16.mxu0 0
      %1871 = vmatpush1.bf16.msra.mxu0 0
      %1872 = vmatprep.subr.bf16.mxu0 0
      %1873 = vmatpush1.bf16.msra.mxu0 0
      %1874 = vmatprep.subr.bf16.mxu0 0
      %1875 = vmatpush1.bf16.msra.mxu0 0
      %1876 = vmatprep.subr.bf16.mxu0 0
      %1877 = vmatpush1.bf16.msra.mxu0 0
      %1878 = vmatprep.subr.bf16.mxu0 0
      %1879 = vmatpush1.bf16.msra.mxu0 0
      %1880 = vmatprep.subr.bf16.mxu0 0
      %1881 = vmatpush1.bf16.msra.mxu0 0
      %1882 = vmatprep.subr.bf16.mxu0 0
      %1883 = vmatpush1.bf16.msra.mxu0 0
      %1884 = vmatprep.subr.bf16.mxu0 0
      %1885 = vmatpush1.bf16.msra.mxu0 0
      %1886 = vmatprep.subr.bf16.mxu0 0
      %1887 = vmatpush1.bf16.msra.mxu0 0
      %1888 = vmatprep.mubr.bf16.mxu0 0
      %1889 = vmatmul.mubr.bf16.gmra.mrb[0].mxu0 %v1854
      %v1890 = vpop.f32.mrb[0].mxu0
      %v1891 = vadd.f32 0.0, %v1890
      %v1892 = vpop.f32.mrb[0].mxu0
      %v1893 = vpop.f32.mrb[0].mxu0
      %v1894 = vpop.f32.mrb[0].mxu0
      %1895 = vdwg.mxu0
      %v1897 = vsel %vm1680, %v1669, 0
      %1899 = vmatprep.subr.bf16.mxu0 0
      %1900 = vmatpush1.bf16.msra.mxu0 %v1653
      %1901 = vmatprep.subr.bf16.mxu0 0
      %1902 = vmatpush1.bf16.msra.mxu0 0
      %1903 = vmatprep.subr.bf16.mxu0 0
      %1904 = vmatpush1.bf16.msra.mxu0 0
      %1905 = vmatprep.subr.bf16.mxu0 0
      %1906 = vmatpush1.bf16.msra.mxu0 0
      %1907 = vmatprep.subr.bf16.mxu0 0
      %1908 = vmatpush1.bf16.msra.mxu0 0
      %1909 = vmatprep.subr.bf16.mxu0 0
      %1910 = vmatpush1.bf16.msra.mxu0 0
      %1911 = vmatprep.subr.bf16.mxu0 0
      %1912 = vmatpush1.bf16.msra.mxu0 0
      %1913 = vmatprep.subr.bf16.mxu0 0
      %1914 = vmatpush1.bf16.msra.mxu0 0
      %1915 = vmatprep.subr.bf16.mxu0 0
      %1916 = vmatpush1.bf16.msra.mxu0 0
      %1917 = vmatprep.subr.bf16.mxu0 0
      %1918 = vmatpush1.bf16.msra.mxu0 0
      %1919 = vmatprep.subr.bf16.mxu0 0
      %1920 = vmatpush1.bf16.msra.mxu0 0
      %1921 = vmatprep.subr.bf16.mxu0 0
      %1922 = vmatpush1.bf16.msra.mxu0 0
      %1923 = vmatprep.subr.bf16.mxu0 0
      %1924 = vmatpush1.bf16.msra.mxu0 0
      %1925 = vmatprep.subr.bf16.mxu0 0
      %1926 = vmatpush1.bf16.msra.mxu0 0
      %1927 = vmatprep.subr.bf16.mxu0 0
      %1928 = vmatpush1.bf16.msra.mxu0 0
      %1929 = vmatprep.subr.bf16.mxu0 0
      %1930 = vmatpush1.bf16.msra.mxu0 0
      %1931 = vmatprep.mubr.bf16.mxu0 0
      %1932 = vmatmul.mubr.bf16.gmra.mrb[0].mxu0 %v1897
      %v1933 = vpop.f32.mrb[0].mxu0
      %v1934 = vadd.f32 0.0, %v1933
      %v1935 = vpop.f32.mrb[0].mxu0
      %v1936 = vpop.f32.mrb[0].mxu0
      %v1937 = vpop.f32.mrb[0].mxu0
      %1938 = vdwg.mxu0
      %v1940 = vsel %vm1680, %v1670, 0
      %1942 = vmatprep.subr.bf16.mxu0 0
      %1943 = vmatpush1.bf16.msra.mxu0 %v1654
      %1944 = vmatprep.subr.bf16.mxu0 0
      %1945 = vmatpush1.bf16.msra.mxu0 0
      %1946 = vmatprep.subr.bf16.mxu0 0
      %1947 = vmatpush1.bf16.msra.mxu0 0
      %1948 = vmatprep.subr.bf16.mxu0 0
      %1949 = vmatpush1.bf16.msra.mxu0 0
      %1950 = vmatprep.subr.bf16.mxu0 0
      %1951 = vmatpush1.bf16.msra.mxu0 0
      %1952 = vmatprep.subr.bf16.mxu0 0
      %1953 = vmatpush1.bf16.msra.mxu0 0
      %1954 = vmatprep.subr.bf16.mxu0 0
      %1955 = vmatpush1.bf16.msra.mxu0 0
      %1956 = vmatprep.subr.bf16.mxu0 0
      %1957 = vmatpush1.bf16.msra.mxu0 0
      %1958 = vmatprep.subr.bf16.mxu0 0
      %1959 = vmatpush1.bf16.msra.mxu0 0
      %1960 = vmatprep.subr.bf16.mxu0 0
      %1961 = vmatpush1.bf16.msra.mxu0 0
      %1962 = vmatprep.subr.bf16.mxu0 0
      %1963 = vmatpush1.bf16.msra.mxu0 0
      %1964 = vmatprep.subr.bf16.mxu0 0
      %1965 = vmatpush1.bf16.msra.mxu0 0
      %1966 = vmatprep.subr.bf16.mxu0 0
      %1967 = vmatpush1.bf16.msra.mxu0 0
      %1968 = vmatprep.subr.bf16.mxu0 0
      %1969 = vmatpush1.bf16.msra.mxu0 0
      %1970 = vmatprep.subr.bf16.mxu0 0
      %1971 = vmatpush1.bf16.msra.mxu0 0
      %1972 = vmatprep.subr.bf16.mxu0 0
      %1973 = vmatpush1.bf16.msra.mxu0 0
      %1974 = vmatprep.mubr.bf16.mxu0 0
      %1975 = vmatmul.mubr.bf16.gmra.mrb[0].mxu0 %v1940
      %v1976 = vpop.f32.mrb[0].mxu0
      %v1977 = vadd.f32 0.0, %v1976
      %v1978 = vpop.f32.mrb[0].mxu0
      %v1979 = vpop.f32.mrb[0].mxu0
      %v1980 = vpop.f32.mrb[0].mxu0
      %1981 = vdwg.mxu0
      %v1983 = vsel %vm1680, %v1671, 0
      %1985 = vmatprep.subr.bf16.mxu0 0
      %1986 = vmatpush1.bf16.msra.mxu0 %v1655
      %1987 = vmatprep.subr.bf16.mxu0 0
      %1988 = vmatpush1.bf16.msra.mxu0 0
      %1989 = vmatprep.subr.bf16.mxu0 0
      %1990 = vmatpush1.bf16.msra.mxu0 0
      %1991 = vmatprep.subr.bf16.mxu0 0
      %1992 = vmatpush1.bf16.msra.mxu0 0
      %1993 = vmatprep.subr.bf16.mxu0 0
      %1994 = vmatpush1.bf16.msra.mxu0 0
      %1995 = vmatprep.subr.bf16.mxu0 0
      %1996 = vmatpush1.bf16.msra.mxu0 0
      %1997 = vmatprep.subr.bf16.mxu0 0
      %1998 = vmatpush1.bf16.msra.mxu0 0
      %1999 = vmatprep.subr.bf16.mxu0 0
      %2000 = vmatpush1.bf16.msra.mxu0 0
      %2001 = vmatprep.subr.bf16.mxu0 0
      %2002 = vmatpush1.bf16.msra.mxu0 0
      %2003 = vmatprep.subr.bf16.mxu0 0
      %2004 = vmatpush1.bf16.msra.mxu0 0
      %2005 = vmatprep.subr.bf16.mxu0 0
      %2006 = vmatpush1.bf16.msra.mxu0 0
      %2007 = vmatprep.subr.bf16.mxu0 0
      %2008 = vmatpush1.bf16.msra.mxu0 0
      %2009 = vmatprep.subr.bf16.mxu0 0
      %2010 = vmatpush1.bf16.msra.mxu0 0
      %2011 = vmatprep.subr.bf16.mxu0 0
      %2012 = vmatpush1.bf16.msra.mxu0 0
      %2013 = vmatprep.subr.bf16.mxu0 0
      %2014 = vmatpush1.bf16.msra.mxu0 0
      %2015 = vmatprep.subr.bf16.mxu0 0
      %2016 = vmatpush1.bf16.msra.mxu0 0
      %2017 = vmatprep.mubr.bf16.mxu0 0
      %2018 = vmatmul.mubr.bf16.gmra.mrb[0].mxu0 %v1983
      %v2019 = vpop.f32.mrb[0].mxu0
      %v2020 = vadd.f32 0.0, %v2019
      %v2021 = vpop.f32.mrb[0].mxu0
      %v2022 = vpop.f32.mrb[0].mxu0
      %v2023 = vpop.f32.mrb[0].mxu0
      %2024 = vdwg.mxu0
      %v2026 = vsel %vm1680, %v1672, 0
      %2028 = vmatprep.subr.bf16.mxu0 0
      %2029 = vmatpush1.bf16.msra.mxu0 %v1656
      %2030 = vmatprep.subr.bf16.mxu0 0
      %2031 = vmatpush1.bf16.msra.mxu0 0
      %2032 = vmatprep.subr.bf16.mxu0 0
      %2033 = vmatpush1.bf16.msra.mxu0 0
      %2034 = vmatprep.subr.bf16.mxu0 0
      %2035 = vmatpush1.bf16.msra.mxu0 0
      %2036 = vmatprep.subr.bf16.mxu0 0
      %2037 = vmatpush1.bf16.msra.mxu0 0
      %2038 = vmatprep.subr.bf16.mxu0 0
      %2039 = vmatpush1.bf16.msra.mxu0 0
      %2040 = vmatprep.subr.bf16.mxu0 0
      %2041 = vmatpush1.bf16.msra.mxu0 0
      %2042 = vmatprep.subr.bf16.mxu0 0
      %2043 = vmatpush1.bf16.msra.mxu0 0
      %2044 = vmatprep.subr.bf16.mxu0 0
      %2045 = vmatpush1.bf16.msra.mxu0 0
      %2046 = vmatprep.subr.bf16.mxu0 0
      %2047 = vmatpush1.bf16.msra.mxu0 0
      %2048 = vmatprep.subr.bf16.mxu0 0
      %2049 = vmatpush1.bf16.msra.mxu0 0
      %2050 = vmatprep.subr.bf16.mxu0 0
      %2051 = vmatpush1.bf16.msra.mxu0 0
      %2052 = vmatprep.subr.bf16.mxu0 0
      %2053 = vmatpush1.bf16.msra.mxu0 0
      %2054 = vmatprep.subr.bf16.mxu0 0
      %2055 = vmatpush1.bf16.msra.mxu0 0
      %2056 = vmatprep.subr.bf16.mxu0 0
      %2057 = vmatpush1.bf16.msra.mxu0 0
      %2058 = vmatprep.subr.bf16.mxu0 0
      %2059 = vmatpush1.bf16.msra.mxu0 0
      %2060 = vmatprep.mubr.bf16.mxu0 0
      %2061 = vmatmul.mubr.bf16.gmra.mrb[0].mxu0 %v2026
      %v2062 = vpop.f32.mrb[0].mxu0
      %v2063 = vadd.f32 0.0, %v2062
      %v2064 = vpop.f32.mrb[0].mxu0
      %v2065 = vpop.f32.mrb[0].mxu0
      %v2066 = vpop.f32.mrb[0].mxu0
      %2067 = vdwg.mxu0
      %v2069 = vsel %vm1680, %v1673, 0
      %2071 = vmatprep.subr.bf16.mxu0 0
      %2072 = vmatpush1.bf16.msra.mxu0 %v1657
      %2073 = vmatprep.subr.bf16.mxu0 0
      %2074 = vmatpush1.bf16.msra.mxu0 0
      %2075 = vmatprep.subr.bf16.mxu0 0
      %2076 = vmatpush1.bf16.msra.mxu0 0
      %2077 = vmatprep.subr.bf16.mxu0 0
      %2078 = vmatpush1.bf16.msra.mxu0 0
      %2079 = vmatprep.subr.bf16.mxu0 0
      %2080 = vmatpush1.bf16.msra.mxu0 0
      %2081 = vmatprep.subr.bf16.mxu0 0
      %2082 = vmatpush1.bf16.msra.mxu0 0
      %2083 = vmatprep.subr.bf16.mxu0 0
      %2084 = vmatpush1.bf16.msra.mxu0 0
      %2085 = vmatprep.subr.bf16.mxu0 0
      %2086 = vmatpush1.bf16.msra.mxu0 0
      %2087 = vmatprep.subr.bf16.mxu0 0
      %2088 = vmatpush1.bf16.msra.mxu0 0
      %2089 = vmatprep.subr.bf16.mxu0 0
      %2090 = vmatpush1.bf16.msra.mxu0 0
      %2091 = vmatprep.subr.bf16.mxu0 0
      %2092 = vmatpush1.bf16.msra.mxu0 0
      %2093 = vmatprep.subr.bf16.mxu0 0
      %2094 = vmatpush1.bf16.msra.mxu0 0
      %2095 = vmatprep.subr.bf16.mxu0 0
      %2096 = vmatpush1.bf16.msra.mxu0 0
      %2097 = vmatprep.subr.bf16.mxu0 0
      %2098 = vmatpush1.bf16.msra.mxu0 0
      %2099 = vmatprep.subr.bf16.mxu0 0
      %2100 = vmatpush1.bf16.msra.mxu0 0
      %2101 = vmatprep.subr.bf16.mxu0 0
      %2102 = vmatpush1.bf16.msra.mxu0 0
      %2103 = vmatprep.mubr.bf16.mxu0 0
      %2104 = vmatmul.mubr.bf16.gmra.mrb[0].mxu0 %v2069
      %v2105 = vpop.f32.mrb[0].mxu0
      %v2106 = vadd.f32 0.0, %v2105
      %v2107 = vpop.f32.mrb[0].mxu0
      %v2108 = vpop.f32.mrb[0].mxu0
      %v2109 = vpop.f32.mrb[0].mxu0
      %2110 = vdwg.mxu0
      %v2112 = vsel %vm1680, %v1674, 0
      %2114 = vmatprep.subr.bf16.mxu0 0
      %2115 = vmatpush1.bf16.msra.mxu0 %v1658
      %2116 = vmatprep.subr.bf16.mxu0 0
      %2117 = vmatpush1.bf16.msra.mxu0 0
      %2118 = vmatprep.subr.bf16.mxu0 0
      %2119 = vmatpush1.bf16.msra.mxu0 0
      %2120 = vmatprep.subr.bf16.mxu0 0
      %2121 = vmatpush1.bf16.msra.mxu0 0
      %2122 = vmatprep.subr.bf16.mxu0 0
      %2123 = vmatpush1.bf16.msra.mxu0 0
      %2124 = vmatprep.subr.bf16.mxu0 0
      %2125 = vmatpush1.bf16.msra.mxu0 0
      %2126 = vmatprep.subr.bf16.mxu0 0
      %2127 = vmatpush1.bf16.msra.mxu0 0
      %2128 = vmatprep.subr.bf16.mxu0 0
      %2129 = vmatpush1.bf16.msra.mxu0 0
      %2130 = vmatprep.subr.bf16.mxu0 0
      %2131 = vmatpush1.bf16.msra.mxu0 0
      %2132 = vmatprep.subr.bf16.mxu0 0
      %2133 = vmatpush1.bf16.msra.mxu0 0
      %2134 = vmatprep.subr.bf16.mxu0 0
      %2135 = vmatpush1.bf16.msra.mxu0 0
      %2136 = vmatprep.subr.bf16.mxu0 0
      %2137 = vmatpush1.bf16.msra.mxu0 0
      %2138 = vmatprep.subr.bf16.mxu0 0
      %2139 = vmatpush1.bf16.msra.mxu0 0
      %2140 = vmatprep.subr.bf16.mxu0 0
      %2141 = vmatpush1.bf16.msra.mxu0 0
      %2142 = vmatprep.subr.bf16.mxu0 0
      %2143 = vmatpush1.bf16.msra.mxu0 0
      %2144 = vmatprep.subr.bf16.mxu0 0
      %2145 = vmatpush1.bf16.msra.mxu0 0
      %2146 = vmatprep.mubr.bf16.mxu0 0
      %2147 = vmatmul.mubr.bf16.gmra.mrb[0].mxu0 %v2112
      %v2148 = vpop.f32.mrb[0].mxu0
      %v2149 = vadd.f32 0.0, %v2148
      %v2150 = vpop.f32.mrb[0].mxu0
      %v2151 = vpop.f32.mrb[0].mxu0
      %v2152 = vpop.f32.mrb[0].mxu0
      %2153 = vdwg.mxu0
      %v2155 = vsel %vm1680, %v1675, 0
      %2157 = vmatprep.subr.bf16.mxu0 0
      %2158 = vmatpush1.bf16.msra.mxu0 %v1659
      %2159 = vmatprep.subr.bf16.mxu0 0
      %2160 = vmatpush1.bf16.msra.mxu0 0
      %2161 = vmatprep.subr.bf16.mxu0 0
      %2162 = vmatpush1.bf16.msra.mxu0 0
      %2163 = vmatprep.subr.bf16.mxu0 0
      %2164 = vmatpush1.bf16.msra.mxu0 0
      %2165 = vmatprep.subr.bf16.mxu0 0
      %2166 = vmatpush1.bf16.msra.mxu0 0
      %2167 = vmatprep.subr.bf16.mxu0 0
      %2168 = vmatpush1.bf16.msra.mxu0 0
      %2169 = vmatprep.subr.bf16.mxu0 0
      %2170 = vmatpush1.bf16.msra.mxu0 0
      %2171 = vmatprep.subr.bf16.mxu0 0
      %2172 = vmatpush1.bf16.msra.mxu0 0
      %2173 = vmatprep.subr.bf16.mxu0 0
      %2174 = vmatpush1.bf16.msra.mxu0 0
      %2175 = vmatprep.subr.bf16.mxu0 0
      %2176 = vmatpush1.bf16.msra.mxu0 0
      %2177 = vmatprep.subr.bf16.mxu0 0
      %2178 = vmatpush1.bf16.msra.mxu0 0
      %2179 = vmatprep.subr.bf16.mxu0 0
      %2180 = vmatpush1.bf16.msra.mxu0 0
      %2181 = vmatprep.subr.bf16.mxu0 0
      %2182 = vmatpush1.bf16.msra.mxu0 0
      %2183 = vmatprep.subr.bf16.mxu0 0
      %2184 = vmatpush1.bf16.msra.mxu0 0
      %2185 = vmatprep.subr.bf16.mxu0 0
      %2186 = vmatpush1.bf16.msra.mxu0 0
      %2187 = vmatprep.subr.bf16.mxu0 0
      %2188 = vmatpush1.bf16.msra.mxu0 0
      %2189 = vmatprep.mubr.bf16.mxu0 0
      %2190 = vmatmul.mubr.bf16.gmra.mrb[0].mxu0 %v2155
      %v2191 = vpop.f32.mrb[0].mxu0
      %v2192 = vadd.f32 0.0, %v2191
      %v2193 = vpop.f32.mrb[0].mxu0
      %v2194 = vpop.f32.mrb[0].mxu0
      %v2195 = vpop.f32.mrb[0].mxu0
      %2196 = vdwg.mxu0
      %v2198 = vsel %vm1680, %v1676, 0
      %2200 = vmatprep.subr.bf16.mxu0 0
      %2201 = vmatpush1.bf16.msra.mxu0 %v1660
      %2202 = vmatprep.subr.bf16.mxu0 0
      %2203 = vmatpush1.bf16.msra.mxu0 0
      %2204 = vmatprep.subr.bf16.mxu0 0
      %2205 = vmatpush1.bf16.msra.mxu0 0
      %2206 = vmatprep.subr.bf16.mxu0 0
      %2207 = vmatpush1.bf16.msra.mxu0 0
      %2208 = vmatprep.subr.bf16.mxu0 0
      %2209 = vmatpush1.bf16.msra.mxu0 0
      %2210 = vmatprep.subr.bf16.mxu0 0
      %2211 = vmatpush1.bf16.msra.mxu0 0
      %2212 = vmatprep.subr.bf16.mxu0 0
      %2213 = vmatpush1.bf16.msra.mxu0 0
      %2214 = vmatprep.subr.bf16.mxu0 0
      %2215 = vmatpush1.bf16.msra.mxu0 0
      %2216 = vmatprep.subr.bf16.mxu0 0
      %2217 = vmatpush1.bf16.msra.mxu0 0
      %2218 = vmatprep.subr.bf16.mxu0 0
      %2219 = vmatpush1.bf16.msra.mxu0 0
      %2220 = vmatprep.subr.bf16.mxu0 0
      %2221 = vmatpush1.bf16.msra.mxu0 0
      %2222 = vmatprep.subr.bf16.mxu0 0
      %2223 = vmatpush1.bf16.msra.mxu0 0
      %2224 = vmatprep.subr.bf16.mxu0 0
      %2225 = vmatpush1.bf16.msra.mxu0 0
      %2226 = vmatprep.subr.bf16.mxu0 0
      %2227 = vmatpush1.bf16.msra.mxu0 0
      %2228 = vmatprep.subr.bf16.mxu0 0
      %2229 = vmatpush1.bf16.msra.mxu0 0
      %2230 = vmatprep.subr.bf16.mxu0 0
      %2231 = vmatpush1.bf16.msra.mxu0 0
      %2232 = vmatprep.mubr.bf16.mxu0 0
      %2233 = vmatmul.mubr.bf16.gmra.mrb[0].mxu0 %v2198
      %v2234 = vpop.f32.mrb[0].mxu0
      %v2235 = vadd.f32 0.0, %v2234
      %v2236 = vpop.f32.mrb[0].mxu0
      %v2237 = vpop.f32.mrb[0].mxu0
      %v2238 = vpop.f32.mrb[0].mxu0
      %2239 = vdwg.mxu0
      %v2241 = vsel %vm1680, %v1677, 0
      %2243 = vmatprep.subr.bf16.mxu0 0
      %2244 = vmatpush1.bf16.msra.mxu0 %v1661
      %2245 = vmatprep.subr.bf16.mxu0 0
      %2246 = vmatpush1.bf16.msra.mxu0 0
      %2247 = vmatprep.subr.bf16.mxu0 0
      %2248 = vmatpush1.bf16.msra.mxu0 0
      %2249 = vmatprep.subr.bf16.mxu0 0
      %2250 = vmatpush1.bf16.msra.mxu0 0
      %2251 = vmatprep.subr.bf16.mxu0 0
      %2252 = vmatpush1.bf16.msra.mxu0 0
      %2253 = vmatprep.subr.bf16.mxu0 0
      %2254 = vmatpush1.bf16.msra.mxu0 0
      %2255 = vmatprep.subr.bf16.mxu0 0
      %2256 = vmatpush1.bf16.msra.mxu0 0
      %2257 = vmatprep.subr.bf16.mxu0 0
      %2258 = vmatpush1.bf16.msra.mxu0 0
      %2259 = vmatprep.subr.bf16.mxu0 0
      %2260 = vmatpush1.bf16.msra.mxu0 0
      %2261 = vmatprep.subr.bf16.mxu0 0
      %2262 = vmatpush1.bf16.msra.mxu0 0
      %2263 = vmatprep.subr.bf16.mxu0 0
      %2264 = vmatpush1.bf16.msra.mxu0 0
      %2265 = vmatprep.subr.bf16.mxu0 0
      %2266 = vmatpush1.bf16.msra.mxu0 0
      %2267 = vmatprep.subr.bf16.mxu0 0
      %2268 = vmatpush1.bf16.msra.mxu0 0
      %2269 = vmatprep.subr.bf16.mxu0 0
      %2270 = vmatpush1.bf16.msra.mxu0 0
      %2271 = vmatprep.subr.bf16.mxu0 0
      %2272 = vmatpush1.bf16.msra.mxu0 0
      %2273 = vmatprep.subr.bf16.mxu0 0
      %2274 = vmatpush1.bf16.msra.mxu0 0
      %2275 = vmatprep.mubr.bf16.mxu0 0
      %2276 = vmatmul.mubr.bf16.gmra.mrb[0].mxu0 %v2241
      %v2277 = vpop.f32.mrb[0].mxu0
      %v2278 = vadd.f32 0.0, %v2277
      %v2279 = vpop.f32.mrb[0].mxu0
      %v2280 = vpop.f32.mrb[0].mxu0
      %v2281 = vpop.f32.mrb[0].mxu0
      %2282 = vdwg.mxu0
      %v2284 = vsel %vm1680, %v1678, 0
      %2286 = vmatprep.subr.bf16.mxu0 0
      %2287 = vmatpush1.bf16.msra.mxu0 %v1662
      %2288 = vmatprep.subr.bf16.mxu0 0
      %2289 = vmatpush1.bf16.msra.mxu0 0
      %2290 = vmatprep.subr.bf16.mxu0 0
      %2291 = vmatpush1.bf16.msra.mxu0 0
      %2292 = vmatprep.subr.bf16.mxu0 0
      %2293 = vmatpush1.bf16.msra.mxu0 0
      %2294 = vmatprep.subr.bf16.mxu0 0
      %2295 = vmatpush1.bf16.msra.mxu0 0
      %2296 = vmatprep.subr.bf16.mxu0 0
      %2297 = vmatpush1.bf16.msra.mxu0 0
      %2298 = vmatprep.subr.bf16.mxu0 0
      %2299 = vmatpush1.bf16.msra.mxu0 0
      %2300 = vmatprep.subr.bf16.mxu0 0
      %2301 = vmatpush1.bf16.msra.mxu0 0
      %2302 = vmatprep.subr.bf16.mxu0 0
      %2303 = vmatpush1.bf16.msra.mxu0 0
      %2304 = vmatprep.subr.bf16.mxu0 0
      %2305 = vmatpush1.bf16.msra.mxu0 0
      %2306 = vmatprep.subr.bf16.mxu0 0
      %2307 = vmatpush1.bf16.msra.mxu0 0
      %2308 = vmatprep.subr.bf16.mxu0 0
      %2309 = vmatpush1.bf16.msra.mxu0 0
      %2310 = vmatprep.subr.bf16.mxu0 0
      %2311 = vmatpush1.bf16.msra.mxu0 0
      %2312 = vmatprep.subr.bf16.mxu0 0
      %2313 = vmatpush1.bf16.msra.mxu0 0
      %2314 = vmatprep.subr.bf16.mxu0 0
      %2315 = vmatpush1.bf16.msra.mxu0 0
      %2316 = vmatprep.subr.bf16.mxu0 0
      %2317 = vmatpush1.bf16.msra.mxu0 0
      %2318 = vmatprep.mubr.bf16.mxu0 0
      %2319 = vmatmul.mubr.bf16.gmra.mrb[0].mxu0 %v2284
      %v2320 = vpop.f32.mrb[0].mxu0
      %v2321 = vadd.f32 0.0, %v2320
      %v2322 = vpop.f32.mrb[0].mxu0
      %v2323 = vpop.f32.mrb[0].mxu0
      %v2324 = vpop.f32.mrb[0].mxu0
      %2325 = vdwg.mxu0
      %v2327 = vsel %vm1680, %v1679, 0
      %2329 = vmatprep.subr.bf16.mxu0 0
      %2330 = vmatpush1.bf16.msra.mxu0 %v1663
      %2331 = vmatprep.subr.bf16.mxu0 0
      %2332 = vmatpush1.bf16.msra.mxu0 0
      %2333 = vmatprep.subr.bf16.mxu0 0
      %2334 = vmatpush1.bf16.msra.mxu0 0
      %2335 = vmatprep.subr.bf16.mxu0 0
      %2336 = vmatpush1.bf16.msra.mxu0 0
      %2337 = vmatprep.subr.bf16.mxu0 0
      %2338 = vmatpush1.bf16.msra.mxu0 0
      %2339 = vmatprep.subr.bf16.mxu0 0
      %2340 = vmatpush1.bf16.msra.mxu0 0
      %2341 = vmatprep.subr.bf16.mxu0 0
      %2342 = vmatpush1.bf16.msra.mxu0 0
      %2343 = vmatprep.subr.bf16.mxu0 0
      %2344 = vmatpush1.bf16.msra.mxu0 0
      %2345 = vmatprep.subr.bf16.mxu0 0
      %2346 = vmatpush1.bf16.msra.mxu0 0
      %2347 = vmatprep.subr.bf16.mxu0 0
      %2348 = vmatpush1.bf16.msra.mxu0 0
      %2349 = vmatprep.subr.bf16.mxu0 0
      %2350 = vmatpush1.bf16.msra.mxu0 0
      %2351 = vmatprep.subr.bf16.mxu0 0
      %2352 = vmatpush1.bf16.msra.mxu0 0
      %2353 = vmatprep.subr.bf16.mxu0 0
      %2354 = vmatpush1.bf16.msra.mxu0 0
      %2355 = vmatprep.subr.bf16.mxu0 0
      %2356 = vmatpush1.bf16.msra.mxu0 0
      %2357 = vmatprep.subr.bf16.mxu0 0
      %2358 = vmatpush1.bf16.msra.mxu0 0
      %2359 = vmatprep.subr.bf16.mxu0 0
      %2360 = vmatpush1.bf16.msra.mxu0 0
      %2361 = vmatprep.mubr.bf16.mxu0 0
      %2362 = vmatmul.mubr.bf16.gmra.mrb[0].mxu0 %v2327
      %v2363 = vpop.f32.mrb[0].mxu0
      %v2364 = vadd.f32 0.0, %v2363
      %v2365 = vpop.f32.mrb[0].mxu0
      %v2366 = vpop.f32.mrb[0].mxu0
      %v2367 = vpop.f32.mrb[0].mxu0
      %2368 = vdwg.mxu0
      %v2369 = vadd.f32 %v1719, %v652
      %v2370 = vadd.f32 %v1762, %v653
      %v2371 = vadd.f32 %v1805, %v654
      %v2372 = vadd.f32 %v1848, %v655
      %v2373 = vadd.f32 %v1891, %v656
      %v2374 = vadd.f32 %v1934, %v657
      %v2375 = vadd.f32 %v1977, %v658
      %v2376 = vadd.f32 %v2020, %v659
      %v2377 = vadd.f32 %v2063, %v660
      %v2378 = vadd.f32 %v2106, %v661
      %v2379 = vadd.f32 %v2149, %v662
      %v2380 = vadd.f32 %v2192, %v663
      %v2381 = vadd.f32 %v2235, %v664
      %v2382 = vadd.f32 %v2278, %v665
      %v2383 = vadd.f32 %v2321, %v666
      %v2384 = vadd.f32 %v2364, %v667
      %v2385 = vld [vmem:[%s582] sm:$0x1]
      %v2386 = vld [vmem:[%s585] sm:$0x1]
      %vm2387 = vcmask 261120
      %v2388 = vsel %vm2387, %v2369, 0.0
      %2389 = vadd.xlane.f32.xlu0 %v2388
      %v2390 = vpop.xlane.xlu0 %2389
      %v2391 = vsel %vm2387, %v2370, 0.0
      %2392 = vadd.xlane.f32.xlu0 %v2391
      %v2393 = vpop.xlane.xlu0 %2392
      %v2394 = vsel %vm2387, %v2371, 0.0
      %2395 = vadd.xlane.f32.xlu0 %v2394
      %v2396 = vpop.xlane.xlu0 %2395
      %v2397 = vsel %vm2387, %v2372, 0.0
      %2398 = vadd.xlane.f32.xlu0 %v2397
      %v2399 = vpop.xlane.xlu0 %2398
      %v2400 = vsel %vm2387, %v2373, 0.0
      %2401 = vadd.xlane.f32.xlu0 %v2400
      %v2402 = vpop.xlane.xlu0 %2401
      %v2403 = vsel %vm2387, %v2374, 0.0
      %2404 = vadd.xlane.f32.xlu0 %v2403
      %v2405 = vpop.xlane.xlu0 %2404
      %v2406 = vsel %vm2387, %v2375, 0.0
      %2407 = vadd.xlane.f32.xlu0 %v2406
      %v2408 = vpop.xlane.xlu0 %2407
      %v2409 = vsel %vm2387, %v2376, 0.0
      %2410 = vadd.xlane.f32.xlu0 %v2409
      %v2411 = vpop.xlane.xlu0 %2410
      %v2412 = vsel %vm2387, %v2377, 0.0
      %2413 = vadd.xlane.f32.xlu0 %v2412
      %v2414 = vpop.xlane.xlu0 %2413
      %v2415 = vsel %vm2387, %v2378, 0.0
      %2416 = vadd.xlane.f32.xlu0 %v2415
      %v2417 = vpop.xlane.xlu0 %2416
      %v2418 = vsel %vm2387, %v2379, 0.0
      %2419 = vadd.xlane.f32.xlu0 %v2418
      %v2420 = vpop.xlane.xlu0 %2419
      %v2421 = vsel %vm2387, %v2380, 0.0
      %2422 = vadd.xlane.f32.xlu0 %v2421
      %v2423 = vpop.xlane.xlu0 %2422
      %v2424 = vsel %vm2387, %v2381, 0.0
      %2425 = vadd.xlane.f32.xlu0 %v2424
      %v2426 = vpop.xlane.xlu0 %2425
      %v2427 = vsel %vm2387, %v2382, 0.0
      %2428 = vadd.xlane.f32.xlu0 %v2427
      %v2429 = vpop.xlane.xlu0 %2428
      %v2430 = vsel %vm2387, %v2383, 0.0
      %2431 = vadd.xlane.f32.xlu0 %v2430
      %v2432 = vpop.xlane.xlu0 %2431
      %v2433 = vsel %vm2387, %v2384, 0.0
      %2434 = vadd.xlane.f32.xlu0 %v2433
      %v2435 = vpop.xlane.xlu0 %2434
      %v2436 = vrcp.pop 32.0
      %v2437 = vmul.f32 %v2390, %v2436
      %v2438 = vmul.f32 %v2393, %v2436
      %v2439 = vmul.f32 %v2396, %v2436
      %v2440 = vmul.f32 %v2399, %v2436
      %v2441 = vmul.f32 %v2402, %v2436
      %v2442 = vmul.f32 %v2405, %v2436
      %v2443 = vmul.f32 %v2408, %v2436
      %v2444 = vmul.f32 %v2411, %v2436
      %v2445 = vmul.f32 %v2414, %v2436
      %v2446 = vmul.f32 %v2417, %v2436
      %v2447 = vmul.f32 %v2420, %v2436
      %v2448 = vmul.f32 %v2423, %v2436
      %v2449 = vmul.f32 %v2426, %v2436
      %v2450 = vmul.f32 %v2429, %v2436
      %v2451 = vmul.f32 %v2432, %v2436
      %v2452 = vmul.f32 %v2435, %v2436
      %v2453 = vmul.f32 %v2369, %v2369
      %v2454 = vmul.f32 %v2370, %v2370
      %v2455 = vmul.f32 %v2371, %v2371
      %v2456 = vmul.f32 %v2372, %v2372
      %v2457 = vmul.f32 %v2373, %v2373
      %v2458 = vmul.f32 %v2374, %v2374
      %v2459 = vmul.f32 %v2375, %v2375
      %v2460 = vmul.f32 %v2376, %v2376
      %v2461 = vmul.f32 %v2377, %v2377
      %v2462 = vmul.f32 %v2378, %v2378
      %v2463 = vmul.f32 %v2379, %v2379
      %v2464 = vmul.f32 %v2380, %v2380
      %v2465 = vmul.f32 %v2381, %v2381
      %v2466 = vmul.f32 %v2382, %v2382
      %v2467 = vmul.f32 %v2383, %v2383
      %v2468 = vmul.f32 %v2384, %v2384
      %v2469 = vsel %vm2387, %v2453, 0.0
      %2470 = vadd.xlane.f32.xlu0 %v2469
      %v2471 = vpop.xlane.xlu0 %2470
      %v2472 = vsel %vm2387, %v2454, 0.0
      %2473 = vadd.xlane.f32.xlu0 %v2472
      %v2474 = vpop.xlane.xlu0 %2473
      %v2475 = vsel %vm2387, %v2455, 0.0
      %2476 = vadd.xlane.f32.xlu0 %v2475
      %v2477 = vpop.xlane.xlu0 %2476
      %v2478 = vsel %vm2387, %v2456, 0.0
      %2479 = vadd.xlane.f32.xlu0 %v2478
      %v2480 = vpop.xlane.xlu0 %2479
      %v2481 = vsel %vm2387, %v2457, 0.0
      %2482 = vadd.xlane.f32.xlu0 %v2481
      %v2483 = vpop.xlane.xlu0 %2482
      %v2484 = vsel %vm2387, %v2458, 0.0
      %2485 = vadd.xlane.f32.xlu0 %v2484
      %v2486 = vpop.xlane.xlu0 %2485
      %v2487 = vsel %vm2387, %v2459, 0.0
      %2488 = vadd.xlane.f32.xlu0 %v2487
      %v2489 = vpop.xlane.xlu0 %2488
      %v2490 = vsel %vm2387, %v2460, 0.0
      %2491 = vadd.xlane.f32.xlu0 %v2490
      %v2492 = vpop.xlane.xlu0 %2491
      %v2493 = vsel %vm2387, %v2461, 0.0
      %2494 = vadd.xlane.f32.xlu0 %v2493
      %v2495 = vpop.xlane.xlu0 %2494
      %v2496 = vsel %vm2387, %v2462, 0.0
      %2497 = vadd.xlane.f32.xlu0 %v2496
      %v2498 = vpop.xlane.xlu0 %2497
      %v2499 = vsel %vm2387, %v2463, 0.0
      %2500 = vadd.xlane.f32.xlu0 %v2499
      %v2501 = vpop.xlane.xlu0 %2500
      %v2502 = vsel %vm2387, %v2464, 0.0
      %2503 = vadd.xlane.f32.xlu0 %v2502
      %v2504 = vpop.xlane.xlu0 %2503
      %v2505 = vsel %vm2387, %v2465, 0.0
      %2506 = vadd.xlane.f32.xlu0 %v2505
      %v2507 = vpop.xlane.xlu0 %2506
      %v2508 = vsel %vm2387, %v2466, 0.0
      %2509 = vadd.xlane.f32.xlu0 %v2508
      %v2510 = vpop.xlane.xlu0 %2509
      %v2511 = vsel %vm2387, %v2467, 0.0
      %2512 = vadd.xlane.f32.xlu0 %v2511
      %v2513 = vpop.xlane.xlu0 %2512
      %v2514 = vsel %vm2387, %v2468, 0.0
      %2515 = vadd.xlane.f32.xlu0 %v2514
      %v2516 = vpop.xlane.xlu0 %2515
      %v2517 = vmul.f32 %v2471, %v2436
      %v2518 = vmul.f32 %v2474, %v2436
      %v2519 = vmul.f32 %v2477, %v2436
      %v2520 = vmul.f32 %v2480, %v2436
      %v2521 = vmul.f32 %v2483, %v2436
      %v2522 = vmul.f32 %v2486, %v2436
      %v2523 = vmul.f32 %v2489, %v2436
      %v2524 = vmul.f32 %v2492, %v2436
      %v2525 = vmul.f32 %v2495, %v2436
      %v2526 = vmul.f32 %v2498, %v2436
      %v2527 = vmul.f32 %v2501, %v2436
      %v2528 = vmul.f32 %v2504, %v2436
      %v2529 = vmul.f32 %v2507, %v2436
      %v2530 = vmul.f32 %v2510, %v2436
      %v2531 = vmul.f32 %v2513, %v2436
      %v2532 = vmul.f32 %v2516, %v2436
      %v2533 = vmul.f32 %v2437, %v2437
      %v2534 = vmul.f32 %v2438, %v2438
      %v2535 = vmul.f32 %v2439, %v2439
      %v2536 = vmul.f32 %v2440, %v2440
      %v2537 = vmul.f32 %v2441, %v2441
      %v2538 = vmul.f32 %v2442, %v2442
      %v2539 = vmul.f32 %v2443, %v2443
      %v2540 = vmul.f32 %v2444, %v2444
      %v2541 = vmul.f32 %v2445, %v2445
      %v2542 = vmul.f32 %v2446, %v2446
      %v2543 = vmul.f32 %v2447, %v2447
      %v2544 = vmul.f32 %v2448, %v2448
      %v2545 = vmul.f32 %v2449, %v2449
      %v2546 = vmul.f32 %v2450, %v2450
      %v2547 = vmul.f32 %v2451, %v2451
      %v2548 = vmul.f32 %v2452, %v2452
      %v2549 = vsub.f32 %v2517, %v2533
      %v2550 = vsub.f32 %v2518, %v2534
      %v2551 = vsub.f32 %v2519, %v2535
      %v2552 = vsub.f32 %v2520, %v2536
      %v2553 = vsub.f32 %v2521, %v2537
      %v2554 = vsub.f32 %v2522, %v2538
      %v2555 = vsub.f32 %v2523, %v2539
      %v2556 = vsub.f32 %v2524, %v2540
      %v2557 = vsub.f32 %v2525, %v2541
      %v2558 = vsub.f32 %v2526, %v2542
      %v2559 = vsub.f32 %v2527, %v2543
      %v2560 = vsub.f32 %v2528, %v2544
      %v2561 = vsub.f32 %v2529, %v2545
      %v2562 = vsub.f32 %v2530, %v2546
      %v2563 = vsub.f32 %v2531, %v2547
      %v2564 = vsub.f32 %v2532, %v2548
      %v2565 = vsub.f32 %v2369, %v2437
      %v2566 = vsub.f32 %v2370, %v2438
      %v2567 = vsub.f32 %v2371, %v2439
      %v2568 = vsub.f32 %v2372, %v2440
      %v2569 = vsub.f32 %v2373, %v2441
      %v2570 = vsub.f32 %v2374, %v2442
      %v2571 = vsub.f32 %v2375, %v2443
      %v2572 = vsub.f32 %v2376, %v2444
      %v2573 = vsub.f32 %v2377, %v2445
      %v2574 = vsub.f32 %v2378, %v2446
      %v2575 = vsub.f32 %v2379, %v2447
      %v2576 = vsub.f32 %v2380, %v2448
      %v2577 = vsub.f32 %v2381, %v2449
      %v2578 = vsub.f32 %v2382, %v2450
      %v2579 = vsub.f32 %v2383, %v2451
      %v2580 = vsub.f32 %v2384, %v2452
      %v2581 = vadd.f32 %v2549, 1e-12
      %v2582 = vadd.f32 %v2550, 1e-12
      %v2583 = vadd.f32 %v2551, 1e-12
      %v2584 = vadd.f32 %v2552, 1e-12
      %v2585 = vadd.f32 %v2553, 1e-12
      %v2586 = vadd.f32 %v2554, 1e-12
      %v2587 = vadd.f32 %v2555, 1e-12
      %v2588 = vadd.f32 %v2556, 1e-12
      %v2589 = vadd.f32 %v2557, 1e-12
      %v2590 = vadd.f32 %v2558, 1e-12
      %v2591 = vadd.f32 %v2559, 1e-12
      %v2592 = vadd.f32 %v2560, 1e-12
      %v2593 = vadd.f32 %v2561, 1e-12
      %v2594 = vadd.f32 %v2562, 1e-12
      %v2595 = vadd.f32 %v2563, 1e-12
      %v2596 = vadd.f32 %v2564, 1e-12
      %v2597 = vrsqrt.pop %v2581
      %v2598 = vrsqrt.pop %v2582
      %v2599 = vrsqrt.pop %v2583
      %v2600 = vrsqrt.pop %v2584
      %v2601 = vrsqrt.pop %v2585
      %v2602 = vrsqrt.pop %v2586
      %v2603 = vrsqrt.pop %v2587
      %v2604 = vrsqrt.pop %v2588
      %v2605 = vrsqrt.pop %v2589
      %v2606 = vrsqrt.pop %v2590
      %v2607 = vrsqrt.pop %v2591
      %v2608 = vrsqrt.pop %v2592
      %v2609 = vrsqrt.pop %v2593
      %v2610 = vrsqrt.pop %v2594
      %v2611 = vrsqrt.pop %v2595
      %v2612 = vrsqrt.pop %v2596
      %v2613 = vmul.f32 %v2565, %v2597
      %v2614 = vmul.f32 %v2566, %v2598
      %v2615 = vmul.f32 %v2567, %v2599
      %v2616 = vmul.f32 %v2568, %v2600
      %v2617 = vmul.f32 %v2569, %v2601
      %v2618 = vmul.f32 %v2570, %v2602
      %v2619 = vmul.f32 %v2571, %v2603
      %v2620 = vmul.f32 %v2572, %v2604
      %v2621 = vmul.f32 %v2573, %v2605
      %v2622 = vmul.f32 %v2574, %v2606
      %v2623 = vmul.f32 %v2575, %v2607
      %v2624 = vmul.f32 %v2576, %v2608
      %v2625 = vmul.f32 %v2577, %v2609
      %v2626 = vmul.f32 %v2578, %v2610
      %v2627 = vmul.f32 %v2579, %v2611
      %v2628 = vmul.f32 %v2580, %v2612
      %v2630 = vlaneseq
      %v2631 = vshrl.u32 %v2630, 7
      %v2632 = vsub.s32 0, %v2631
      %v2633 = vrot.slane %v2385, %v2632
      %v2635 = vmul.f32 %v2613, %v2633
      %v2636 = vmul.f32 %v2614, %v2633
      %v2637 = vmul.f32 %v2615, %v2633
      %v2638 = vmul.f32 %v2616, %v2633
      %v2639 = vmul.f32 %v2617, %v2633
      %v2640 = vmul.f32 %v2618, %v2633
      %v2641 = vmul.f32 %v2619, %v2633
      %v2642 = vmul.f32 %v2620, %v2633
      %v2643 = vmul.f32 %v2621, %v2633
      %v2644 = vmul.f32 %v2622, %v2633
      %v2645 = vmul.f32 %v2623, %v2633
      %v2646 = vmul.f32 %v2624, %v2633
      %v2647 = vmul.f32 %v2625, %v2633
      %v2648 = vmul.f32 %v2626, %v2633
      %v2649 = vmul.f32 %v2627, %v2633
      %v2650 = vmul.f32 %v2628, %v2633
      %v2652 = vlaneseq
      %v2653 = vshrl.u32 %v2652, 7
      %v2654 = vsub.s32 0, %v2653
      %v2655 = vrot.slane %v2386, %v2654
      %v2657 = vadd.f32 %v2635, %v2655
      %v2658 = vadd.f32 %v2636, %v2655
      %v2659 = vadd.f32 %v2637, %v2655
      %v2660 = vadd.f32 %v2638, %v2655
      %v2661 = vadd.f32 %v2639, %v2655
      %v2662 = vadd.f32 %v2640, %v2655
      %v2663 = vadd.f32 %v2641, %v2655
      %v2664 = vadd.f32 %v2642, %v2655
      %v2665 = vadd.f32 %v2643, %v2655
      %v2666 = vadd.f32 %v2644, %v2655
      %v2667 = vadd.f32 %v2645, %v2655
      %v2668 = vadd.f32 %v2646, %v2655
      %v2669 = vadd.f32 %v2647, %v2655
      %v2670 = vadd.f32 %v2648, %v2655
      %v2671 = vadd.f32 %v2649, %v2655
      %v2672 = vadd.f32 %v2650, %v2655
      %v2673 = vpack.c.bf16 %v2658, %v2657
      %v2674 = vpack.c.bf16 %v2660, %v2659
      %v2675 = vpack.c.bf16 %v2662, %v2661
      %v2676 = vpack.c.bf16 %v2664, %v2663
      %v2677 = vpack.c.bf16 %v2666, %v2665
      %v2678 = vpack.c.bf16 %v2668, %v2667
      %v2679 = vpack.c.bf16 %v2670, %v2669
      %v2680 = vpack.c.bf16 %v2672, %v2671
      %v2681 = vld [vmem:[%s590] sm:$0xf]
      %v2682 = vld [vmem:[%s590 + $0x4] sm:$0xf]
      %v2683 = vld [vmem:[%s590 + $0x8] sm:$0xf]
      %v2684 = vld [vmem:[%s590 + $0xc] sm:$0xf]
      %v2685 = vld [vmem:[%s593] sm:$0x1]
      %v2687 = vlaneseq
      %v2688 = vshrl.u32 %v2687, 7
      %v2689 = vsub.s32 0, %v2688
      %v2690 = vrot.slane %v2685, %v2689
      %v2696 = vunpack.c.l.b16 %v2681
      %v2697 = vunpack.c.l.b16 %v2682
      %v2698 = vunpack.c.l.b16 %v2683
      %v2699 = vunpack.c.l.b16 %v2684
      %v2700 = vpack.c.b16 %v2697, %v2696
      %v2701 = vpack.c.b16 %v2699, %v2698
      %v2705 = vsel %vm2387, %v2673, 0
      %v2708 = vsel %vm2387, %v2674, 0
      %v2711 = vsel %vm2387, %v2675, 0
      %v2714 = vsel %vm2387, %v2676, 0
      %v2717 = vsel %vm2387, %v2677, 0
      %v2720 = vsel %vm2387, %v2678, 0
      %v2723 = vsel %vm2387, %v2679, 0
      %v2726 = vsel %vm2387, %v2680, 0
      %2728 = vmatprep.subr.bf16.mxu0 0
      %2729 = vmatpush1.bf16.msra.mxu0 %v2700
      %2730 = vmatprep.subr.bf16.mxu0 0
      %2731 = vmatpush1.bf16.msra.mxu0 %v2701
      %2732 = vmatprep.subr.bf16.mxu0 0
      %2733 = vmatpush1.bf16.msra.mxu0 0
      %2734 = vmatprep.subr.bf16.mxu0 0
      %2735 = vmatpush1.bf16.msra.mxu0 0
      %2736 = vmatprep.subr.bf16.mxu0 0
      %2737 = vmatpush1.bf16.msra.mxu0 0
      %2738 = vmatprep.subr.bf16.mxu0 0
      %2739 = vmatpush1.bf16.msra.mxu0 0
      %2740 = vmatprep.subr.bf16.mxu0 0
      %2741 = vmatpush1.bf16.msra.mxu0 0
      %2742 = vmatprep.subr.bf16.mxu0 0
      %2743 = vmatpush1.bf16.msra.mxu0 0
      %2744 = vmatprep.subr.bf16.mxu0 0
      %2745 = vmatpush1.bf16.msra.mxu0 0
      %2746 = vmatprep.subr.bf16.mxu0 0
      %2747 = vmatpush1.bf16.msra.mxu0 0
      %2748 = vmatprep.subr.bf16.mxu0 0
      %2749 = vmatpush1.bf16.msra.mxu0 0
      %2750 = vmatprep.subr.bf16.mxu0 0
      %2751 = vmatpush1.bf16.msra.mxu0 0
      %2752 = vmatprep.subr.bf16.mxu0 0
      %2753 = vmatpush1.bf16.msra.mxu0 0
      %2754 = vmatprep.subr.bf16.mxu0 0
      %2755 = vmatpush1.bf16.msra.mxu0 0
      %2756 = vmatprep.subr.bf16.mxu0 0
      %2757 = vmatpush1.bf16.msra.mxu0 0
      %2758 = vmatprep.subr.bf16.mxu0 0
      %2759 = vmatpush1.bf16.msra.mxu0 0
      %2760 = vmatprep.mubr.bf16.mxu0 0
      %2761 = vmatmul.mubr.bf16.gmra.mrb[0].mxu0 %v2705
      %v2762 = vpop.f32.mrb[0].mxu0
      %v2763 = vadd.f32 %v2690, %v2762
      %v2764 = vpop.f32.mrb[0].mxu0
      %v2765 = vpop.f32.mrb[0].mxu0
      %v2766 = vadd.f32 %v2690, %v2765
      %v2767 = vpop.f32.mrb[0].mxu0
      %2768 = vmatprep.mubr.bf16.mxu0 0
      %2769 = vmatmul.mubr.bf16.gmra.mrb[0].mxu0 %v2708
      %v2770 = vpop.f32.mrb[0].mxu0
      %v2771 = vadd.f32 %v2690, %v2770
      %v2772 = vpop.f32.mrb[0].mxu0
      %v2773 = vpop.f32.mrb[0].mxu0
      %v2774 = vadd.f32 %v2690, %v2773
      %v2775 = vpop.f32.mrb[0].mxu0
      %2776 = vmatprep.mubr.bf16.mxu0 0
      %2777 = vmatmul.mubr.bf16.gmra.mrb[0].mxu0 %v2711
      %v2778 = vpop.f32.mrb[0].mxu0
      %v2779 = vadd.f32 %v2690, %v2778
      %v2780 = vpop.f32.mrb[0].mxu0
      %v2781 = vpop.f32.mrb[0].mxu0
      %v2782 = vadd.f32 %v2690, %v2781
      %v2783 = vpop.f32.mrb[0].mxu0
      %2784 = vmatprep.mubr.bf16.mxu0 0
      %2785 = vmatmul.mubr.bf16.gmra.mrb[0].mxu0 %v2714
      %v2786 = vpop.f32.mrb[0].mxu0
      %v2787 = vadd.f32 %v2690, %v2786
      %v2788 = vpop.f32.mrb[0].mxu0
      %v2789 = vpop.f32.mrb[0].mxu0
      %v2790 = vadd.f32 %v2690, %v2789
      %v2791 = vpop.f32.mrb[0].mxu0
      %2792 = vmatprep.mubr.bf16.mxu0 0
      %2793 = vmatmul.mubr.bf16.gmra.mrb[0].mxu0 %v2717
      %v2794 = vpop.f32.mrb[0].mxu0
      %v2795 = vadd.f32 %v2690, %v2794
      %v2796 = vpop.f32.mrb[0].mxu0
      %v2797 = vpop.f32.mrb[0].mxu0
      %v2798 = vadd.f32 %v2690, %v2797
      %v2799 = vpop.f32.mrb[0].mxu0
      %2800 = vmatprep.mubr.bf16.mxu0 0
      %2801 = vmatmul.mubr.bf16.gmra.mrb[0].mxu0 %v2720
      %v2802 = vpop.f32.mrb[0].mxu0
      %v2803 = vadd.f32 %v2690, %v2802
      %v2804 = vpop.f32.mrb[0].mxu0
      %v2805 = vpop.f32.mrb[0].mxu0
      %v2806 = vadd.f32 %v2690, %v2805
      %v2807 = vpop.f32.mrb[0].mxu0
      %2808 = vmatprep.mubr.bf16.mxu0 0
      %2809 = vmatmul.mubr.bf16.gmra.mrb[0].mxu0 %v2723
      %v2810 = vpop.f32.mrb[0].mxu0
      %v2811 = vadd.f32 %v2690, %v2810
      %v2812 = vpop.f32.mrb[0].mxu0
      %v2813 = vpop.f32.mrb[0].mxu0
      %v2814 = vadd.f32 %v2690, %v2813
      %v2815 = vpop.f32.mrb[0].mxu0
      %2816 = vmatprep.mubr.bf16.mxu0 0
      %2817 = vmatmul.mubr.bf16.gmra.mrb[0].mxu0 %v2726
      %v2818 = vpop.f32.mrb[0].mxu0
      %v2819 = vadd.f32 %v2690, %v2818
      %v2820 = vpop.f32.mrb[0].mxu0
      %v2821 = vpop.f32.mrb[0].mxu0
      %v2822 = vadd.f32 %v2690, %v2821
      %v2823 = vpop.f32.mrb[0].mxu0
      %2824 = vdwg.mxu0
      %v2825 = vmul.f32 %v2763, %v2763
      %v2826 = vmul.f32 %v2766, %v2766
      %v2827 = vmul.f32 %v2771, %v2771
      %v2828 = vmul.f32 %v2774, %v2774
      %v2829 = vmul.f32 %v2779, %v2779
      %v2830 = vmul.f32 %v2782, %v2782
      %v2831 = vmul.f32 %v2787, %v2787
      %v2832 = vmul.f32 %v2790, %v2790
      %v2833 = vmul.f32 %v2795, %v2795
      %v2834 = vmul.f32 %v2798, %v2798
      %v2835 = vmul.f32 %v2803, %v2803
      %v2836 = vmul.f32 %v2806, %v2806
      %v2837 = vmul.f32 %v2811, %v2811
      %v2838 = vmul.f32 %v2814, %v2814
      %v2839 = vmul.f32 %v2819, %v2819
      %v2840 = vmul.f32 %v2822, %v2822
      %v2841 = vmul.f32 %v2763, %v2825
      %v2842 = vmul.f32 %v2766, %v2826
      %v2843 = vmul.f32 %v2771, %v2827
      %v2844 = vmul.f32 %v2774, %v2828
      %v2845 = vmul.f32 %v2779, %v2829
      %v2846 = vmul.f32 %v2782, %v2830
      %v2847 = vmul.f32 %v2787, %v2831
      %v2848 = vmul.f32 %v2790, %v2832
      %v2849 = vmul.f32 %v2795, %v2833
      %v2850 = vmul.f32 %v2798, %v2834
      %v2851 = vmul.f32 %v2803, %v2835
      %v2852 = vmul.f32 %v2806, %v2836
      %v2853 = vmul.f32 %v2811, %v2837
      %v2854 = vmul.f32 %v2814, %v2838
      %v2855 = vmul.f32 %v2819, %v2839
      %v2856 = vmul.f32 %v2822, %v2840
      %v2857 = vmul.f32 %v2841, 0.044715
      %v2858 = vmul.f32 %v2842, 0.044715
      %v2859 = vmul.f32 %v2843, 0.044715
      %v2860 = vmul.f32 %v2844, 0.044715
      %v2861 = vmul.f32 %v2845, 0.044715
      %v2862 = vmul.f32 %v2846, 0.044715
      %v2863 = vmul.f32 %v2847, 0.044715
      %v2864 = vmul.f32 %v2848, 0.044715
      %v2865 = vmul.f32 %v2849, 0.044715
      %v2866 = vmul.f32 %v2850, 0.044715
      %v2867 = vmul.f32 %v2851, 0.044715
      %v2868 = vmul.f32 %v2852, 0.044715
      %v2869 = vmul.f32 %v2853, 0.044715
      %v2870 = vmul.f32 %v2854, 0.044715
      %v2871 = vmul.f32 %v2855, 0.044715
      %v2872 = vmul.f32 %v2856, 0.044715
      %v2873 = vadd.f32 %v2763, %v2857
      %v2874 = vadd.f32 %v2766, %v2858
      %v2875 = vadd.f32 %v2771, %v2859
      %v2876 = vadd.f32 %v2774, %v2860
      %v2877 = vadd.f32 %v2779, %v2861
      %v2878 = vadd.f32 %v2782, %v2862
      %v2879 = vadd.f32 %v2787, %v2863
      %v2880 = vadd.f32 %v2790, %v2864
      %v2881 = vadd.f32 %v2795, %v2865
      %v2882 = vadd.f32 %v2798, %v2866
      %v2883 = vadd.f32 %v2803, %v2867
      %v2884 = vadd.f32 %v2806, %v2868
      %v2885 = vadd.f32 %v2811, %v2869
      %v2886 = vadd.f32 %v2814, %v2870
      %v2887 = vadd.f32 %v2819, %v2871
      %v2888 = vadd.f32 %v2822, %v2872
      %v2889 = vmul.f32 %v2873, 0.7978846
      %v2890 = vmul.f32 %v2874, 0.7978846
      %v2891 = vmul.f32 %v2875, 0.7978846
      %v2892 = vmul.f32 %v2876, 0.7978846
      %v2893 = vmul.f32 %v2877, 0.7978846
      %v2894 = vmul.f32 %v2878, 0.7978846
      %v2895 = vmul.f32 %v2879, 0.7978846
      %v2896 = vmul.f32 %v2880, 0.7978846
      %v2897 = vmul.f32 %v2881, 0.7978846
      %v2898 = vmul.f32 %v2882, 0.7978846
      %v2899 = vmul.f32 %v2883, 0.7978846
      %v2900 = vmul.f32 %v2884, 0.7978846
      %v2901 = vmul.f32 %v2885, 0.7978846
      %v2902 = vmul.f32 %v2886, 0.7978846
      %v2903 = vmul.f32 %v2887, 0.7978846
      %v2904 = vmul.f32 %v2888, 0.7978846
      %v2905 = vtanh.pop %v2889
      %v2906 = vtanh.pop %v2890
      %v2907 = vtanh.pop %v2891
      %v2908 = vtanh.pop %v2892
      %v2909 = vtanh.pop %v2893
      %v2910 = vtanh.pop %v2894
      %v2911 = vtanh.pop %v2895
      %v2912 = vtanh.pop %v2896
      %v2913 = vtanh.pop %v2897
      %v2914 = vtanh.pop %v2898
      %v2915 = vtanh.pop %v2899
      %v2916 = vtanh.pop %v2900
      %v2917 = vtanh.pop %v2901
      %v2918 = vtanh.pop %v2902
      %v2919 = vtanh.pop %v2903
      %v2920 = vtanh.pop %v2904
      %v2921 = vadd.f32 %v2905, 1.0
      %v2922 = vadd.f32 %v2906, 1.0
      %v2923 = vadd.f32 %v2907, 1.0
      %v2924 = vadd.f32 %v2908, 1.0
      %v2925 = vadd.f32 %v2909, 1.0
      %v2926 = vadd.f32 %v2910, 1.0
      %v2927 = vadd.f32 %v2911, 1.0
      %v2928 = vadd.f32 %v2912, 1.0
      %v2929 = vadd.f32 %v2913, 1.0
      %v2930 = vadd.f32 %v2914, 1.0
      %v2931 = vadd.f32 %v2915, 1.0
      %v2932 = vadd.f32 %v2916, 1.0
      %v2933 = vadd.f32 %v2917, 1.0
      %v2934 = vadd.f32 %v2918, 1.0
      %v2935 = vadd.f32 %v2919, 1.0
      %v2936 = vadd.f32 %v2920, 1.0
      %v2937 = vmul.f32 %v2921, 0.5
      %v2938 = vmul.f32 %v2922, 0.5
      %v2939 = vmul.f32 %v2923, 0.5
      %v2940 = vmul.f32 %v2924, 0.5
      %v2941 = vmul.f32 %v2925, 0.5
      %v2942 = vmul.f32 %v2926, 0.5
      %v2943 = vmul.f32 %v2927, 0.5
      %v2944 = vmul.f32 %v2928, 0.5
      %v2945 = vmul.f32 %v2929, 0.5
      %v2946 = vmul.f32 %v2930, 0.5
      %v2947 = vmul.f32 %v2931, 0.5
      %v2948 = vmul.f32 %v2932, 0.5
      %v2949 = vmul.f32 %v2933, 0.5
      %v2950 = vmul.f32 %v2934, 0.5
      %v2951 = vmul.f32 %v2935, 0.5
      %v2952 = vmul.f32 %v2936, 0.5
      %v2953 = vmul.f32 %v2763, %v2937
      %v2954 = vmul.f32 %v2766, %v2938
      %v2955 = vmul.f32 %v2771, %v2939
      %v2956 = vmul.f32 %v2774, %v2940
      %v2957 = vmul.f32 %v2779, %v2941
      %v2958 = vmul.f32 %v2782, %v2942
      %v2959 = vmul.f32 %v2787, %v2943
      %v2960 = vmul.f32 %v2790, %v2944
      %v2961 = vmul.f32 %v2795, %v2945
      %v2962 = vmul.f32 %v2798, %v2946
      %v2963 = vmul.f32 %v2803, %v2947
      %v2964 = vmul.f32 %v2806, %v2948
      %v2965 = vmul.f32 %v2811, %v2949
      %v2966 = vmul.f32 %v2814, %v2950
      %v2967 = vmul.f32 %v2819, %v2951
      %v2968 = vmul.f32 %v2822, %v2952
      %v2969 = vpack.c.bf16 %v2954, %v2953
      %v2970 = vpack.c.bf16 %v2956, %v2955
      %v2971 = vpack.c.bf16 %v2958, %v2957
      %v2972 = vpack.c.bf16 %v2960, %v2959
      %v2973 = vpack.c.bf16 %v2962, %v2961
      %v2974 = vpack.c.bf16 %v2964, %v2963
      %v2975 = vpack.c.bf16 %v2966, %v2965
      %v2976 = vpack.c.bf16 %v2968, %v2967
      %v2977 = vld [vmem:[%s598] sm:$0xf]
      %v2978 = vld [vmem:[%s598 + $0x4] sm:$0xf]
      %v2979 = vld [vmem:[%s598 + $0x8] sm:$0xf]
      %v2980 = vld [vmem:[%s598 + $0xc] sm:$0xf]
      %v2981 = vld [vmem:[%s598 + $0x10] sm:$0xf]
      %v2982 = vld [vmem:[%s598 + $0x14] sm:$0xf]
      %v2983 = vld [vmem:[%s598 + $0x18] sm:$0xf]
      %v2984 = vld [vmem:[%s598 + $0x1c] sm:$0xf]
      %v2985 = vld [vmem:[%s598 + $0x20] sm:$0xf]
      %v2986 = vld [vmem:[%s598 + $0x24] sm:$0xf]
      %v2987 = vld [vmem:[%s598 + $0x28] sm:$0xf]
      %v2988 = vld [vmem:[%s598 + $0x2c] sm:$0xf]
      %v2989 = vld [vmem:[%s598 + $0x30] sm:$0xf]
      %v2990 = vld [vmem:[%s598 + $0x34] sm:$0xf]
      %v2991 = vld [vmem:[%s598 + $0x38] sm:$0xf]
      %v2992 = vld [vmem:[%s598 + $0x3c] sm:$0xf]
      %v2993 = vld [vmem:[%s601] sm:$0x1]
      %v2995 = vlaneseq
      %v2996 = vshrl.u32 %v2995, 7
      %v2997 = vsub.s32 0, %v2996
      %v2998 = vrot.slane %v2993, %v2997
      %v3016 = vunpack.c.l.b16 %v2977
      %v3017 = vunpack.c.l.b16 %v2978
      %v3018 = vunpack.c.l.b16 %v2979
      %v3019 = vunpack.c.l.b16 %v2980
      %v3020 = vunpack.c.l.b16 %v2981
      %v3021 = vunpack.c.l.b16 %v2982
      %v3022 = vunpack.c.l.b16 %v2983
      %v3023 = vunpack.c.l.b16 %v2984
      %v3024 = vunpack.c.l.b16 %v2985
      %v3025 = vunpack.c.l.b16 %v2986
      %v3026 = vunpack.c.l.b16 %v2987
      %v3027 = vunpack.c.l.b16 %v2988
      %v3028 = vunpack.c.l.b16 %v2989
      %v3029 = vunpack.c.l.b16 %v2990
      %v3030 = vunpack.c.l.b16 %v2991
      %v3031 = vunpack.c.l.b16 %v2992
      %v3032 = vpack.c.b16 %v3017, %v3016
      %v3033 = vpack.c.b16 %v3019, %v3018
      %v3034 = vpack.c.b16 %v3021, %v3020
      %v3035 = vpack.c.b16 %v3023, %v3022
      %v3036 = vpack.c.b16 %v3025, %v3024
      %v3037 = vpack.c.b16 %v3027, %v3026
      %v3038 = vpack.c.b16 %v3029, %v3028
      %v3039 = vpack.c.b16 %v3031, %v3030
      %3048 = vmatprep.subr.bf16.mxu0 0
      %3049 = vmatpush1.bf16.msra.mxu0 %v3032
      %3050 = vmatprep.subr.bf16.mxu0 0
      %3051 = vmatpush1.bf16.msra.mxu0 %v3033
      %3052 = vmatprep.subr.bf16.mxu0 0
      %3053 = vmatpush1.bf16.msra.mxu0 %v3034
      %3054 = vmatprep.subr.bf16.mxu0 0
      %3055 = vmatpush1.bf16.msra.mxu0 %v3035
      %3056 = vmatprep.subr.bf16.mxu0 0
      %3057 = vmatpush1.bf16.msra.mxu0 %v3036
      %3058 = vmatprep.subr.bf16.mxu0 0
      %3059 = vmatpush1.bf16.msra.mxu0 %v3037
      %3060 = vmatprep.subr.bf16.mxu0 0
      %3061 = vmatpush1.bf16.msra.mxu0 %v3038
      %3062 = vmatprep.subr.bf16.mxu0 0
      %3063 = vmatpush1.bf16.msra.mxu0 %v3039
      %3064 = vmatprep.subr.bf16.mxu0 0
      %3065 = vmatpush1.bf16.msra.mxu0 0
      %3066 = vmatprep.subr.bf16.mxu0 0
      %3067 = vmatpush1.bf16.msra.mxu0 0
      %3068 = vmatprep.subr.bf16.mxu0 0
      %3069 = vmatpush1.bf16.msra.mxu0 0
      %3070 = vmatprep.subr.bf16.mxu0 0
      %3071 = vmatpush1.bf16.msra.mxu0 0
      %3072 = vmatprep.subr.bf16.mxu0 0
      %3073 = vmatpush1.bf16.msra.mxu0 0
      %3074 = vmatprep.subr.bf16.mxu0 0
      %3075 = vmatpush1.bf16.msra.mxu0 0
      %3076 = vmatprep.subr.bf16.mxu0 0
      %3077 = vmatpush1.bf16.msra.mxu0 0
      %3078 = vmatprep.subr.bf16.mxu0 0
      %3079 = vmatpush1.bf16.msra.mxu0 0
      %3080 = vmatprep.mubr.bf16.mxu0 0
      %3081 = vmatmul.mubr.bf16.gmra.mrb[0].mxu0 %v2969
      %v3082 = vpop.f32.mrb[0].mxu0
      %v3083 = vadd.f32 %v2998, %v3082
      %v3084 = vpop.f32.mrb[0].mxu0
      %v3085 = vpop.f32.mrb[0].mxu0
      %v3086 = vadd.f32 %v2998, %v3085
      %v3087 = vpop.f32.mrb[0].mxu0
      %3088 = vmatprep.mubr.bf16.mxu0 0
      %3089 = vmatmul.mubr.bf16.gmra.mrb[0].mxu0 %v2970
      %v3090 = vpop.f32.mrb[0].mxu0
      %v3091 = vadd.f32 %v2998, %v3090
      %v3092 = vpop.f32.mrb[0].mxu0
      %v3093 = vpop.f32.mrb[0].mxu0
      %v3094 = vadd.f32 %v2998, %v3093
      %v3095 = vpop.f32.mrb[0].mxu0
      %3096 = vmatprep.mubr.bf16.mxu0 0
      %3097 = vmatmul.mubr.bf16.gmra.mrb[0].mxu0 %v2971
      %v3098 = vpop.f32.mrb[0].mxu0
      %v3099 = vadd.f32 %v2998, %v3098
      %v3100 = vpop.f32.mrb[0].mxu0
      %v3101 = vpop.f32.mrb[0].mxu0
      %v3102 = vadd.f32 %v2998, %v3101
      %v3103 = vpop.f32.mrb[0].mxu0
      %3104 = vmatprep.mubr.bf16.mxu0 0
      %3105 = vmatmul.mubr.bf16.gmra.mrb[0].mxu0 %v2972
      %v3106 = vpop.f32.mrb[0].mxu0
      %v3107 = vadd.f32 %v2998, %v3106
      %v3108 = vpop.f32.mrb[0].mxu0
      %v3109 = vpop.f32.mrb[0].mxu0
      %v3110 = vadd.f32 %v2998, %v3109
      %v3111 = vpop.f32.mrb[0].mxu0
      %3112 = vmatprep.mubr.bf16.mxu0 0
      %3113 = vmatmul.mubr.bf16.gmra.mrb[0].mxu0 %v2973
      %v3114 = vpop.f32.mrb[0].mxu0
      %v3115 = vadd.f32 %v2998, %v3114
      %v3116 = vpop.f32.mrb[0].mxu0
      %v3117 = vpop.f32.mrb[0].mxu0
      %v3118 = vadd.f32 %v2998, %v3117
      %v3119 = vpop.f32.mrb[0].mxu0
      %3120 = vmatprep.mubr.bf16.mxu0 0
      %3121 = vmatmul.mubr.bf16.gmra.mrb[0].mxu0 %v2974
      %v3122 = vpop.f32.mrb[0].mxu0
      %v3123 = vadd.f32 %v2998, %v3122
      %v3124 = vpop.f32.mrb[0].mxu0
      %v3125 = vpop.f32.mrb[0].mxu0
      %v3126 = vadd.f32 %v2998, %v3125
      %v3127 = vpop.f32.mrb[0].mxu0
      %3128 = vmatprep.mubr.bf16.mxu0 0
      %3129 = vmatmul.mubr.bf16.gmra.mrb[0].mxu0 %v2975
      %v3130 = vpop.f32.mrb[0].mxu0
      %v3131 = vadd.f32 %v2998, %v3130
      %v3132 = vpop.f32.mrb[0].mxu0
      %v3133 = vpop.f32.mrb[0].mxu0
      %v3134 = vadd.f32 %v2998, %v3133
      %v3135 = vpop.f32.mrb[0].mxu0
      %3136 = vmatprep.mubr.bf16.mxu0 0
      %3137 = vmatmul.mubr.bf16.gmra.mrb[0].mxu0 %v2976
      %v3138 = vpop.f32.mrb[0].mxu0
      %v3139 = vadd.f32 %v2998, %v3138
      %v3140 = vpop.f32.mrb[0].mxu0
      %v3141 = vpop.f32.mrb[0].mxu0
      %v3142 = vadd.f32 %v2998, %v3141
      %v3143 = vpop.f32.mrb[0].mxu0
      %3144 = vdwg.mxu0
      %v3145 = vadd.f32 %v3083, %v2657
      %v3146 = vadd.f32 %v3086, %v2658
      %v3147 = vadd.f32 %v3091, %v2659
      %v3148 = vadd.f32 %v3094, %v2660
      %v3149 = vadd.f32 %v3099, %v2661
      %v3150 = vadd.f32 %v3102, %v2662
      %v3151 = vadd.f32 %v3107, %v2663
      %v3152 = vadd.f32 %v3110, %v2664
      %v3153 = vadd.f32 %v3115, %v2665
      %v3154 = vadd.f32 %v3118, %v2666
      %v3155 = vadd.f32 %v3123, %v2667
      %v3156 = vadd.f32 %v3126, %v2668
      %v3157 = vadd.f32 %v3131, %v2669
      %v3158 = vadd.f32 %v3134, %v2670
      %v3159 = vadd.f32 %v3139, %v2671
      %v3160 = vadd.f32 %v3142, %v2672
      %v3161 = vld [vmem:[%s604] sm:$0x1]
      %v3162 = vld [vmem:[%s607] sm:$0x1]
      %v3163 = vsel %vm2387, %v3145, 0.0
      %3164 = vadd.xlane.f32.xlu0 %v3163
      %v3165 = vpop.xlane.xlu0 %3164
      %v3166 = vsel %vm2387, %v3146, 0.0
      %3167 = vadd.xlane.f32.xlu0 %v3166
      %v3168 = vpop.xlane.xlu0 %3167
      %v3169 = vsel %vm2387, %v3147, 0.0
      %3170 = vadd.xlane.f32.xlu0 %v3169
      %v3171 = vpop.xlane.xlu0 %3170
      %v3172 = vsel %vm2387, %v3148, 0.0
      %3173 = vadd.xlane.f32.xlu0 %v3172
      %v3174 = vpop.xlane.xlu0 %3173
      %v3175 = vsel %vm2387, %v3149, 0.0
      %3176 = vadd.xlane.f32.xlu0 %v3175
      %v3177 = vpop.xlane.xlu0 %3176
      %v3178 = vsel %vm2387, %v3150, 0.0
      %3179 = vadd.xlane.f32.xlu0 %v3178
      %v3180 = vpop.xlane.xlu0 %3179
      %v3181 = vsel %vm2387, %v3151, 0.0
      %3182 = vadd.xlane.f32.xlu0 %v3181
      %v3183 = vpop.xlane.xlu0 %3182
      %v3184 = vsel %vm2387, %v3152, 0.0
      %3185 = vadd.xlane.f32.xlu0 %v3184
      %v3186 = vpop.xlane.xlu0 %3185
      %v3187 = vsel %vm2387, %v3153, 0.0
      %3188 = vadd.xlane.f32.xlu0 %v3187
      %v3189 = vpop.xlane.xlu0 %3188
      %v3190 = vsel %vm2387, %v3154, 0.0
      %3191 = vadd.xlane.f32.xlu0 %v3190
      %v3192 = vpop.xlane.xlu0 %3191
      %v3193 = vsel %vm2387, %v3155, 0.0
      %3194 = vadd.xlane.f32.xlu0 %v3193
      %v3195 = vpop.xlane.xlu0 %3194
      %v3196 = vsel %vm2387, %v3156, 0.0
      %3197 = vadd.xlane.f32.xlu0 %v3196
      %v3198 = vpop.xlane.xlu0 %3197
      %v3199 = vsel %vm2387, %v3157, 0.0
      %3200 = vadd.xlane.f32.xlu0 %v3199
      %v3201 = vpop.xlane.xlu0 %3200
      %v3202 = vsel %vm2387, %v3158, 0.0
      %3203 = vadd.xlane.f32.xlu0 %v3202
      %v3204 = vpop.xlane.xlu0 %3203
      %v3205 = vsel %vm2387, %v3159, 0.0
      %3206 = vadd.xlane.f32.xlu0 %v3205
      %v3207 = vpop.xlane.xlu0 %3206
      %v3208 = vsel %vm2387, %v3160, 0.0
      %3209 = vadd.xlane.f32.xlu0 %v3208
      %v3210 = vpop.xlane.xlu0 %3209
      %v3211 = vmul.f32 %v3165, %v2436
      %v3212 = vmul.f32 %v3168, %v2436
      %v3213 = vmul.f32 %v3171, %v2436
      %v3214 = vmul.f32 %v3174, %v2436
      %v3215 = vmul.f32 %v3177, %v2436
      %v3216 = vmul.f32 %v3180, %v2436
      %v3217 = vmul.f32 %v3183, %v2436
      %v3218 = vmul.f32 %v3186, %v2436
      %v3219 = vmul.f32 %v3189, %v2436
      %v3220 = vmul.f32 %v3192, %v2436
      %v3221 = vmul.f32 %v3195, %v2436
      %v3222 = vmul.f32 %v3198, %v2436
      %v3223 = vmul.f32 %v3201, %v2436
      %v3224 = vmul.f32 %v3204, %v2436
      %v3225 = vmul.f32 %v3207, %v2436
      %v3226 = vmul.f32 %v3210, %v2436
      %v3227 = vmul.f32 %v3145, %v3145
      %v3228 = vmul.f32 %v3146, %v3146
      %v3229 = vmul.f32 %v3147, %v3147
      %v3230 = vmul.f32 %v3148, %v3148
      %v3231 = vmul.f32 %v3149, %v3149
      %v3232 = vmul.f32 %v3150, %v3150
      %v3233 = vmul.f32 %v3151, %v3151
      %v3234 = vmul.f32 %v3152, %v3152
      %v3235 = vmul.f32 %v3153, %v3153
      %v3236 = vmul.f32 %v3154, %v3154
      %v3237 = vmul.f32 %v3155, %v3155
      %v3238 = vmul.f32 %v3156, %v3156
      %v3239 = vmul.f32 %v3157, %v3157
      %v3240 = vmul.f32 %v3158, %v3158
      %v3241 = vmul.f32 %v3159, %v3159
      %v3242 = vmul.f32 %v3160, %v3160
      %v3243 = vsel %vm2387, %v3227, 0.0
      %3244 = vadd.xlane.f32.xlu0 %v3243
      %v3245 = vpop.xlane.xlu0 %3244
      %v3246 = vsel %vm2387, %v3228, 0.0
      %3247 = vadd.xlane.f32.xlu0 %v3246
      %v3248 = vpop.xlane.xlu0 %3247
      %v3249 = vsel %vm2387, %v3229, 0.0
      %3250 = vadd.xlane.f32.xlu0 %v3249
      %v3251 = vpop.xlane.xlu0 %3250
      %v3252 = vsel %vm2387, %v3230, 0.0
      %3253 = vadd.xlane.f32.xlu0 %v3252
      %v3254 = vpop.xlane.xlu0 %3253
      %v3255 = vsel %vm2387, %v3231, 0.0
      %3256 = vadd.xlane.f32.xlu0 %v3255
      %v3257 = vpop.xlane.xlu0 %3256
      %v3258 = vsel %vm2387, %v3232, 0.0
      %3259 = vadd.xlane.f32.xlu0 %v3258
      %v3260 = vpop.xlane.xlu0 %3259
      %v3261 = vsel %vm2387, %v3233, 0.0
      %3262 = vadd.xlane.f32.xlu0 %v3261
      %v3263 = vpop.xlane.xlu0 %3262
      %v3264 = vsel %vm2387, %v3234, 0.0
      %3265 = vadd.xlane.f32.xlu0 %v3264
      %v3266 = vpop.xlane.xlu0 %3265
      %v3267 = vsel %vm2387, %v3235, 0.0
      %3268 = vadd.xlane.f32.xlu0 %v3267
      %v3269 = vpop.xlane.xlu0 %3268
      %v3270 = vsel %vm2387, %v3236, 0.0
      %3271 = vadd.xlane.f32.xlu0 %v3270
      %v3272 = vpop.xlane.xlu0 %3271
      %v3273 = vsel %vm2387, %v3237, 0.0
      %3274 = vadd.xlane.f32.xlu0 %v3273
      %v3275 = vpop.xlane.xlu0 %3274
      %v3276 = vsel %vm2387, %v3238, 0.0
      %3277 = vadd.xlane.f32.xlu0 %v3276
      %v3278 = vpop.xlane.xlu0 %3277
      %v3279 = vsel %vm2387, %v3239, 0.0
      %3280 = vadd.xlane.f32.xlu0 %v3279
      %v3281 = vpop.xlane.xlu0 %3280
      %v3282 = vsel %vm2387, %v3240, 0.0
      %3283 = vadd.xlane.f32.xlu0 %v3282
      %v3284 = vpop.xlane.xlu0 %3283
      %v3285 = vsel %vm2387, %v3241, 0.0
      %3286 = vadd.xlane.f32.xlu0 %v3285
      %v3287 = vpop.xlane.xlu0 %3286
      %v3288 = vsel %vm2387, %v3242, 0.0
      %3289 = vadd.xlane.f32.xlu0 %v3288
      %v3290 = vpop.xlane.xlu0 %3289
      %v3291 = vmul.f32 %v3245, %v2436
      %v3292 = vmul.f32 %v3248, %v2436
      %v3293 = vmul.f32 %v3251, %v2436
      %v3294 = vmul.f32 %v3254, %v2436
      %v3295 = vmul.f32 %v3257, %v2436
      %v3296 = vmul.f32 %v3260, %v2436
      %v3297 = vmul.f32 %v3263, %v2436
      %v3298 = vmul.f32 %v3266, %v2436
      %v3299 = vmul.f32 %v3269, %v2436
      %v3300 = vmul.f32 %v3272, %v2436
      %v3301 = vmul.f32 %v3275, %v2436
      %v3302 = vmul.f32 %v3278, %v2436
      %v3303 = vmul.f32 %v3281, %v2436
      %v3304 = vmul.f32 %v3284, %v2436
      %v3305 = vmul.f32 %v3287, %v2436
      %v3306 = vmul.f32 %v3290, %v2436
      %v3307 = vmul.f32 %v3211, %v3211
      %v3308 = vmul.f32 %v3212, %v3212
      %v3309 = vmul.f32 %v3213, %v3213
      %v3310 = vmul.f32 %v3214, %v3214
      %v3311 = vmul.f32 %v3215, %v3215
      %v3312 = vmul.f32 %v3216, %v3216
      %v3313 = vmul.f32 %v3217, %v3217
      %v3314 = vmul.f32 %v3218, %v3218
      %v3315 = vmul.f32 %v3219, %v3219
      %v3316 = vmul.f32 %v3220, %v3220
      %v3317 = vmul.f32 %v3221, %v3221
      %v3318 = vmul.f32 %v3222, %v3222
      %v3319 = vmul.f32 %v3223, %v3223
      %v3320 = vmul.f32 %v3224, %v3224
      %v3321 = vmul.f32 %v3225, %v3225
      %v3322 = vmul.f32 %v3226, %v3226
      %v3323 = vsub.f32 %v3291, %v3307
      %v3324 = vsub.f32 %v3292, %v3308
      %v3325 = vsub.f32 %v3293, %v3309
      %v3326 = vsub.f32 %v3294, %v3310
      %v3327 = vsub.f32 %v3295, %v3311
      %v3328 = vsub.f32 %v3296, %v3312
      %v3329 = vsub.f32 %v3297, %v3313
      %v3330 = vsub.f32 %v3298, %v3314
      %v3331 = vsub.f32 %v3299, %v3315
      %v3332 = vsub.f32 %v3300, %v3316
      %v3333 = vsub.f32 %v3301, %v3317
      %v3334 = vsub.f32 %v3302, %v3318
      %v3335 = vsub.f32 %v3303, %v3319
      %v3336 = vsub.f32 %v3304, %v3320
      %v3337 = vsub.f32 %v3305, %v3321
      %v3338 = vsub.f32 %v3306, %v3322
      %v3339 = vsub.f32 %v3145, %v3211
      %v3340 = vsub.f32 %v3146, %v3212
      %v3341 = vsub.f32 %v3147, %v3213
      %v3342 = vsub.f32 %v3148, %v3214
      %v3343 = vsub.f32 %v3149, %v3215
      %v3344 = vsub.f32 %v3150, %v3216
      %v3345 = vsub.f32 %v3151, %v3217
      %v3346 = vsub.f32 %v3152, %v3218
      %v3347 = vsub.f32 %v3153, %v3219
      %v3348 = vsub.f32 %v3154, %v3220
      %v3349 = vsub.f32 %v3155, %v3221
      %v3350 = vsub.f32 %v3156, %v3222
      %v3351 = vsub.f32 %v3157, %v3223
      %v3352 = vsub.f32 %v3158, %v3224
      %v3353 = vsub.f32 %v3159, %v3225
      %v3354 = vsub.f32 %v3160, %v3226
      %v3355 = vadd.f32 %v3323, 1e-12
      %v3356 = vadd.f32 %v3324, 1e-12
      %v3357 = vadd.f32 %v3325, 1e-12
      %v3358 = vadd.f32 %v3326, 1e-12
      %v3359 = vadd.f32 %v3327, 1e-12
      %v3360 = vadd.f32 %v3328, 1e-12
      %v3361 = vadd.f32 %v3329, 1e-12
      %v3362 = vadd.f32 %v3330, 1e-12
      %v3363 = vadd.f32 %v3331, 1e-12
      %v3364 = vadd.f32 %v3332, 1e-12
      %v3365 = vadd.f32 %v3333, 1e-12
      %v3366 = vadd.f32 %v3334, 1e-12
      %v3367 = vadd.f32 %v3335, 1e-12
      %v3368 = vadd.f32 %v3336, 1e-12
      %v3369 = vadd.f32 %v3337, 1e-12
      %v3370 = vadd.f32 %v3338, 1e-12
      %v3371 = vrsqrt.pop %v3355
      %v3372 = vrsqrt.pop %v3356
      %v3373 = vrsqrt.pop %v3357
      %v3374 = vrsqrt.pop %v3358
      %v3375 = vrsqrt.pop %v3359
      %v3376 = vrsqrt.pop %v3360
      %v3377 = vrsqrt.pop %v3361
      %v3378 = vrsqrt.pop %v3362
      %v3379 = vrsqrt.pop %v3363
      %v3380 = vrsqrt.pop %v3364
      %v3381 = vrsqrt.pop %v3365
      %v3382 = vrsqrt.pop %v3366
      %v3383 = vrsqrt.pop %v3367
      %v3384 = vrsqrt.pop %v3368
      %v3385 = vrsqrt.pop %v3369
      %v3386 = vrsqrt.pop %v3370
      %v3387 = vmul.f32 %v3339, %v3371
      %v3388 = vmul.f32 %v3340, %v3372
      %v3389 = vmul.f32 %v3341, %v3373
      %v3390 = vmul.f32 %v3342, %v3374
      %v3391 = vmul.f32 %v3343, %v3375
      %v3392 = vmul.f32 %v3344, %v3376
      %v3393 = vmul.f32 %v3345, %v3377
      %v3394 = vmul.f32 %v3346, %v3378
      %v3395 = vmul.f32 %v3347, %v3379
      %v3396 = vmul.f32 %v3348, %v3380
      %v3397 = vmul.f32 %v3349, %v3381
      %v3398 = vmul.f32 %v3350, %v3382
      %v3399 = vmul.f32 %v3351, %v3383
      %v3400 = vmul.f32 %v3352, %v3384
      %v3401 = vmul.f32 %v3353, %v3385
      %v3402 = vmul.f32 %v3354, %v3386
      %v3404 = vlaneseq
      %v3405 = vshrl.u32 %v3404, 7
      %v3406 = vsub.s32 0, %v3405
      %v3407 = vrot.slane %v3161, %v3406
      %v3409 = vmul.f32 %v3387, %v3407
      %v3410 = vmul.f32 %v3388, %v3407
      %v3411 = vmul.f32 %v3389, %v3407
      %v3412 = vmul.f32 %v3390, %v3407
      %v3413 = vmul.f32 %v3391, %v3407
      %v3414 = vmul.f32 %v3392, %v3407
      %v3415 = vmul.f32 %v3393, %v3407
      %v3416 = vmul.f32 %v3394, %v3407
      %v3417 = vmul.f32 %v3395, %v3407
      %v3418 = vmul.f32 %v3396, %v3407
      %v3419 = vmul.f32 %v3397, %v3407
      %v3420 = vmul.f32 %v3398, %v3407
      %v3421 = vmul.f32 %v3399, %v3407
      %v3422 = vmul.f32 %v3400, %v3407
      %v3423 = vmul.f32 %v3401, %v3407
      %v3424 = vmul.f32 %v3402, %v3407
      %v3426 = vlaneseq
      %v3427 = vshrl.u32 %v3426, 7
      %v3428 = vsub.s32 0, %v3427
      %v3429 = vrot.slane %v3162, %v3428
      %v3431 = vadd.f32 %v3409, %v3429
      %v3432 = vadd.f32 %v3410, %v3429
      %v3433 = vadd.f32 %v3411, %v3429
      %v3434 = vadd.f32 %v3412, %v3429
      %v3435 = vadd.f32 %v3413, %v3429
      %v3436 = vadd.f32 %v3414, %v3429
      %v3437 = vadd.f32 %v3415, %v3429
      %v3438 = vadd.f32 %v3416, %v3429
      %v3439 = vadd.f32 %v3417, %v3429
      %v3440 = vadd.f32 %v3418, %v3429
      %v3441 = vadd.f32 %v3419, %v3429
      %v3442 = vadd.f32 %v3420, %v3429
      %v3443 = vadd.f32 %v3421, %v3429
      %v3444 = vadd.f32 %v3422, %v3429
      %v3445 = vadd.f32 %v3423, %v3429
      %v3446 = vadd.f32 %v3424, %v3429
      %3447 = vst.msk [vmem:[#allocation2] sm:$0xff] %vm2387, %v3431
      %3448 = vst.msk [vmem:[#allocation2 + $0x8] sm:$0xff] %vm2387, %v3432
      %3449 = vst.msk [vmem:[#allocation2 + $0x10] sm:$0xff] %vm2387, %v3433
      %3450 = vst.msk [vmem:[#allocation2 + $0x18] sm:$0xff] %vm2387, %v3434
      %3451 = vst.msk [vmem:[#allocation2 + $0x20] sm:$0xff] %vm2387, %v3435
      %3452 = vst.msk [vmem:[#allocation2 + $0x28] sm:$0xff] %vm2387, %v3436
      %3453 = vst.msk [vmem:[#allocation2 + $0x30] sm:$0xff] %vm2387, %v3437
      %3454 = vst.msk [vmem:[#allocation2 + $0x38] sm:$0xff] %vm2387, %v3438
      %3455 = vst.msk [vmem:[#allocation2 + $0x40] sm:$0xff] %vm2387, %v3439
      %3456 = vst.msk [vmem:[#allocation2 + $0x48] sm:$0xff] %vm2387, %v3440
      %3457 = vst.msk [vmem:[#allocation2 + $0x50] sm:$0xff] %vm2387, %v3441
      %3458 = vst.msk [vmem:[#allocation2 + $0x58] sm:$0xff] %vm2387, %v3442
      %3459 = vst.msk [vmem:[#allocation2 + $0x60] sm:$0xff] %vm2387, %v3443
      %3460 = vst.msk [vmem:[#allocation2 + $0x68] sm:$0xff] %vm2387, %v3444
      %3461 = vst.msk [vmem:[#allocation2 + $0x70] sm:$0xff] %vm2387, %v3445
      %3462 = vst.msk [vmem:[#allocation2 + $0x78] sm:$0xff] %vm2387, %v3446
      %p3463 = scmp.eq.s32.totalorder %s29, 1
      // Predicated region
      $region77: #{tpu_custom_call.1} parent=71 // pred_check
        %p3464 = pneg %p3463
      $region78: #{tpu_custom_call.1} parent=71 // pred_check_branch
        %3466 = sbr.rel (%p3464) target = $region80
      $region79: #{tpu_custom_call.1} parent=71 // pred_region
        %3467 = vst.msk [vmem:[%s612] sm:$0xff] %vm2387, %v3431
        %3468 = vst.msk [vmem:[%s612 + $0x8] sm:$0xff] %vm2387, %v3432
        %3469 = vst.msk [vmem:[%s612 + $0x10] sm:$0xff] %vm2387, %v3433
        %3470 = vst.msk [vmem:[%s612 + $0x18] sm:$0xff] %vm2387, %v3434
        %3471 = vst.msk [vmem:[%s612 + $0x20] sm:$0xff] %vm2387, %v3435
        %3472 = vst.msk [vmem:[%s612 + $0x28] sm:$0xff] %vm2387, %v3436
        %3473 = vst.msk [vmem:[%s612 + $0x30] sm:$0xff] %vm2387, %v3437
        %3474 = vst.msk [vmem:[%s612 + $0x38] sm:$0xff] %vm2387, %v3438
        %3475 = vst.msk [vmem:[%s612 + $0x40] sm:$0xff] %vm2387, %v3439
        %3476 = vst.msk [vmem:[%s612 + $0x48] sm:$0xff] %vm2387, %v3440
        %3477 = vst.msk [vmem:[%s612 + $0x50] sm:$0xff] %vm2387, %v3441
        %3478 = vst.msk [vmem:[%s612 + $0x58] sm:$0xff] %vm2387, %v3442
        %3479 = vst.msk [vmem:[%s612 + $0x60] sm:$0xff] %vm2387, %v3443
        %3480 = vst.msk [vmem:[%s612 + $0x68] sm:$0xff] %vm2387, %v3444
        %3481 = vst.msk [vmem:[%s612 + $0x70] sm:$0xff] %vm2387, %v3445
        %3482 = vst.msk [vmem:[%s612 + $0x78] sm:$0xff] %vm2387, %v3446
      $region80: #{tpu_custom_call.1} parent=71 // pred_fallthru
        _
      %s3483 = smul.u32 16, %s28
      %p3484 = scmp.lt.s32.totalorder %s3483, 31
      %s3485 = scalar_select %p3484, %s3483, 31
      %s3486 = smul.addr %s3485, 8
      %s3487 = scalar_lea.vmem %s13, %s3486
      // Predicated region
      $region81: #{tpu_custom_call.1} parent=71 // pred_check
        %p3488 = pneg %p382
      $region82: #{tpu_custom_call.1} parent=71 // pred_check_branch
        %3490 = sbr.rel (%p3488) target = $region84
      $region83: #{tpu_custom_call.1} parent=71 // pred_region
        %s3491 = smul.u32 16, %s28
      $region84: #{tpu_custom_call.1} parent=71 // pred_fallthru
        _
    $region72: #{tpu_custom_call.1} parent=5 // pred_fallthru
      _
    %p3492 = scmp.le.s32.totalorder 2, %s19
    // Predicated region
    $region85: #{tpu_custom_call.1} parent=5 // pred_check
      %p3493 = pneg %p3492
    $region86: #{tpu_custom_call.1} parent=5 // pred_check_branch
      %3495 = sbr.rel (%p3493) target = $region88
    $region87: #{tpu_custom_call.1} parent=5 // pred_region
      %s3496 = ssub.s32 %s19, 2
      // Predicated region
      $region89: #{tpu_custom_call.1} parent=87 // pred_check
        %p3497 = pneg %p388
      $region90: #{tpu_custom_call.1} parent=87 // pred_check_branch
        %3499 = sbr.rel (%p3497) target = $region92
      $region91: #{tpu_custom_call.1} parent=87 // pred_region
        %s3500 = smul.u32 16, %s30
        %p3501 = scmp.lt.s32.totalorder %s3500, 31
        %s3502 = scalar_select %p3501, %s3500, 31
        %s3503 = smul.addr %s3502, 8
        %s3504 = scalar_lea.vmem %s13, %s3503
      $region92: #{tpu_custom_call.1} parent=87 // pred_fallthru
        _
    $region88: #{tpu_custom_call.1} parent=5 // pred_fallthru
      _
  $region6: #{tpu_custom_call.1} parent=0 // loop_footer
    %s23 = sadd.s32 1, %s19
  $region7: #{tpu_custom_call.1} parent=0 // loop_footer_branch
    %18 = sbr.rel target = $region3
  $region8: #{tpu_custom_call.1} parent=0 // loop_exit
    _

</llo_original>
